<compile_context>
chip_gen: v5e
topology: v5e:2x2
jax: 0.10.0
libtpu: 0.0.40
codegen_flags: <defaults>
</compile_context>

<pallas_src>
import functools

import jax
import jax.numpy as jnp
from jax.experimental import pallas as pl
from jax.experimental.pallas import tpu as pltpu


class SmallCLIPConfig:
    image_size = 32
    patch_size = 16
    channels = 3
    hidden = 64
    heads = 2
    layers = 2
    mlp = 128
    projection_dim = 32
    num_labels = 10
    ln_eps = 1e-5
    label_pad = 128     # pad logits lane dim to a full 128-lane vreg (lane-dense store)


# ---------------------------------------------------------------------------
# helpers
# ---------------------------------------------------------------------------
def _ln(x, g, b, eps):
    """Row-wise layernorm, all math in f32."""
    mean = jnp.mean(x, axis=-1, keepdims=True)
    c = x - mean
    var = jnp.mean(c * c, axis=-1, keepdims=True)
    return c * jax.lax.rsqrt(var + eps) * g + b


# ---------------------------------------------------------------------------
# The single fused kernel: embed -> L encoder layers -> head -> logits
# ---------------------------------------------------------------------------
def _clip_fwd_kernel(patch_ref, patch_w_ref, pos_ref, pre_g_ref, pre_b_ref,
                     mask_ref, sel_ref,
                     ln1_g_ref, ln1_b_ref,
                     wq_ref, bq_ref, wk_ref, bk_ref, wv_ref, bv_ref,
                     wo_ref, ob_ref,
                     ln2_g_ref, ln2_b_ref,
                     fc1_w_ref, fc1_b_ref, fc2_w_ref, fc2_b_ref,
                     post_g_ref, post_b_ref, vproj_ref, txt_ref,
                     o_ref, *, num_layers, num_heads, eps):
    # ---- patch embedding + CLS/pos (CLS rows of `patch_ref` are zero, so the
    # matmul contributes nothing there; pos_ref already carries cls_emb+pos[0]).
    x = jnp.dot(patch_ref[...], patch_w_ref[...],
                preferred_element_type=jnp.float32)               # (BS, H) f32
    x = x + pos_ref[...]
    x = _ln(x, pre_g_ref[...], pre_b_ref[...], eps)               # pre-LayerNorm

    mask = mask_ref[...]                                          # (BS, BS) additive
    H = x.shape[-1]
    dh = H // num_heads
    scale = dh ** -0.5

    for l in range(num_layers):                                   # static, unrolled
        # ---- self-attention block (batch folded; per-image via additive mask)
        h = _ln(x, ln1_g_ref[l], ln1_b_ref[l], eps).astype(jnp.bfloat16)
        attn = jnp.zeros_like(x)
        for hd in range(num_heads):                               # static, unrolled
            i = l * num_heads + hd
            q = jnp.dot(h, wq_ref[i], preferred_element_type=jnp.float32) + bq_ref[i]
            k = jnp.dot(h, wk_ref[i], preferred_element_type=jnp.float32) + bk_ref[i]
            v = jnp.dot(h, wv_ref[i], preferred_element_type=jnp.float32) + bv_ref[i]
            s = jax.lax.dot_general(q.astype(jnp.bfloat16), k.astype(jnp.bfloat16),
                                    (((1,), (1,)), ((), ())),
                                    preferred_element_type=jnp.float32)
            s = s * scale + mask                                  # block-diag mask
            m = jnp.max(s, axis=-1, keepdims=True)
            p = jnp.exp(s - m)
            p = p * pl.reciprocal(jnp.sum(p, axis=-1, keepdims=True), approx=True)
            ctx = jnp.dot(p.astype(jnp.bfloat16), v.astype(jnp.bfloat16),
                          preferred_element_type=jnp.float32)     # (BS, dh)
            # head's out-projection slice, accumulated == concat-heads-then-matmul
            attn = attn + jnp.dot(ctx.astype(jnp.bfloat16), wo_ref[i],
                                  preferred_element_type=jnp.float32)
        x = x + attn + ob_ref[l]

        # ---- MLP block (quick_gelu in f32)
        h2 = _ln(x, ln2_g_ref[l], ln2_b_ref[l], eps).astype(jnp.bfloat16)
        f = jnp.dot(h2, fc1_w_ref[l], preferred_element_type=jnp.float32)
        f = f + fc1_b_ref[l]
        f = f * jax.nn.sigmoid(1.702 * f)                         # quick_gelu
        f = jnp.dot(f.astype(jnp.bfloat16), fc2_w_ref[l],
                    preferred_element_type=jnp.float32) + fc2_b_ref[l]
        x = x + f

    # ---- head: CLS pooling via one-hot select matmul (exact, no gather/slice)
    pooled = jnp.dot(sel_ref[...], x, preferred_element_type=jnp.float32)   # (B, H)
    pooled = _ln(pooled, post_g_ref[...], post_b_ref[...], eps)
    emb = jnp.dot(pooled.astype(jnp.bfloat16), vproj_ref[...],
                  preferred_element_type=jnp.float32)             # (B, proj)
    emb = emb * jax.lax.rsqrt(jnp.sum(emb * emb, axis=-1, keepdims=True) + 1e-12)
    o_ref[...] = jnp.dot(emb.astype(jnp.bfloat16), txt_ref[...],
                         preferred_element_type=jnp.float32).astype(o_ref.dtype)


# ---------------------------------------------------------------------------
# Wrapper: data prep (pure layout plumbing) + the single pallas_call
# ---------------------------------------------------------------------------
def patchify(images, patch_size):
    """NCHW -> (B, num_patches, C*p*p), matching Conv2d(stride=p, kernel=p)."""
    B, C, Him, Wim = images.shape
    gh, gw = Him // patch_size, Wim // patch_size
    x = images.reshape(B, C, gh, patch_size, gw, patch_size)
    x = jnp.transpose(x, (0, 2, 4, 1, 3, 5))                      # (B, gh, gw, C, p, p)
    return x.reshape(B, gh * gw, C * patch_size * patch_size)


def clip_classifier_forward(params, images, cfg):
    B = images.shape[0]
    P = (cfg.image_size // cfg.patch_size) ** 2
    S = P + 1

    # Patch rows, with a ZERO row in each image's CLS slot (CLS embedding comes
    # entirely from the additive position/class term inside the kernel).
    patches = patchify(images, cfg.patch_size)                    # (B, P, pd) f32
    pd = patches.shape[-1]
    patches_seq = jnp.concatenate(
        [jnp.zeros((B, 1, pd), patches.dtype), patches], axis=1)  # (B, S, pd)
    patches_seq = patches_seq.reshape(B * S, pd).astype(jnp.bfloat16)

    # Positional/class term replicated per image -> (B*S, H).
    pos_img = jnp.concatenate([params["cls_pos"], params["patch_pos"]], axis=0)
    pos_full = jnp.tile(pos_img, (B, 1)).astype(jnp.float32)

    # Block-diagonal additive attention mask (tokens attend within their image).
    img_id = jnp.repeat(jnp.arange(B), S)
    mask = jnp.where(img_id[:, None] == img_id[None, :], 0.0, -1e30).astype(jnp.float32)

    # One-hot CLS-row selector (B, B*S) for in-kernel pooling.
    sel = jax.nn.one_hot(jnp.arange(B) * S, B * S, dtype=jnp.float32)

    args = (patches_seq, params["patch_w"], pos_full,
            params["pre_ln_g"], params["pre_ln_b"], mask, sel,
            params["ln1_g"], params["ln1_b"],
            params["wq"], params["bq"], params["wk"], params["bk"],
            params["wv"], params["bv"], params["wo"], params["ob"],
            params["ln2_g"], params["ln2_b"],
            params["fc1_w"], params["fc1_b"], params["fc2_w"], params["fc2_b"],
            params["post_ln_g"], params["post_ln_b"],
            params["visual_proj"], params["text_emb_t"])

    vspec = pl.BlockSpec(memory_space=pltpu.MemorySpace.VMEM)
    out = pl.pallas_call(
        functools.partial(_clip_fwd_kernel, num_layers=cfg.layers,
                          num_heads=cfg.heads, eps=cfg.ln_eps),
        out_shape=jax.ShapeDtypeStruct((B, cfg.label_pad), jnp.float32),
        in_specs=[vspec] * len(args),
        out_specs=vspec,
    )(*args)
    return out[:, :cfg.num_labels]


# ---------------------------------------------------------------------------
# Synthetic parameters, laid out in the fused/kernel-friendly form at init time
# ---------------------------------------------------------------------------
def init_params(key, cfg):
    def nrm(k, shape, std=0.02):
        return (std * jax.random.normal(k, shape)).astype(jnp.float32)

    keys = iter(jax.random.split(key, 128))
    H, Hm, L, nh = cfg.hidden, cfg.mlp, cfg.layers, cfg.heads
    dh = H // nh
    patch_dim = cfg.channels * cfg.patch_size * cfg.patch_size
    P = (cfg.image_size // cfg.patch_size) ** 2
    S = P + 1

    p = {}
    # CLIPVisionEmbeddings (patch conv has no bias in CLIP). class_emb + pos_emb[0]
    # is folded at init (parameter-only math); matmul weights stored in bf16.
    p["patch_w"] = nrm(next(keys), (patch_dim, H)).astype(jnp.bfloat16)
    class_emb = nrm(next(keys), (H,))
    pos_emb = nrm(next(keys), (S, H))
    p["cls_pos"] = (class_emb + pos_emb[0]).reshape(1, H)
    p["patch_pos"] = pos_emb[1:]
    p["pre_ln_g"] = jnp.ones((1, H), jnp.float32)
    p["pre_ln_b"] = jnp.zeros((1, H), jnp.float32)

    # Encoder weights, stacked over layers (and per head for Q/K/V/out-proj) so
    # the fused kernel never lane-slices activations.
    ln1_g, ln1_b, ln2_g, ln2_b, ob = [], [], [], [], []
    wq, wk, wv, bq, bk, bv, wo = [], [], [], [], [], [], []
    fc1_w, fc1_b, fc2_w, fc2_b = [], [], [], []
    for _ in range(L):
        qw, kw, vw, ow = (nrm(next(keys), (H, H)) for _ in range(4))
        qb, kb, vb = (nrm(next(keys), (H,)) for _ in range(3))
        for hd in range(nh):
            sl = slice(hd * dh, (hd + 1) * dh)
            wq.append(qw[:, sl]); wk.append(kw[:, sl]); wv.append(vw[:, sl])
            bq.append(qb[sl].reshape(1, dh))
            bk.append(kb[sl].reshape(1, dh))
            bv.append(vb[sl].reshape(1, dh))
            wo.append(ow[sl, :])                                  # (dh, H)
        ln1_g.append(jnp.ones((1, H), jnp.float32))
        ln1_b.append(jnp.zeros((1, H), jnp.float32))
        ln2_g.append(jnp.ones((1, H), jnp.float32))
        ln2_b.append(jnp.zeros((1, H), jnp.float32))
        ob.append(jnp.zeros((1, H), jnp.float32))
        fc1_w.append(nrm(next(keys), (H, Hm)))
        fc1_b.append(jnp.zeros((1, Hm), jnp.float32))
        fc2_w.append(nrm(next(keys), (Hm, H)))
        fc2_b.append(jnp.zeros((1, H), jnp.float32))

    p["ln1_g"] = jnp.stack(ln1_g); p["ln1_b"] = jnp.stack(ln1_b)   # (L, 1, H)
    p["ln2_g"] = jnp.stack(ln2_g); p["ln2_b"] = jnp.stack(ln2_b)
    p["wq"] = jnp.stack(wq).astype(jnp.bfloat16)                   # (L*nh, H, dh)
    p["wk"] = jnp.stack(wk).astype(jnp.bfloat16)
    p["wv"] = jnp.stack(wv).astype(jnp.bfloat16)
    p["bq"] = jnp.stack(bq); p["bk"] = jnp.stack(bk); p["bv"] = jnp.stack(bv)
    p["wo"] = jnp.stack(wo).astype(jnp.bfloat16)                   # (L*nh, dh, H)
    p["ob"] = jnp.stack(ob)                                        # (L, 1, H)
    p["fc1_w"] = jnp.stack(fc1_w).astype(jnp.bfloat16)             # (L, H, Hm)
    p["fc1_b"] = jnp.stack(fc1_b)
    p["fc2_w"] = jnp.stack(fc2_w).astype(jnp.bfloat16)             # (L, Hm, H)
    p["fc2_b"] = jnp.stack(fc2_b)

    p["post_ln_g"] = jnp.ones((1, H), jnp.float32)
    p["post_ln_b"] = jnp.zeros((1, H), jnp.float32)
    p["visual_proj"] = nrm(next(keys), (H, cfg.projection_dim)).astype(jnp.bfloat16)

    # Text embeddings are produced by the frozen text tower at __init__ time in the
    # PyTorch module (not in forward) and are already L2-normalized.  Stored
    # pre-transposed and lane-padded to 128 for a lane-dense logits store.
    txt = jax.random.normal(next(keys), (cfg.num_labels, cfg.projection_dim))
    txt = txt.astype(jnp.float32)
    txt = txt / jnp.linalg.norm(txt, axis=-1, keepdims=True)
    txt_t = jnp.zeros((cfg.projection_dim, cfg.label_pad), jnp.float32)
    txt_t = txt_t.at[:, :cfg.num_labels].set(txt.T)
    p["text_emb_t"] = txt_t.astype(jnp.bfloat16)
    return p


if __name__ == "__main__":
    cfg = SmallCLIPConfig()
    key = jax.random.PRNGKey(0)
    k_params, k_img = jax.random.split(key)

    params = init_params(k_params, cfg)
    # layout: NCHW, matching PyTorch pixel_values
    images = jax.random.normal(
        k_img, (2, cfg.channels, cfg.image_size, cfg.image_size)
    ).astype(jnp.float32)

    fwd = jax.jit(lambda p, im: clip_classifier_forward(p, im, cfg))
    logits = fwd(params, images)
    logits = jax.block_until_ready(logits)
    assert logits.shape == (2, cfg.num_labels)
    assert bool(jnp.all(jnp.isfinite(logits)))
    print("KERNEL_OK")
</pallas_src>

<mosaic_0001>
module attributes {stable_mosaic.version = 11 : i64} {
  func.func @_clip_fwd_kernel(%arg0: memref<10x768xbf16, #tpu.memory_space<vmem>>, %arg1: memref<768x64xbf16, #tpu.memory_space<vmem>>, %arg2: memref<10x64xf32, #tpu.memory_space<vmem>>, %arg3: memref<1x64xf32, #tpu.memory_space<vmem>>, %arg4: memref<1x64xf32, #tpu.memory_space<vmem>>, %arg5: memref<10x10xf32, #tpu.memory_space<vmem>>, %arg6: memref<2x10xf32, #tpu.memory_space<vmem>>, %arg7: memref<2x1x64xf32, #tpu.memory_space<vmem>>, %arg8: memref<2x1x64xf32, #tpu.memory_space<vmem>>, %arg9: memref<4x64x32xbf16, #tpu.memory_space<vmem>>, %arg10: memref<4x1x32xf32, #tpu.memory_space<vmem>>, %arg11: memref<4x64x32xbf16, #tpu.memory_space<vmem>>, %arg12: memref<4x1x32xf32, #tpu.memory_space<vmem>>, %arg13: memref<4x64x32xbf16, #tpu.memory_space<vmem>>, %arg14: memref<4x1x32xf32, #tpu.memory_space<vmem>>, %arg15: memref<4x32x64xbf16, #tpu.memory_space<vmem>>, %arg16: memref<2x1x64xf32, #tpu.memory_space<vmem>>, %arg17: memref<2x1x64xf32, #tpu.memory_space<vmem>>, %arg18: memref<2x1x64xf32, #tpu.memory_space<vmem>>, %arg19: memref<2x64x128xbf16, #tpu.memory_space<vmem>>, %arg20: memref<2x1x128xf32, #tpu.memory_space<vmem>>, %arg21: memref<2x128x64xbf16, #tpu.memory_space<vmem>>, %arg22: memref<2x1x64xf32, #tpu.memory_space<vmem>>, %arg23: memref<1x64xf32, #tpu.memory_space<vmem>>, %arg24: memref<1x64xf32, #tpu.memory_space<vmem>>, %arg25: memref<64x32xbf16, #tpu.memory_space<vmem>>, %arg26: memref<32x128xbf16, #tpu.memory_space<vmem>>, %arg27: memref<2x128xf32, #tpu.memory_space<vmem>>) attributes {dimension_semantics = [], scalar_prefetch = 0 : i64, scratch_operands = 0 : i64, tpu.core_type = #tpu.core_type<tc>} {
    %c0 = arith.constant 0 : index
    %c0_0 = arith.constant 0 : index
    %0 = vector.load %arg0[%c0, %c0_0] : memref<10x768xbf16, #tpu.memory_space<vmem>>, vector<10x768xbf16>
    %c0_1 = arith.constant 0 : index
    %c0_2 = arith.constant 0 : index
    %1 = vector.load %arg1[%c0_1, %c0_2] : memref<768x64xbf16, #tpu.memory_space<vmem>>, vector<768x64xbf16>
    %cst = arith.constant dense<0.000000e+00> : vector<10x64xf32>
    %2 = tpu.matmul %0, %1, %cst {dimension_numbers = #tpu.dot_dimension_numbers<[1], [0], [0], [1], [0, 0, 1, 1], [], []>} : vector<10x768xbf16>, vector<768x64xbf16>, vector<10x64xf32> -> vector<10x64xf32>
    %c0_3 = arith.constant 0 : index
    %c0_4 = arith.constant 0 : index
    %3 = vector.load %arg2[%c0_3, %c0_4] : memref<10x64xf32, #tpu.memory_space<vmem>>, vector<10x64xf32>
    %4 = arith.addf %2, %3 : vector<10x64xf32>
    %c0_5 = arith.constant 0 : index
    %c0_6 = arith.constant 0 : index
    %5 = vector.load %arg3[%c0_5, %c0_6] : memref<1x64xf32, #tpu.memory_space<vmem>>, vector<1x64xf32>
    %c0_7 = arith.constant 0 : index
    %c0_8 = arith.constant 0 : index
    %6 = vector.load %arg4[%c0_7, %c0_8] : memref<1x64xf32, #tpu.memory_space<vmem>>, vector<1x64xf32>
    %cst_9 = arith.constant dense<0.000000e+00> : vector<10xf32>
    %7 = vector.multi_reduction <add>, %4, %cst_9 [1] : vector<10x64xf32> to vector<10xf32>
    %8 = vector.shape_cast %7 : vector<10xf32> to vector<10x1xf32>
    %cst_10 = arith.constant 6.400000e+01 : f32
    %9 = vector.broadcast %cst_10 : f32 to vector<10x1xf32>
    %10 = arith.divf %8, %9 : vector<10x1xf32>
    %11 = vector.broadcast %10 : vector<10x1xf32> to vector<10x64xf32>
    %12 = arith.subf %4, %11 : vector<10x64xf32>
    %13 = arith.mulf %12, %12 : vector<10x64xf32>
    %cst_11 = arith.constant dense<0.000000e+00> : vector<10xf32>
    %14 = vector.multi_reduction <add>, %13, %cst_11 [1] : vector<10x64xf32> to vector<10xf32>
    %15 = vector.shape_cast %14 : vector<10xf32> to vector<10x1xf32>
    %cst_12 = arith.constant 6.400000e+01 : f32
    %16 = vector.broadcast %cst_12 : f32 to vector<10x1xf32>
    %17 = arith.divf %15, %16 : vector<10x1xf32>
    %cst_13 = arith.constant 9.99999974E-6 : f32
    %18 = vector.broadcast %cst_13 : f32 to vector<10x1xf32>
    %19 = arith.addf %17, %18 : vector<10x1xf32>
    %20 = math.rsqrt %19 : vector<10x1xf32>
    %21 = vector.broadcast %20 : vector<10x1xf32> to vector<10x64xf32>
    %22 = arith.mulf %12, %21 : vector<10x64xf32>
    %23 = vector.broadcast %5 : vector<1x64xf32> to vector<10x64xf32>
    %24 = arith.mulf %22, %23 : vector<10x64xf32>
    %25 = vector.broadcast %6 : vector<1x64xf32> to vector<10x64xf32>
    %26 = arith.addf %24, %25 : vector<10x64xf32>
    %c0_14 = arith.constant 0 : index
    %c0_15 = arith.constant 0 : index
    %27 = vector.load %arg5[%c0_14, %c0_15] : memref<10x10xf32, #tpu.memory_space<vmem>>, vector<10x10xf32>
    %c0_16 = arith.constant 0 : index
    %c0_17 = arith.constant 0 : index
    %c0_18 = arith.constant 0 : index
    %28 = vector.load %arg7[%c0_16, %c0_17, %c0_18] : memref<2x1x64xf32, #tpu.memory_space<vmem>>, vector<1x1x64xf32>
    %29 = vector.shape_cast %28 : vector<1x1x64xf32> to vector<1x64xf32>
    %c0_19 = arith.constant 0 : index
    %c0_20 = arith.constant 0 : index
    %c0_21 = arith.constant 0 : index
    %30 = vector.load %arg8[%c0_19, %c0_20, %c0_21] : memref<2x1x64xf32, #tpu.memory_space<vmem>>, vector<1x1x64xf32>
    %31 = vector.shape_cast %30 : vector<1x1x64xf32> to vector<1x64xf32>
    %cst_22 = arith.constant dense<0.000000e+00> : vector<10xf32>
    %32 = vector.multi_reduction <add>, %26, %cst_22 [1] : vector<10x64xf32> to vector<10xf32>
    %33 = vector.shape_cast %32 : vector<10xf32> to vector<10x1xf32>
    %cst_23 = arith.constant 6.400000e+01 : f32
    %34 = vector.broadcast %cst_23 : f32 to vector<10x1xf32>
    %35 = arith.divf %33, %34 : vector<10x1xf32>
    %36 = vector.broadcast %35 : vector<10x1xf32> to vector<10x64xf32>
    %37 = arith.subf %26, %36 : vector<10x64xf32>
    %38 = arith.mulf %37, %37 : vector<10x64xf32>
    %cst_24 = arith.constant dense<0.000000e+00> : vector<10xf32>
    %39 = vector.multi_reduction <add>, %38, %cst_24 [1] : vector<10x64xf32> to vector<10xf32>
    %40 = vector.shape_cast %39 : vector<10xf32> to vector<10x1xf32>
    %cst_25 = arith.constant 6.400000e+01 : f32
    %41 = vector.broadcast %cst_25 : f32 to vector<10x1xf32>
    %42 = arith.divf %40, %41 : vector<10x1xf32>
    %cst_26 = arith.constant 9.99999974E-6 : f32
    %43 = vector.broadcast %cst_26 : f32 to vector<10x1xf32>
    %44 = arith.addf %42, %43 : vector<10x1xf32>
    %45 = math.rsqrt %44 : vector<10x1xf32>
    %46 = vector.broadcast %45 : vector<10x1xf32> to vector<10x64xf32>
    %47 = arith.mulf %37, %46 : vector<10x64xf32>
    %48 = vector.broadcast %29 : vector<1x64xf32> to vector<10x64xf32>
    %49 = arith.mulf %47, %48 : vector<10x64xf32>
    %50 = vector.broadcast %31 : vector<1x64xf32> to vector<10x64xf32>
    %51 = arith.addf %49, %50 : vector<10x64xf32>
    %52 = arith.truncf %51 : vector<10x64xf32> to vector<10x64xbf16>
    %cst_27 = arith.constant 0.000000e+00 : f32
    %53 = vector.broadcast %cst_27 : f32 to vector<10x64xf32>
    %c0_28 = arith.constant 0 : index
    %c0_29 = arith.constant 0 : index
    %c0_30 = arith.constant 0 : index
    %54 = vector.load %arg9[%c0_28, %c0_29, %c0_30] : memref<4x64x32xbf16, #tpu.memory_space<vmem>>, vector<1x64x32xbf16>
    %55 = vector.shape_cast %54 : vector<1x64x32xbf16> to vector<64x32xbf16>
    %cst_31 = arith.constant dense<0.000000e+00> : vector<10x32xf32>
    %56 = tpu.matmul %52, %55, %cst_31 {dimension_numbers = #tpu.dot_dimension_numbers<[1], [0], [0], [1], [0, 0, 1, 1], [], []>} : vector<10x64xbf16>, vector<64x32xbf16>, vector<10x32xf32> -> vector<10x32xf32>
    %c0_32 = arith.constant 0 : index
    %c0_33 = arith.constant 0 : index
    %c0_34 = arith.constant 0 : index
    %57 = vector.load %arg10[%c0_32, %c0_33, %c0_34] : memref<4x1x32xf32, #tpu.memory_space<vmem>>, vector<1x1x32xf32>
    %58 = vector.shape_cast %57 : vector<1x1x32xf32> to vector<1x32xf32>
    %59 = vector.broadcast %58 : vector<1x32xf32> to vector<10x32xf32>
    %60 = arith.addf %56, %59 : vector<10x32xf32>
    %c0_35 = arith.constant 0 : index
    %c0_36 = arith.constant 0 : index
    %c0_37 = arith.constant 0 : index
    %61 = vector.load %arg11[%c0_35, %c0_36, %c0_37] : memref<4x64x32xbf16, #tpu.memory_space<vmem>>, vector<1x64x32xbf16>
    %62 = vector.shape_cast %61 : vector<1x64x32xbf16> to vector<64x32xbf16>
    %cst_38 = arith.constant dense<0.000000e+00> : vector<10x32xf32>
    %63 = tpu.matmul %52, %62, %cst_38 {dimension_numbers = #tpu.dot_dimension_numbers<[1], [0], [0], [1], [0, 0, 1, 1], [], []>} : vector<10x64xbf16>, vector<64x32xbf16>, vector<10x32xf32> -> vector<10x32xf32>
    %c0_39 = arith.constant 0 : index
    %c0_40 = arith.constant 0 : index
    %c0_41 = arith.constant 0 : index
    %64 = vector.load %arg12[%c0_39, %c0_40, %c0_41] : memref<4x1x32xf32, #tpu.memory_space<vmem>>, vector<1x1x32xf32>
    %65 = vector.shape_cast %64 : vector<1x1x32xf32> to vector<1x32xf32>
    %66 = vector.broadcast %65 : vector<1x32xf32> to vector<10x32xf32>
    %67 = arith.addf %63, %66 : vector<10x32xf32>
    %c0_42 = arith.constant 0 : index
    %c0_43 = arith.constant 0 : index
    %c0_44 = arith.constant 0 : index
    %68 = vector.load %arg13[%c0_42, %c0_43, %c0_44] : memref<4x64x32xbf16, #tpu.memory_space<vmem>>, vector<1x64x32xbf16>
    %69 = vector.shape_cast %68 : vector<1x64x32xbf16> to vector<64x32xbf16>
    %cst_45 = arith.constant dense<0.000000e+00> : vector<10x32xf32>
    %70 = tpu.matmul %52, %69, %cst_45 {dimension_numbers = #tpu.dot_dimension_numbers<[1], [0], [0], [1], [0, 0, 1, 1], [], []>} : vector<10x64xbf16>, vector<64x32xbf16>, vector<10x32xf32> -> vector<10x32xf32>
    %c0_46 = arith.constant 0 : index
    %c0_47 = arith.constant 0 : index
    %c0_48 = arith.constant 0 : index
    %71 = vector.load %arg14[%c0_46, %c0_47, %c0_48] : memref<4x1x32xf32, #tpu.memory_space<vmem>>, vector<1x1x32xf32>
    %72 = vector.shape_cast %71 : vector<1x1x32xf32> to vector<1x32xf32>
    %73 = vector.broadcast %72 : vector<1x32xf32> to vector<10x32xf32>
    %74 = arith.addf %70, %73 : vector<10x32xf32>
    %75 = arith.truncf %60 : vector<10x32xf32> to vector<10x32xbf16>
    %76 = arith.truncf %67 : vector<10x32xf32> to vector<10x32xbf16>
    %cst_49 = arith.constant dense<0.000000e+00> : vector<10x10xf32>
    %77 = tpu.matmul %75, %76, %cst_49 {dimension_numbers = #tpu.dot_dimension_numbers<[1], [1], [0], [0], [0, 0, 1, 0], [], []>} : vector<10x32xbf16>, vector<10x32xbf16>, vector<10x10xf32> -> vector<10x10xf32>
    %cst_50 = arith.constant 0.176776692 : f32
    %78 = vector.broadcast %cst_50 : f32 to vector<10x10xf32>
    %79 = arith.mulf %77, %78 : vector<10x10xf32>
    %80 = arith.addf %79, %27 : vector<10x10xf32>
    %cst_51 = arith.constant dense<0xFF800000> : vector<10xf32>
    %81 = vector.multi_reduction <maximumf>, %80, %cst_51 [1] : vector<10x10xf32> to vector<10xf32>
    %82 = vector.shape_cast %81 : vector<10xf32> to vector<10x1xf32>
    %83 = vector.broadcast %82 : vector<10x1xf32> to vector<10x10xf32>
    %84 = arith.subf %80, %83 : vector<10x10xf32>
    %85 = math.exp %84 : vector<10x10xf32>
    %cst_52 = arith.constant dense<0.000000e+00> : vector<10xf32>
    %86 = vector.multi_reduction <add>, %85, %cst_52 [1] : vector<10x10xf32> to vector<10xf32>
    %87 = vector.shape_cast %86 : vector<10xf32> to vector<10x1xf32>
    %88 = tpu.reciprocal %87 {approx = true} : vector<10x1xf32> -> vector<10x1xf32>
    %89 = vector.broadcast %88 : vector<10x1xf32> to vector<10x10xf32>
    %90 = arith.mulf %85, %89 : vector<10x10xf32>
    %91 = arith.truncf %90 : vector<10x10xf32> to vector<10x10xbf16>
    %92 = arith.truncf %74 : vector<10x32xf32> to vector<10x32xbf16>
    %cst_53 = arith.constant dense<0.000000e+00> : vector<10x32xf32>
    %93 = tpu.matmul %91, %92, %cst_53 {dimension_numbers = #tpu.dot_dimension_numbers<[1], [0], [0], [1], [0, 0, 1, 1], [], []>} : vector<10x10xbf16>, vector<10x32xbf16>, vector<10x32xf32> -> vector<10x32xf32>
    %94 = arith.truncf %93 : vector<10x32xf32> to vector<10x32xbf16>
    %c0_54 = arith.constant 0 : index
    %c0_55 = arith.constant 0 : index
    %c0_56 = arith.constant 0 : index
    %95 = vector.load %arg15[%c0_54, %c0_55, %c0_56] : memref<4x32x64xbf16, #tpu.memory_space<vmem>>, vector<1x32x64xbf16>
    %96 = vector.shape_cast %95 : vector<1x32x64xbf16> to vector<32x64xbf16>
    %cst_57 = arith.constant dense<0.000000e+00> : vector<10x64xf32>
    %97 = tpu.matmul %94, %96, %cst_57 {dimension_numbers = #tpu.dot_dimension_numbers<[1], [0], [0], [1], [0, 0, 1, 1], [], []>} : vector<10x32xbf16>, vector<32x64xbf16>, vector<10x64xf32> -> vector<10x64xf32>
    %98 = arith.addf %53, %97 : vector<10x64xf32>
    %c1 = arith.constant 1 : index
    %c0_58 = arith.constant 0 : index
    %c0_59 = arith.constant 0 : index
    %99 = vector.load %arg9[%c1, %c0_58, %c0_59] : memref<4x64x32xbf16, #tpu.memory_space<vmem>>, vector<1x64x32xbf16>
    %100 = vector.shape_cast %99 : vector<1x64x32xbf16> to vector<64x32xbf16>
    %cst_60 = arith.constant dense<0.000000e+00> : vector<10x32xf32>
    %101 = tpu.matmul %52, %100, %cst_60 {dimension_numbers = #tpu.dot_dimension_numbers<[1], [0], [0], [1], [0, 0, 1, 1], [], []>} : vector<10x64xbf16>, vector<64x32xbf16>, vector<10x32xf32> -> vector<10x32xf32>
    %c1_61 = arith.constant 1 : index
    %c0_62 = arith.constant 0 : index
    %c0_63 = arith.constant 0 : index
    %102 = vector.load %arg10[%c1_61, %c0_62, %c0_63] : memref<4x1x32xf32, #tpu.memory_space<vmem>>, vector<1x1x32xf32>
    %103 = vector.shape_cast %102 : vector<1x1x32xf32> to vector<1x32xf32>
    %104 = vector.broadcast %103 : vector<1x32xf32> to vector<10x32xf32>
    %105 = arith.addf %101, %104 : vector<10x32xf32>
    %c1_64 = arith.constant 1 : index
    %c0_65 = arith.constant 0 : index
    %c0_66 = arith.constant 0 : index
    %106 = vector.load %arg11[%c1_64, %c0_65, %c0_66] : memref<4x64x32xbf16, #tpu.memory_space<vmem>>, vector<1x64x32xbf16>
    %107 = vector.shape_cast %106 : vector<1x64x32xbf16> to vector<64x32xbf16>
    %cst_67 = arith.constant dense<0.000000e+00> : vector<10x32xf32>
    %108 = tpu.matmul %52, %107, %cst_67 {dimension_numbers = #tpu.dot_dimension_numbers<[1], [0], [0], [1], [0, 0, 1, 1], [], []>} : vector<10x64xbf16>, vector<64x32xbf16>, vector<10x32xf32> -> vector<10x32xf32>
    %c1_68 = arith.constant 1 : index
    %c0_69 = arith.constant 0 : index
    %c0_70 = arith.constant 0 : index
    %109 = vector.load %arg12[%c1_68, %c0_69, %c0_70] : memref<4x1x32xf32, #tpu.memory_space<vmem>>, vector<1x1x32xf32>
    %110 = vector.shape_cast %109 : vector<1x1x32xf32> to vector<1x32xf32>
    %111 = vector.broadcast %110 : vector<1x32xf32> to vector<10x32xf32>
    %112 = arith.addf %108, %111 : vector<10x32xf32>
    %c1_71 = arith.constant 1 : index
    %c0_72 = arith.constant 0 : index
    %c0_73 = arith.constant 0 : index
    %113 = vector.load %arg13[%c1_71, %c0_72, %c0_73] : memref<4x64x32xbf16, #tpu.memory_space<vmem>>, vector<1x64x32xbf16>
    %114 = vector.shape_cast %113 : vector<1x64x32xbf16> to vector<64x32xbf16>
    %cst_74 = arith.constant dense<0.000000e+00> : vector<10x32xf32>
    %115 = tpu.matmul %52, %114, %cst_74 {dimension_numbers = #tpu.dot_dimension_numbers<[1], [0], [0], [1], [0, 0, 1, 1], [], []>} : vector<10x64xbf16>, vector<64x32xbf16>, vector<10x32xf32> -> vector<10x32xf32>
    %c1_75 = arith.constant 1 : index
    %c0_76 = arith.constant 0 : index
    %c0_77 = arith.constant 0 : index
    %116 = vector.load %arg14[%c1_75, %c0_76, %c0_77] : memref<4x1x32xf32, #tpu.memory_space<vmem>>, vector<1x1x32xf32>
    %117 = vector.shape_cast %116 : vector<1x1x32xf32> to vector<1x32xf32>
    %118 = vector.broadcast %117 : vector<1x32xf32> to vector<10x32xf32>
    %119 = arith.addf %115, %118 : vector<10x32xf32>
    %120 = arith.truncf %105 : vector<10x32xf32> to vector<10x32xbf16>
    %121 = arith.truncf %112 : vector<10x32xf32> to vector<10x32xbf16>
    %cst_78 = arith.constant dense<0.000000e+00> : vector<10x10xf32>
    %122 = tpu.matmul %120, %121, %cst_78 {dimension_numbers = #tpu.dot_dimension_numbers<[1], [1], [0], [0], [0, 0, 1, 0], [], []>} : vector<10x32xbf16>, vector<10x32xbf16>, vector<10x10xf32> -> vector<10x10xf32>
    %cst_79 = arith.constant 0.176776692 : f32
    %123 = vector.broadcast %cst_79 : f32 to vector<10x10xf32>
    %124 = arith.mulf %122, %123 : vector<10x10xf32>
    %125 = arith.addf %124, %27 : vector<10x10xf32>
    %cst_80 = arith.constant dense<0xFF800000> : vector<10xf32>
    %126 = vector.multi_reduction <maximumf>, %125, %cst_80 [1] : vector<10x10xf32> to vector<10xf32>
    %127 = vector.shape_cast %126 : vector<10xf32> to vector<10x1xf32>
    %128 = vector.broadcast %127 : vector<10x1xf32> to vector<10x10xf32>
    %129 = arith.subf %125, %128 : vector<10x10xf32>
    %130 = math.exp %129 : vector<10x10xf32>
    %cst_81 = arith.constant dense<0.000000e+00> : vector<10xf32>
    %131 = vector.multi_reduction <add>, %130, %cst_81 [1] : vector<10x10xf32> to vector<10xf32>
    %132 = vector.shape_cast %131 : vector<10xf32> to vector<10x1xf32>
    %133 = tpu.reciprocal %132 {approx = true} : vector<10x1xf32> -> vector<10x1xf32>
    %134 = vector.broadcast %133 : vector<10x1xf32> to vector<10x10xf32>
    %135 = arith.mulf %130, %134 : vector<10x10xf32>
    %136 = arith.truncf %135 : vector<10x10xf32> to vector<10x10xbf16>
    %137 = arith.truncf %119 : vector<10x32xf32> to vector<10x32xbf16>
    %cst_82 = arith.constant dense<0.000000e+00> : vector<10x32xf32>
    %138 = tpu.matmul %136, %137, %cst_82 {dimension_numbers = #tpu.dot_dimension_numbers<[1], [0], [0], [1], [0, 0, 1, 1], [], []>} : vector<10x10xbf16>, vector<10x32xbf16>, vector<10x32xf32> -> vector<10x32xf32>
    %139 = arith.truncf %138 : vector<10x32xf32> to vector<10x32xbf16>
    %c1_83 = arith.constant 1 : index
    %c0_84 = arith.constant 0 : index
    %c0_85 = arith.constant 0 : index
    %140 = vector.load %arg15[%c1_83, %c0_84, %c0_85] : memref<4x32x64xbf16, #tpu.memory_space<vmem>>, vector<1x32x64xbf16>
    %141 = vector.shape_cast %140 : vector<1x32x64xbf16> to vector<32x64xbf16>
    %cst_86 = arith.constant dense<0.000000e+00> : vector<10x64xf32>
    %142 = tpu.matmul %139, %141, %cst_86 {dimension_numbers = #tpu.dot_dimension_numbers<[1], [0], [0], [1], [0, 0, 1, 1], [], []>} : vector<10x32xbf16>, vector<32x64xbf16>, vector<10x64xf32> -> vector<10x64xf32>
    %143 = arith.addf %98, %142 : vector<10x64xf32>
    %144 = arith.addf %26, %143 : vector<10x64xf32>
    %c0_87 = arith.constant 0 : index
    %c0_88 = arith.constant 0 : index
    %c0_89 = arith.constant 0 : index
    %145 = vector.load %arg16[%c0_87, %c0_88, %c0_89] : memref<2x1x64xf32, #tpu.memory_space<vmem>>, vector<1x1x64xf32>
    %146 = vector.shape_cast %145 : vector<1x1x64xf32> to vector<1x64xf32>
    %147 = vector.broadcast %146 : vector<1x64xf32> to vector<10x64xf32>
    %148 = arith.addf %144, %147 : vector<10x64xf32>
    %c0_90 = arith.constant 0 : index
    %c0_91 = arith.constant 0 : index
    %c0_92 = arith.constant 0 : index
    %149 = vector.load %arg17[%c0_90, %c0_91, %c0_92] : memref<2x1x64xf32, #tpu.memory_space<vmem>>, vector<1x1x64xf32>
    %150 = vector.shape_cast %149 : vector<1x1x64xf32> to vector<1x64xf32>
    %c0_93 = arith.constant 0 : index
    %c0_94 = arith.constant 0 : index
    %c0_95 = arith.constant 0 : index
    %151 = vector.load %arg18[%c0_93, %c0_94, %c0_95] : memref<2x1x64xf32, #tpu.memory_space<vmem>>, vector<1x1x64xf32>
    %152 = vector.shape_cast %151 : vector<1x1x64xf32> to vector<1x64xf32>
    %cst_96 = arith.constant dense<0.000000e+00> : vector<10xf32>
    %153 = vector.multi_reduction <add>, %148, %cst_96 [1] : vector<10x64xf32> to vector<10xf32>
    %154 = vector.shape_cast %153 : vector<10xf32> to vector<10x1xf32>
    %cst_97 = arith.constant 6.400000e+01 : f32
    %155 = vector.broadcast %cst_97 : f32 to vector<10x1xf32>
    %156 = arith.divf %154, %155 : vector<10x1xf32>
    %157 = vector.broadcast %156 : vector<10x1xf32> to vector<10x64xf32>
    %158 = arith.subf %148, %157 : vector<10x64xf32>
    %159 = arith.mulf %158, %158 : vector<10x64xf32>
    %cst_98 = arith.constant dense<0.000000e+00> : vector<10xf32>
    %160 = vector.multi_reduction <add>, %159, %cst_98 [1] : vector<10x64xf32> to vector<10xf32>
    %161 = vector.shape_cast %160 : vector<10xf32> to vector<10x1xf32>
    %cst_99 = arith.constant 6.400000e+01 : f32
    %162 = vector.broadcast %cst_99 : f32 to vector<10x1xf32>
    %163 = arith.divf %161, %162 : vector<10x1xf32>
    %cst_100 = arith.constant 9.99999974E-6 : f32
    %164 = vector.broadcast %cst_100 : f32 to vector<10x1xf32>
    %165 = arith.addf %163, %164 : vector<10x1xf32>
    %166 = math.rsqrt %165 : vector<10x1xf32>
    %167 = vector.broadcast %166 : vector<10x1xf32> to vector<10x64xf32>
    %168 = arith.mulf %158, %167 : vector<10x64xf32>
    %169 = vector.broadcast %150 : vector<1x64xf32> to vector<10x64xf32>
    %170 = arith.mulf %168, %169 : vector<10x64xf32>
    %171 = vector.broadcast %152 : vector<1x64xf32> to vector<10x64xf32>
    %172 = arith.addf %170, %171 : vector<10x64xf32>
    %173 = arith.truncf %172 : vector<10x64xf32> to vector<10x64xbf16>
    %c0_101 = arith.constant 0 : index
    %c0_102 = arith.constant 0 : index
    %c0_103 = arith.constant 0 : index
    %174 = vector.load %arg19[%c0_101, %c0_102, %c0_103] : memref<2x64x128xbf16, #tpu.memory_space<vmem>>, vector<1x64x128xbf16>
    %175 = vector.shape_cast %174 : vector<1x64x128xbf16> to vector<64x128xbf16>
    %cst_104 = arith.constant dense<0.000000e+00> : vector<10x128xf32>
    %176 = tpu.matmul %173, %175, %cst_104 {dimension_numbers = #tpu.dot_dimension_numbers<[1], [0], [0], [1], [0, 0, 1, 1], [], []>} : vector<10x64xbf16>, vector<64x128xbf16>, vector<10x128xf32> -> vector<10x128xf32>
    %c0_105 = arith.constant 0 : index
    %c0_106 = arith.constant 0 : index
    %c0_107 = arith.constant 0 : index
    %177 = vector.load %arg20[%c0_105, %c0_106, %c0_107] : memref<2x1x128xf32, #tpu.memory_space<vmem>>, vector<1x1x128xf32>
    %178 = vector.shape_cast %177 : vector<1x1x128xf32> to vector<1x128xf32>
    %179 = vector.broadcast %178 : vector<1x128xf32> to vector<10x128xf32>
    %180 = arith.addf %176, %179 : vector<10x128xf32>
    %cst_108 = arith.constant 1.702000e+00 : f32
    %181 = vector.broadcast %cst_108 : f32 to vector<10x128xf32>
    %182 = arith.mulf %181, %180 : vector<10x128xf32>
    %183 = arith.negf %182 : vector<10x128xf32>
    %184 = math.exp %183 : vector<10x128xf32>
    %cst_109 = arith.constant 1.000000e+00 : f32
    %185 = vector.broadcast %cst_109 : f32 to vector<10x128xf32>
    %186 = arith.addf %185, %184 : vector<10x128xf32>
    %187 = arith.divf %185, %186 : vector<10x128xf32>
    %188 = arith.mulf %180, %187 : vector<10x128xf32>
    %189 = arith.truncf %188 : vector<10x128xf32> to vector<10x128xbf16>
    %c0_110 = arith.constant 0 : index
    %c0_111 = arith.constant 0 : index
    %c0_112 = arith.constant 0 : index
    %190 = vector.load %arg21[%c0_110, %c0_111, %c0_112] : memref<2x128x64xbf16, #tpu.memory_space<vmem>>, vector<1x128x64xbf16>
    %191 = vector.shape_cast %190 : vector<1x128x64xbf16> to vector<128x64xbf16>
    %cst_113 = arith.constant dense<0.000000e+00> : vector<10x64xf32>
    %192 = tpu.matmul %189, %191, %cst_113 {dimension_numbers = #tpu.dot_dimension_numbers<[1], [0], [0], [1], [0, 0, 1, 1], [], []>} : vector<10x128xbf16>, vector<128x64xbf16>, vector<10x64xf32> -> vector<10x64xf32>
    %c0_114 = arith.constant 0 : index
    %c0_115 = arith.constant 0 : index
    %c0_116 = arith.constant 0 : index
    %193 = vector.load %arg22[%c0_114, %c0_115, %c0_116] : memref<2x1x64xf32, #tpu.memory_space<vmem>>, vector<1x1x64xf32>
    %194 = vector.shape_cast %193 : vector<1x1x64xf32> to vector<1x64xf32>
    %195 = vector.broadcast %194 : vector<1x64xf32> to vector<10x64xf32>
    %196 = arith.addf %192, %195 : vector<10x64xf32>
    %197 = arith.addf %148, %196 : vector<10x64xf32>
    %c1_117 = arith.constant 1 : index
    %c0_118 = arith.constant 0 : index
    %c0_119 = arith.constant 0 : index
    %198 = vector.load %arg7[%c1_117, %c0_118, %c0_119] : memref<2x1x64xf32, #tpu.memory_space<vmem>>, vector<1x1x64xf32>
    %199 = vector.shape_cast %198 : vector<1x1x64xf32> to vector<1x64xf32>
    %c1_120 = arith.constant 1 : index
    %c0_121 = arith.constant 0 : index
    %c0_122 = arith.constant 0 : index
    %200 = vector.load %arg8[%c1_120, %c0_121, %c0_122] : memref<2x1x64xf32, #tpu.memory_space<vmem>>, vector<1x1x64xf32>
    %201 = vector.shape_cast %200 : vector<1x1x64xf32> to vector<1x64xf32>
    %cst_123 = arith.constant dense<0.000000e+00> : vector<10xf32>
    %202 = vector.multi_reduction <add>, %197, %cst_123 [1] : vector<10x64xf32> to vector<10xf32>
    %203 = vector.shape_cast %202 : vector<10xf32> to vector<10x1xf32>
    %cst_124 = arith.constant 6.400000e+01 : f32
    %204 = vector.broadcast %cst_124 : f32 to vector<10x1xf32>
    %205 = arith.divf %203, %204 : vector<10x1xf32>
    %206 = vector.broadcast %205 : vector<10x1xf32> to vector<10x64xf32>
    %207 = arith.subf %197, %206 : vector<10x64xf32>
    %208 = arith.mulf %207, %207 : vector<10x64xf32>
    %cst_125 = arith.constant dense<0.000000e+00> : vector<10xf32>
    %209 = vector.multi_reduction <add>, %208, %cst_125 [1] : vector<10x64xf32> to vector<10xf32>
    %210 = vector.shape_cast %209 : vector<10xf32> to vector<10x1xf32>
    %cst_126 = arith.constant 6.400000e+01 : f32
    %211 = vector.broadcast %cst_126 : f32 to vector<10x1xf32>
    %212 = arith.divf %210, %211 : vector<10x1xf32>
    %cst_127 = arith.constant 9.99999974E-6 : f32
    %213 = vector.broadcast %cst_127 : f32 to vector<10x1xf32>
    %214 = arith.addf %212, %213 : vector<10x1xf32>
    %215 = math.rsqrt %214 : vector<10x1xf32>
    %216 = vector.broadcast %215 : vector<10x1xf32> to vector<10x64xf32>
    %217 = arith.mulf %207, %216 : vector<10x64xf32>
    %218 = vector.broadcast %199 : vector<1x64xf32> to vector<10x64xf32>
    %219 = arith.mulf %217, %218 : vector<10x64xf32>
    %220 = vector.broadcast %201 : vector<1x64xf32> to vector<10x64xf32>
    %221 = arith.addf %219, %220 : vector<10x64xf32>
    %222 = arith.truncf %221 : vector<10x64xf32> to vector<10x64xbf16>
    %cst_128 = arith.constant 0.000000e+00 : f32
    %223 = vector.broadcast %cst_128 : f32 to vector<10x64xf32>
    %c2 = arith.constant 2 : index
    %c0_129 = arith.constant 0 : index
    %c0_130 = arith.constant 0 : index
    %224 = vector.load %arg9[%c2, %c0_129, %c0_130] : memref<4x64x32xbf16, #tpu.memory_space<vmem>>, vector<1x64x32xbf16>
    %225 = vector.shape_cast %224 : vector<1x64x32xbf16> to vector<64x32xbf16>
    %cst_131 = arith.constant dense<0.000000e+00> : vector<10x32xf32>
    %226 = tpu.matmul %222, %225, %cst_131 {dimension_numbers = #tpu.dot_dimension_numbers<[1], [0], [0], [1], [0, 0, 1, 1], [], []>} : vector<10x64xbf16>, vector<64x32xbf16>, vector<10x32xf32> -> vector<10x32xf32>
    %c2_132 = arith.constant 2 : index
    %c0_133 = arith.constant 0 : index
    %c0_134 = arith.constant 0 : index
    %227 = vector.load %arg10[%c2_132, %c0_133, %c0_134] : memref<4x1x32xf32, #tpu.memory_space<vmem>>, vector<1x1x32xf32>
    %228 = vector.shape_cast %227 : vector<1x1x32xf32> to vector<1x32xf32>
    %229 = vector.broadcast %228 : vector<1x32xf32> to vector<10x32xf32>
    %230 = arith.addf %226, %229 : vector<10x32xf32>
    %c2_135 = arith.constant 2 : index
    %c0_136 = arith.constant 0 : index
    %c0_137 = arith.constant 0 : index
    %231 = vector.load %arg11[%c2_135, %c0_136, %c0_137] : memref<4x64x32xbf16, #tpu.memory_space<vmem>>, vector<1x64x32xbf16>
    %232 = vector.shape_cast %231 : vector<1x64x32xbf16> to vector<64x32xbf16>
    %cst_138 = arith.constant dense<0.000000e+00> : vector<10x32xf32>
    %233 = tpu.matmul %222, %232, %cst_138 {dimension_numbers = #tpu.dot_dimension_numbers<[1], [0], [0], [1], [0, 0, 1, 1], [], []>} : vector<10x64xbf16>, vector<64x32xbf16>, vector<10x32xf32> -> vector<10x32xf32>
    %c2_139 = arith.constant 2 : index
    %c0_140 = arith.constant 0 : index
    %c0_141 = arith.constant 0 : index
    %234 = vector.load %arg12[%c2_139, %c0_140, %c0_141] : memref<4x1x32xf32, #tpu.memory_space<vmem>>, vector<1x1x32xf32>
    %235 = vector.shape_cast %234 : vector<1x1x32xf32> to vector<1x32xf32>
    %236 = vector.broadcast %235 : vector<1x32xf32> to vector<10x32xf32>
    %237 = arith.addf %233, %236 : vector<10x32xf32>
    %c2_142 = arith.constant 2 : index
    %c0_143 = arith.constant 0 : index
    %c0_144 = arith.constant 0 : index
    %238 = vector.load %arg13[%c2_142, %c0_143, %c0_144] : memref<4x64x32xbf16, #tpu.memory_space<vmem>>, vector<1x64x32xbf16>
    %239 = vector.shape_cast %238 : vector<1x64x32xbf16> to vector<64x32xbf16>
    %cst_145 = arith.constant dense<0.000000e+00> : vector<10x32xf32>
    %240 = tpu.matmul %222, %239, %cst_145 {dimension_numbers = #tpu.dot_dimension_numbers<[1], [0], [0], [1], [0, 0, 1, 1], [], []>} : vector<10x64xbf16>, vector<64x32xbf16>, vector<10x32xf32> -> vector<10x32xf32>
    %c2_146 = arith.constant 2 : index
    %c0_147 = arith.constant 0 : index
    %c0_148 = arith.constant 0 : index
    %241 = vector.load %arg14[%c2_146, %c0_147, %c0_148] : memref<4x1x32xf32, #tpu.memory_space<vmem>>, vector<1x1x32xf32>
    %242 = vector.shape_cast %241 : vector<1x1x32xf32> to vector<1x32xf32>
    %243 = vector.broadcast %242 : vector<1x32xf32> to vector<10x32xf32>
    %244 = arith.addf %240, %243 : vector<10x32xf32>
    %245 = arith.truncf %230 : vector<10x32xf32> to vector<10x32xbf16>
    %246 = arith.truncf %237 : vector<10x32xf32> to vector<10x32xbf16>
    %cst_149 = arith.constant dense<0.000000e+00> : vector<10x10xf32>
    %247 = tpu.matmul %245, %246, %cst_149 {dimension_numbers = #tpu.dot_dimension_numbers<[1], [1], [0], [0], [0, 0, 1, 0], [], []>} : vector<10x32xbf16>, vector<10x32xbf16>, vector<10x10xf32> -> vector<10x10xf32>
    %cst_150 = arith.constant 0.176776692 : f32
    %248 = vector.broadcast %cst_150 : f32 to vector<10x10xf32>
    %249 = arith.mulf %247, %248 : vector<10x10xf32>
    %250 = arith.addf %249, %27 : vector<10x10xf32>
    %cst_151 = arith.constant dense<0xFF800000> : vector<10xf32>
    %251 = vector.multi_reduction <maximumf>, %250, %cst_151 [1] : vector<10x10xf32> to vector<10xf32>
    %252 = vector.shape_cast %251 : vector<10xf32> to vector<10x1xf32>
    %253 = vector.broadcast %252 : vector<10x1xf32> to vector<10x10xf32>
    %254 = arith.subf %250, %253 : vector<10x10xf32>
    %255 = math.exp %254 : vector<10x10xf32>
    %cst_152 = arith.constant dense<0.000000e+00> : vector<10xf32>
    %256 = vector.multi_reduction <add>, %255, %cst_152 [1] : vector<10x10xf32> to vector<10xf32>
    %257 = vector.shape_cast %256 : vector<10xf32> to vector<10x1xf32>
    %258 = tpu.reciprocal %257 {approx = true} : vector<10x1xf32> -> vector<10x1xf32>
    %259 = vector.broadcast %258 : vector<10x1xf32> to vector<10x10xf32>
    %260 = arith.mulf %255, %259 : vector<10x10xf32>
    %261 = arith.truncf %260 : vector<10x10xf32> to vector<10x10xbf16>
    %262 = arith.truncf %244 : vector<10x32xf32> to vector<10x32xbf16>
    %cst_153 = arith.constant dense<0.000000e+00> : vector<10x32xf32>
    %263 = tpu.matmul %261, %262, %cst_153 {dimension_numbers = #tpu.dot_dimension_numbers<[1], [0], [0], [1], [0, 0, 1, 1], [], []>} : vector<10x10xbf16>, vector<10x32xbf16>, vector<10x32xf32> -> vector<10x32xf32>
    %264 = arith.truncf %263 : vector<10x32xf32> to vector<10x32xbf16>
    %c2_154 = arith.constant 2 : index
    %c0_155 = arith.constant 0 : index
    %c0_156 = arith.constant 0 : index
    %265 = vector.load %arg15[%c2_154, %c0_155, %c0_156] : memref<4x32x64xbf16, #tpu.memory_space<vmem>>, vector<1x32x64xbf16>
    %266 = vector.shape_cast %265 : vector<1x32x64xbf16> to vector<32x64xbf16>
    %cst_157 = arith.constant dense<0.000000e+00> : vector<10x64xf32>
    %267 = tpu.matmul %264, %266, %cst_157 {dimension_numbers = #tpu.dot_dimension_numbers<[1], [0], [0], [1], [0, 0, 1, 1], [], []>} : vector<10x32xbf16>, vector<32x64xbf16>, vector<10x64xf32> -> vector<10x64xf32>
    %268 = arith.addf %223, %267 : vector<10x64xf32>
    %c3 = arith.constant 3 : index
    %c0_158 = arith.constant 0 : index
    %c0_159 = arith.constant 0 : index
    %269 = vector.load %arg9[%c3, %c0_158, %c0_159] : memref<4x64x32xbf16, #tpu.memory_space<vmem>>, vector<1x64x32xbf16>
    %270 = vector.shape_cast %269 : vector<1x64x32xbf16> to vector<64x32xbf16>
    %cst_160 = arith.constant dense<0.000000e+00> : vector<10x32xf32>
    %271 = tpu.matmul %222, %270, %cst_160 {dimension_numbers = #tpu.dot_dimension_numbers<[1], [0], [0], [1], [0, 0, 1, 1], [], []>} : vector<10x64xbf16>, vector<64x32xbf16>, vector<10x32xf32> -> vector<10x32xf32>
    %c3_161 = arith.constant 3 : index
    %c0_162 = arith.constant 0 : index
    %c0_163 = arith.constant 0 : index
    %272 = vector.load %arg10[%c3_161, %c0_162, %c0_163] : memref<4x1x32xf32, #tpu.memory_space<vmem>>, vector<1x1x32xf32>
    %273 = vector.shape_cast %272 : vector<1x1x32xf32> to vector<1x32xf32>
    %274 = vector.broadcast %273 : vector<1x32xf32> to vector<10x32xf32>
    %275 = arith.addf %271, %274 : vector<10x32xf32>
    %c3_164 = arith.constant 3 : index
    %c0_165 = arith.constant 0 : index
    %c0_166 = arith.constant 0 : index
    %276 = vector.load %arg11[%c3_164, %c0_165, %c0_166] : memref<4x64x32xbf16, #tpu.memory_space<vmem>>, vector<1x64x32xbf16>
    %277 = vector.shape_cast %276 : vector<1x64x32xbf16> to vector<64x32xbf16>
    %cst_167 = arith.constant dense<0.000000e+00> : vector<10x32xf32>
    %278 = tpu.matmul %222, %277, %cst_167 {dimension_numbers = #tpu.dot_dimension_numbers<[1], [0], [0], [1], [0, 0, 1, 1], [], []>} : vector<10x64xbf16>, vector<64x32xbf16>, vector<10x32xf32> -> vector<10x32xf32>
    %c3_168 = arith.constant 3 : index
    %c0_169 = arith.constant 0 : index
    %c0_170 = arith.constant 0 : index
    %279 = vector.load %arg12[%c3_168, %c0_169, %c0_170] : memref<4x1x32xf32, #tpu.memory_space<vmem>>, vector<1x1x32xf32>
    %280 = vector.shape_cast %279 : vector<1x1x32xf32> to vector<1x32xf32>
    %281 = vector.broadcast %280 : vector<1x32xf32> to vector<10x32xf32>
    %282 = arith.addf %278, %281 : vector<10x32xf32>
    %c3_171 = arith.constant 3 : index
    %c0_172 = arith.constant 0 : index
    %c0_173 = arith.constant 0 : index
    %283 = vector.load %arg13[%c3_171, %c0_172, %c0_173] : memref<4x64x32xbf16, #tpu.memory_space<vmem>>, vector<1x64x32xbf16>
    %284 = vector.shape_cast %283 : vector<1x64x32xbf16> to vector<64x32xbf16>
    %cst_174 = arith.constant dense<0.000000e+00> : vector<10x32xf32>
    %285 = tpu.matmul %222, %284, %cst_174 {dimension_numbers = #tpu.dot_dimension_numbers<[1], [0], [0], [1], [0, 0, 1, 1], [], []>} : vector<10x64xbf16>, vector<64x32xbf16>, vector<10x32xf32> -> vector<10x32xf32>
    %c3_175 = arith.constant 3 : index
    %c0_176 = arith.constant 0 : index
    %c0_177 = arith.constant 0 : index
    %286 = vector.load %arg14[%c3_175, %c0_176, %c0_177] : memref<4x1x32xf32, #tpu.memory_space<vmem>>, vector<1x1x32xf32>
    %287 = vector.shape_cast %286 : vector<1x1x32xf32> to vector<1x32xf32>
    %288 = vector.broadcast %287 : vector<1x32xf32> to vector<10x32xf32>
    %289 = arith.addf %285, %288 : vector<10x32xf32>
    %290 = arith.truncf %275 : vector<10x32xf32> to vector<10x32xbf16>
    %291 = arith.truncf %282 : vector<10x32xf32> to vector<10x32xbf16>
    %cst_178 = arith.constant dense<0.000000e+00> : vector<10x10xf32>
    %292 = tpu.matmul %290, %291, %cst_178 {dimension_numbers = #tpu.dot_dimension_numbers<[1], [1], [0], [0], [0, 0, 1, 0], [], []>} : vector<10x32xbf16>, vector<10x32xbf16>, vector<10x10xf32> -> vector<10x10xf32>
    %cst_179 = arith.constant 0.176776692 : f32
    %293 = vector.broadcast %cst_179 : f32 to vector<10x10xf32>
    %294 = arith.mulf %292, %293 : vector<10x10xf32>
    %295 = arith.addf %294, %27 : vector<10x10xf32>
    %cst_180 = arith.constant dense<0xFF800000> : vector<10xf32>
    %296 = vector.multi_reduction <maximumf>, %295, %cst_180 [1] : vector<10x10xf32> to vector<10xf32>
    %297 = vector.shape_cast %296 : vector<10xf32> to vector<10x1xf32>
    %298 = vector.broadcast %297 : vector<10x1xf32> to vector<10x10xf32>
    %299 = arith.subf %295, %298 : vector<10x10xf32>
    %300 = math.exp %299 : vector<10x10xf32>
    %cst_181 = arith.constant dense<0.000000e+00> : vector<10xf32>
    %301 = vector.multi_reduction <add>, %300, %cst_181 [1] : vector<10x10xf32> to vector<10xf32>
    %302 = vector.shape_cast %301 : vector<10xf32> to vector<10x1xf32>
    %303 = tpu.reciprocal %302 {approx = true} : vector<10x1xf32> -> vector<10x1xf32>
    %304 = vector.broadcast %303 : vector<10x1xf32> to vector<10x10xf32>
    %305 = arith.mulf %300, %304 : vector<10x10xf32>
    %306 = arith.truncf %305 : vector<10x10xf32> to vector<10x10xbf16>
    %307 = arith.truncf %289 : vector<10x32xf32> to vector<10x32xbf16>
    %cst_182 = arith.constant dense<0.000000e+00> : vector<10x32xf32>
    %308 = tpu.matmul %306, %307, %cst_182 {dimension_numbers = #tpu.dot_dimension_numbers<[1], [0], [0], [1], [0, 0, 1, 1], [], []>} : vector<10x10xbf16>, vector<10x32xbf16>, vector<10x32xf32> -> vector<10x32xf32>
    %309 = arith.truncf %308 : vector<10x32xf32> to vector<10x32xbf16>
    %c3_183 = arith.constant 3 : index
    %c0_184 = arith.constant 0 : index
    %c0_185 = arith.constant 0 : index
    %310 = vector.load %arg15[%c3_183, %c0_184, %c0_185] : memref<4x32x64xbf16, #tpu.memory_space<vmem>>, vector<1x32x64xbf16>
    %311 = vector.shape_cast %310 : vector<1x32x64xbf16> to vector<32x64xbf16>
    %cst_186 = arith.constant dense<0.000000e+00> : vector<10x64xf32>
    %312 = tpu.matmul %309, %311, %cst_186 {dimension_numbers = #tpu.dot_dimension_numbers<[1], [0], [0], [1], [0, 0, 1, 1], [], []>} : vector<10x32xbf16>, vector<32x64xbf16>, vector<10x64xf32> -> vector<10x64xf32>
    %313 = arith.addf %268, %312 : vector<10x64xf32>
    %314 = arith.addf %197, %313 : vector<10x64xf32>
    %c1_187 = arith.constant 1 : index
    %c0_188 = arith.constant 0 : index
    %c0_189 = arith.constant 0 : index
    %315 = vector.load %arg16[%c1_187, %c0_188, %c0_189] : memref<2x1x64xf32, #tpu.memory_space<vmem>>, vector<1x1x64xf32>
    %316 = vector.shape_cast %315 : vector<1x1x64xf32> to vector<1x64xf32>
    %317 = vector.broadcast %316 : vector<1x64xf32> to vector<10x64xf32>
    %318 = arith.addf %314, %317 : vector<10x64xf32>
    %c1_190 = arith.constant 1 : index
    %c0_191 = arith.constant 0 : index
    %c0_192 = arith.constant 0 : index
    %319 = vector.load %arg17[%c1_190, %c0_191, %c0_192] : memref<2x1x64xf32, #tpu.memory_space<vmem>>, vector<1x1x64xf32>
    %320 = vector.shape_cast %319 : vector<1x1x64xf32> to vector<1x64xf32>
    %c1_193 = arith.constant 1 : index
    %c0_194 = arith.constant 0 : index
    %c0_195 = arith.constant 0 : index
    %321 = vector.load %arg18[%c1_193, %c0_194, %c0_195] : memref<2x1x64xf32, #tpu.memory_space<vmem>>, vector<1x1x64xf32>
    %322 = vector.shape_cast %321 : vector<1x1x64xf32> to vector<1x64xf32>
    %cst_196 = arith.constant dense<0.000000e+00> : vector<10xf32>
    %323 = vector.multi_reduction <add>, %318, %cst_196 [1] : vector<10x64xf32> to vector<10xf32>
    %324 = vector.shape_cast %323 : vector<10xf32> to vector<10x1xf32>
    %cst_197 = arith.constant 6.400000e+01 : f32
    %325 = vector.broadcast %cst_197 : f32 to vector<10x1xf32>
    %326 = arith.divf %324, %325 : vector<10x1xf32>
    %327 = vector.broadcast %326 : vector<10x1xf32> to vector<10x64xf32>
    %328 = arith.subf %318, %327 : vector<10x64xf32>
    %329 = arith.mulf %328, %328 : vector<10x64xf32>
    %cst_198 = arith.constant dense<0.000000e+00> : vector<10xf32>
    %330 = vector.multi_reduction <add>, %329, %cst_198 [1] : vector<10x64xf32> to vector<10xf32>
    %331 = vector.shape_cast %330 : vector<10xf32> to vector<10x1xf32>
    %cst_199 = arith.constant 6.400000e+01 : f32
    %332 = vector.broadcast %cst_199 : f32 to vector<10x1xf32>
    %333 = arith.divf %331, %332 : vector<10x1xf32>
    %cst_200 = arith.constant 9.99999974E-6 : f32
    %334 = vector.broadcast %cst_200 : f32 to vector<10x1xf32>
    %335 = arith.addf %333, %334 : vector<10x1xf32>
    %336 = math.rsqrt %335 : vector<10x1xf32>
    %337 = vector.broadcast %336 : vector<10x1xf32> to vector<10x64xf32>
    %338 = arith.mulf %328, %337 : vector<10x64xf32>
    %339 = vector.broadcast %320 : vector<1x64xf32> to vector<10x64xf32>
    %340 = arith.mulf %338, %339 : vector<10x64xf32>
    %341 = vector.broadcast %322 : vector<1x64xf32> to vector<10x64xf32>
    %342 = arith.addf %340, %341 : vector<10x64xf32>
    %343 = arith.truncf %342 : vector<10x64xf32> to vector<10x64xbf16>
    %c1_201 = arith.constant 1 : index
    %c0_202 = arith.constant 0 : index
    %c0_203 = arith.constant 0 : index
    %344 = vector.load %arg19[%c1_201, %c0_202, %c0_203] : memref<2x64x128xbf16, #tpu.memory_space<vmem>>, vector<1x64x128xbf16>
    %345 = vector.shape_cast %344 : vector<1x64x128xbf16> to vector<64x128xbf16>
    %cst_204 = arith.constant dense<0.000000e+00> : vector<10x128xf32>
    %346 = tpu.matmul %343, %345, %cst_204 {dimension_numbers = #tpu.dot_dimension_numbers<[1], [0], [0], [1], [0, 0, 1, 1], [], []>} : vector<10x64xbf16>, vector<64x128xbf16>, vector<10x128xf32> -> vector<10x128xf32>
    %c1_205 = arith.constant 1 : index
    %c0_206 = arith.constant 0 : index
    %c0_207 = arith.constant 0 : index
    %347 = vector.load %arg20[%c1_205, %c0_206, %c0_207] : memref<2x1x128xf32, #tpu.memory_space<vmem>>, vector<1x1x128xf32>
    %348 = vector.shape_cast %347 : vector<1x1x128xf32> to vector<1x128xf32>
    %349 = vector.broadcast %348 : vector<1x128xf32> to vector<10x128xf32>
    %350 = arith.addf %346, %349 : vector<10x128xf32>
    %cst_208 = arith.constant 1.702000e+00 : f32
    %351 = vector.broadcast %cst_208 : f32 to vector<10x128xf32>
    %352 = arith.mulf %351, %350 : vector<10x128xf32>
    %353 = arith.negf %352 : vector<10x128xf32>
    %354 = math.exp %353 : vector<10x128xf32>
    %cst_209 = arith.constant 1.000000e+00 : f32
    %355 = vector.broadcast %cst_209 : f32 to vector<10x128xf32>
    %356 = arith.addf %355, %354 : vector<10x128xf32>
    %357 = arith.divf %355, %356 : vector<10x128xf32>
    %358 = arith.mulf %350, %357 : vector<10x128xf32>
    %359 = arith.truncf %358 : vector<10x128xf32> to vector<10x128xbf16>
    %c1_210 = arith.constant 1 : index
    %c0_211 = arith.constant 0 : index
    %c0_212 = arith.constant 0 : index
    %360 = vector.load %arg21[%c1_210, %c0_211, %c0_212] : memref<2x128x64xbf16, #tpu.memory_space<vmem>>, vector<1x128x64xbf16>
    %361 = vector.shape_cast %360 : vector<1x128x64xbf16> to vector<128x64xbf16>
    %cst_213 = arith.constant dense<0.000000e+00> : vector<10x64xf32>
    %362 = tpu.matmul %359, %361, %cst_213 {dimension_numbers = #tpu.dot_dimension_numbers<[1], [0], [0], [1], [0, 0, 1, 1], [], []>} : vector<10x128xbf16>, vector<128x64xbf16>, vector<10x64xf32> -> vector<10x64xf32>
    %c1_214 = arith.constant 1 : index
    %c0_215 = arith.constant 0 : index
    %c0_216 = arith.constant 0 : index
    %363 = vector.load %arg22[%c1_214, %c0_215, %c0_216] : memref<2x1x64xf32, #tpu.memory_space<vmem>>, vector<1x1x64xf32>
    %364 = vector.shape_cast %363 : vector<1x1x64xf32> to vector<1x64xf32>
    %365 = vector.broadcast %364 : vector<1x64xf32> to vector<10x64xf32>
    %366 = arith.addf %362, %365 : vector<10x64xf32>
    %367 = arith.addf %318, %366 : vector<10x64xf32>
    %c0_217 = arith.constant 0 : index
    %c0_218 = arith.constant 0 : index
    %368 = vector.load %arg6[%c0_217, %c0_218] : memref<2x10xf32, #tpu.memory_space<vmem>>, vector<2x10xf32>
    %cst_219 = arith.constant dense<0.000000e+00> : vector<2x64xf32>
    %369 = tpu.matmul %368, %367, %cst_219 {dimension_numbers = #tpu.dot_dimension_numbers<[1], [0], [0], [1], [0, 0, 1, 1], [], []>} : vector<2x10xf32>, vector<10x64xf32>, vector<2x64xf32> -> vector<2x64xf32>
    %c0_220 = arith.constant 0 : index
    %c0_221 = arith.constant 0 : index
    %370 = vector.load %arg23[%c0_220, %c0_221] : memref<1x64xf32, #tpu.memory_space<vmem>>, vector<1x64xf32>
    %c0_222 = arith.constant 0 : index
    %c0_223 = arith.constant 0 : index
    %371 = vector.load %arg24[%c0_222, %c0_223] : memref<1x64xf32, #tpu.memory_space<vmem>>, vector<1x64xf32>
    %cst_224 = arith.constant dense<0.000000e+00> : vector<2xf32>
    %372 = vector.multi_reduction <add>, %369, %cst_224 [1] : vector<2x64xf32> to vector<2xf32>
    %373 = vector.shape_cast %372 : vector<2xf32> to vector<2x1xf32>
    %cst_225 = arith.constant 6.400000e+01 : f32
    %374 = vector.broadcast %cst_225 : f32 to vector<2x1xf32>
    %375 = arith.divf %373, %374 : vector<2x1xf32>
    %376 = vector.broadcast %375 : vector<2x1xf32> to vector<2x64xf32>
    %377 = arith.subf %369, %376 : vector<2x64xf32>
    %378 = arith.mulf %377, %377 : vector<2x64xf32>
    %cst_226 = arith.constant dense<0.000000e+00> : vector<2xf32>
    %379 = vector.multi_reduction <add>, %378, %cst_226 [1] : vector<2x64xf32> to vector<2xf32>
    %380 = vector.shape_cast %379 : vector<2xf32> to vector<2x1xf32>
    %cst_227 = arith.constant 6.400000e+01 : f32
    %381 = vector.broadcast %cst_227 : f32 to vector<2x1xf32>
    %382 = arith.divf %380, %381 : vector<2x1xf32>
    %cst_228 = arith.constant 9.99999974E-6 : f32
    %383 = vector.broadcast %cst_228 : f32 to vector<2x1xf32>
    %384 = arith.addf %382, %383 : vector<2x1xf32>
    %385 = math.rsqrt %384 : vector<2x1xf32>
    %386 = vector.broadcast %385 : vector<2x1xf32> to vector<2x64xf32>
    %387 = arith.mulf %377, %386 : vector<2x64xf32>
    %388 = vector.broadcast %370 : vector<1x64xf32> to vector<2x64xf32>
    %389 = arith.mulf %387, %388 : vector<2x64xf32>
    %390 = vector.broadcast %371 : vector<1x64xf32> to vector<2x64xf32>
    %391 = arith.addf %389, %390 : vector<2x64xf32>
    %392 = arith.truncf %391 : vector<2x64xf32> to vector<2x64xbf16>
    %c0_229 = arith.constant 0 : index
    %c0_230 = arith.constant 0 : index
    %393 = vector.load %arg25[%c0_229, %c0_230] : memref<64x32xbf16, #tpu.memory_space<vmem>>, vector<64x32xbf16>
    %cst_231 = arith.constant dense<0.000000e+00> : vector<2x32xf32>
    %394 = tpu.matmul %392, %393, %cst_231 {dimension_numbers = #tpu.dot_dimension_numbers<[1], [0], [0], [1], [0, 0, 1, 1], [], []>} : vector<2x64xbf16>, vector<64x32xbf16>, vector<2x32xf32> -> vector<2x32xf32>
    %395 = arith.mulf %394, %394 : vector<2x32xf32>
    %cst_232 = arith.constant dense<0.000000e+00> : vector<2xf32>
    %396 = vector.multi_reduction <add>, %395, %cst_232 [1] : vector<2x32xf32> to vector<2xf32>
    %397 = vector.shape_cast %396 : vector<2xf32> to vector<2x1xf32>
    %cst_233 = arith.constant 9.99999996E-13 : f32
    %398 = vector.broadcast %cst_233 : f32 to vector<2x1xf32>
    %399 = arith.addf %397, %398 : vector<2x1xf32>
    %400 = math.rsqrt %399 : vector<2x1xf32>
    %401 = vector.broadcast %400 : vector<2x1xf32> to vector<2x32xf32>
    %402 = arith.mulf %394, %401 : vector<2x32xf32>
    %403 = arith.truncf %402 : vector<2x32xf32> to vector<2x32xbf16>
    %c0_234 = arith.constant 0 : index
    %c0_235 = arith.constant 0 : index
    %404 = vector.load %arg26[%c0_234, %c0_235] : memref<32x128xbf16, #tpu.memory_space<vmem>>, vector<32x128xbf16>
    %cst_236 = arith.constant dense<0.000000e+00> : vector<2x128xf32>
    %405 = tpu.matmul %403, %404, %cst_236 {dimension_numbers = #tpu.dot_dimension_numbers<[1], [0], [0], [1], [0, 0, 1, 1], [], []>} : vector<2x32xbf16>, vector<32x128xbf16>, vector<2x128xf32> -> vector<2x128xf32>
    %c0_237 = arith.constant 0 : index
    %c0_238 = arith.constant 0 : index
    %406 = vector.load %arg27[%c0_237, %c0_238] : memref<2x128xf32, #tpu.memory_space<vmem>>, vector<2x128xf32>
    tpu.vector_store %arg27[%c0_237, %c0_238], %405 {strides = array<i32>} : memref<2x128xf32, #tpu.memory_space<vmem>>, vector<2x128xf32>,
    return
  }
}

</mosaic_0001>

<llo_original>
// kernel: eq.22
$region0: #{eq.22}
  %s0 = inlined_call_operand.vmem [shape: s32[2,5], index: 0, kind: input, shape index: {}]
  %s1 = inlined_call_operand.vmem [shape: s32[10], index: 1, kind: output, shape index: {}]
  $region1: #{eq.22} parent=0
    #allocation0 [shape = 'u8[4096]{0}', space=vmem, size = 0x1000, scoped, tag = 'scoped mem for output reshape']
    #allocation1 [shape = 'u8[4096]{0}', space=vmem, size = 0x1000, scoped, tag = 'scoped mem for input reshape']
    %s3 = ssub.s32 4, 1
    %v4 = vld [vmem:[%s0] sm:%s3]
    %5 = vst [vmem:[#allocation1] sm:%s3] %v4
    %v6 = vld [vmem:[#allocation1] sm:$0x1]
    %vm7 = vcmask 39936
    %8 = vst.msk [vmem:[#allocation0] sm:$0x1] %vm7, %v6
    %s9 = scalar_lea.vmem [#allocation1], 1
    %v10 = vld [vmem:[%s9] sm:$0x1]
    %11 = vrot.lane.b32.xlu0 %v10, 5
    %v12 = vpop.permute.xlu0 %11
    %vm13 = vcmask 80936
    %14 = vst.msk [vmem:[#allocation0] sm:$0x1] %vm13, %v12
    %s16 = ssub.s32 2, 1
    %v17 = vld [vmem:[#allocation0] sm:%s16]
    %s19 = ssub.s32 2, 1
    %20 = vst [vmem:[%s1] sm:%s19] %v17

// kernel: tile.9
$region0: #{tile.9}
  %s0 = inlined_call_operand.vmem [shape: f32[2,5,64], index: 0, kind: input, shape index: {}]
  %s1 = inlined_call_operand.vmem [shape: f32[10,64], index: 1, kind: output, shape index: {}]
  %v2 = vld [vmem:[%s0] sm:$0x1f]
  %vm3 = vcmask 523264
  %4 = vst.msk [vmem:[%s1] sm:$0x1f] %vm3, %v2
  %s5 = scalar_lea.vmem %s0, 8
  %v6 = vld [vmem:[%s5] sm:$0x1f]
  %vm7 = vcmask 523264
  %s8 = scalar_lea.vmem %s1, 5
  %9 = vst.msk [vmem:[%s8] sm:$0x1f] %vm7, %v6

// kernel: _lambda_.1
$region0: #{_lambda_.1}
  #allocation0 [shape = 'u32[]', space=smem, size = 0x4, offset = 0x4, fixed_abs, tag = 'smem constant byte address 0x4 - core index']
  #allocation1 [shape = 'u32[72,128]{1,0:T(1,128)}', space=vmem, size = 0x9000, scoped, tag = 'internal scratch']
  %s0 = inlined_call_operand.vmem [shape: bf16[10,768], index: 0, kind: input, shape index: {}]
  %s1 = inlined_call_operand.vmem [shape: bf16[768,64], index: 1, kind: input, shape index: {}]
  %s2 = inlined_call_operand.vmem [shape: f32[10,64], index: 2, kind: input, shape index: {}]
  %s3 = inlined_call_operand.vmem [shape: f32[1,64], index: 3, kind: input, shape index: {}]
  %s4 = inlined_call_operand.vmem [shape: f32[1,64], index: 4, kind: input, shape index: {}]
  %s5 = inlined_call_operand.vmem [shape: f32[10,10], index: 5, kind: input, shape index: {}]
  %s6 = inlined_call_operand.vmem [shape: f32[2,10], index: 6, kind: input, shape index: {}]
  %s7 = inlined_call_operand.vmem [shape: f32[2,1,64], index: 7, kind: input, shape index: {}]
  %s8 = inlined_call_operand.vmem [shape: f32[2,1,64], index: 8, kind: input, shape index: {}]
  %s9 = inlined_call_operand.vmem [shape: bf16[4,64,32], index: 9, kind: input, shape index: {}]
  %s10 = inlined_call_operand.vmem [shape: f32[4,1,32], index: 10, kind: input, shape index: {}]
  %s11 = inlined_call_operand.vmem [shape: bf16[4,64,32], index: 11, kind: input, shape index: {}]
  %s12 = inlined_call_operand.vmem [shape: f32[4,1,32], index: 12, kind: input, shape index: {}]
  %s13 = inlined_call_operand.vmem [shape: bf16[4,64,32], index: 13, kind: input, shape index: {}]
  %s14 = inlined_call_operand.vmem [shape: f32[4,1,32], index: 14, kind: input, shape index: {}]
  %s15 = inlined_call_operand.vmem [shape: bf16[4,32,64], index: 15, kind: input, shape index: {}]
  %s16 = inlined_call_operand.vmem [shape: f32[2,1,64], index: 16, kind: input, shape index: {}]
  %s17 = inlined_call_operand.vmem [shape: f32[2,1,64], index: 17, kind: input, shape index: {}]
  %s18 = inlined_call_operand.vmem [shape: f32[2,1,64], index: 18, kind: input, shape index: {}]
  %s19 = inlined_call_operand.vmem [shape: bf16[2,64,128], index: 19, kind: input, shape index: {}]
  %s20 = inlined_call_operand.vmem [shape: f32[2,1,128], index: 20, kind: input, shape index: {}]
  %s21 = inlined_call_operand.vmem [shape: bf16[2,128,64], index: 21, kind: input, shape index: {}]
  %s22 = inlined_call_operand.vmem [shape: f32[2,1,64], index: 22, kind: input, shape index: {}]
  %s23 = inlined_call_operand.vmem [shape: f32[1,64], index: 23, kind: input, shape index: {}]
  %s24 = inlined_call_operand.vmem [shape: f32[1,64], index: 24, kind: input, shape index: {}]
  %s25 = inlined_call_operand.vmem [shape: bf16[64,32], index: 25, kind: input, shape index: {}]
  %s26 = inlined_call_operand.vmem [shape: bf16[32,128], index: 26, kind: input, shape index: {}]
  %s27 = inlined_call_operand.hbm [shape: f32[2,128], index: 27, kind: output, shape index: {}]
  %s28 = sld [smem:[#allocation0]]
  $region118: #{_lambda_.1} parent=0
    _
  %s30 = ssub.s32 1, %s28
  %s31 = scalar_select 0, %s30, %s28
  $region1: #{_lambda_.1} parent=0
    #allocation2 [shape = 'u8[1024]{0}', space=vmem, size = 0x400, scoped, tag = 'output window, operand 0, single buffered']
    #allocation3 [shape = 's32[1]{0}', space=sflag, size = 0x4, scoped, tag = 'scoped memory for _lambda_.1']
    %32 = vsyncpa [#allocation3], 0
    // Predicated region
    $region2: #{_lambda_.1} parent=1 // pred_check
      _
    $region3: #{_lambda_.1} parent=1 // pred_check_branch
      %34 = sbr.rel (0) target = $region5
    $region4: #{_lambda_.1} parent=1 // pred_region
      _
    $region5: #{_lambda_.1} parent=1 // pred_fallthru
      _
    // Predicated region
    $region6: #{_lambda_.1} parent=1 // pred_check
      _
    $region7: #{_lambda_.1} parent=1 // pred_check_branch
      %36 = sbr.rel (0) target = $region9
    $region8: #{_lambda_.1} parent=1 // pred_region
      _
    $region9: #{_lambda_.1} parent=1 // pred_fallthru
      _
    // Predicated region
    $region10: #{_lambda_.1} parent=1 // pred_check
      _
    $region11: #{_lambda_.1} parent=1 // pred_check_branch
      %38 = sbr.rel (0) target = $region13
    $region12: #{_lambda_.1} parent=1 // pred_region
      _
    $region13: #{_lambda_.1} parent=1 // pred_fallthru
      _
    // Predicated region
    $region14: #{_lambda_.1} parent=1 // pred_check
      _
    $region15: #{_lambda_.1} parent=1 // pred_check_branch
      %40 = sbr.rel (0) target = $region17
    $region16: #{_lambda_.1} parent=1 // pred_region
      _
    $region17: #{_lambda_.1} parent=1 // pred_fallthru
      _
    // Predicated region
    $region18: #{_lambda_.1} parent=1 // pred_check
      _
    $region19: #{_lambda_.1} parent=1 // pred_check_branch
      %42 = sbr.rel (0) target = $region21
    $region20: #{_lambda_.1} parent=1 // pred_region
      _
    $region21: #{_lambda_.1} parent=1 // pred_fallthru
      _
    // Predicated region
    $region22: #{_lambda_.1} parent=1 // pred_check
      _
    $region23: #{_lambda_.1} parent=1 // pred_check_branch
      %44 = sbr.rel (0) target = $region25
    $region24: #{_lambda_.1} parent=1 // pred_region
      _
    $region25: #{_lambda_.1} parent=1 // pred_fallthru
      _
    // Predicated region
    $region26: #{_lambda_.1} parent=1 // pred_check
      _
    $region27: #{_lambda_.1} parent=1 // pred_check_branch
      %46 = sbr.rel (0) target = $region29
    $region28: #{_lambda_.1} parent=1 // pred_region
      _
    $region29: #{_lambda_.1} parent=1 // pred_fallthru
      _
    // Predicated region
    $region30: #{_lambda_.1} parent=1 // pred_check
      _
    $region31: #{_lambda_.1} parent=1 // pred_check_branch
      %48 = sbr.rel (0) target = $region33
    $region32: #{_lambda_.1} parent=1 // pred_region
      _
    $region33: #{_lambda_.1} parent=1 // pred_fallthru
      _
    // Predicated region
    $region34: #{_lambda_.1} parent=1 // pred_check
      _
    $region35: #{_lambda_.1} parent=1 // pred_check_branch
      %50 = sbr.rel (0) target = $region37
    $region36: #{_lambda_.1} parent=1 // pred_region
      _
    $region37: #{_lambda_.1} parent=1 // pred_fallthru
      _
    // Predicated region
    $region38: #{_lambda_.1} parent=1 // pred_check
      _
    $region39: #{_lambda_.1} parent=1 // pred_check_branch
      %52 = sbr.rel (0) target = $region41
    $region40: #{_lambda_.1} parent=1 // pred_region
      _
    $region41: #{_lambda_.1} parent=1 // pred_fallthru
      _
    // Predicated region
    $region42: #{_lambda_.1} parent=1 // pred_check
      _
    $region43: #{_lambda_.1} parent=1 // pred_check_branch
      %54 = sbr.rel (0) target = $region45
    $region44: #{_lambda_.1} parent=1 // pred_region
      _
    $region45: #{_lambda_.1} parent=1 // pred_fallthru
      _
    // Predicated region
    $region46: #{_lambda_.1} parent=1 // pred_check
      _
    $region47: #{_lambda_.1} parent=1 // pred_check_branch
      %56 = sbr.rel (0) target = $region49
    $region48: #{_lambda_.1} parent=1 // pred_region
      _
    $region49: #{_lambda_.1} parent=1 // pred_fallthru
      _
    // Predicated region
    $region50: #{_lambda_.1} parent=1 // pred_check
      _
    $region51: #{_lambda_.1} parent=1 // pred_check_branch
      %58 = sbr.rel (0) target = $region53
    $region52: #{_lambda_.1} parent=1 // pred_region
      _
    $region53: #{_lambda_.1} parent=1 // pred_fallthru
      _
    // Predicated region
    $region54: #{_lambda_.1} parent=1 // pred_check
      _
    $region55: #{_lambda_.1} parent=1 // pred_check_branch
      %60 = sbr.rel (0) target = $region57
    $region56: #{_lambda_.1} parent=1 // pred_region
      _
    $region57: #{_lambda_.1} parent=1 // pred_fallthru
      _
    // Predicated region
    $region58: #{_lambda_.1} parent=1 // pred_check
      _
    $region59: #{_lambda_.1} parent=1 // pred_check_branch
      %62 = sbr.rel (0) target = $region61
    $region60: #{_lambda_.1} parent=1 // pred_region
      _
    $region61: #{_lambda_.1} parent=1 // pred_fallthru
      _
    // Predicated region
    $region62: #{_lambda_.1} parent=1 // pred_check
      _
    $region63: #{_lambda_.1} parent=1 // pred_check_branch
      %64 = sbr.rel (0) target = $region65
    $region64: #{_lambda_.1} parent=1 // pred_region
      _
    $region65: #{_lambda_.1} parent=1 // pred_fallthru
      _
    // Predicated region
    $region66: #{_lambda_.1} parent=1 // pred_check
      _
    $region67: #{_lambda_.1} parent=1 // pred_check_branch
      %66 = sbr.rel (0) target = $region69
    $region68: #{_lambda_.1} parent=1 // pred_region
      _
    $region69: #{_lambda_.1} parent=1 // pred_fallthru
      _
    // Predicated region
    $region70: #{_lambda_.1} parent=1 // pred_check
      _
    $region71: #{_lambda_.1} parent=1 // pred_check_branch
      %68 = sbr.rel (0) target = $region73
    $region72: #{_lambda_.1} parent=1 // pred_region
      _
    $region73: #{_lambda_.1} parent=1 // pred_fallthru
      _
    // Predicated region
    $region74: #{_lambda_.1} parent=1 // pred_check
      _
    $region75: #{_lambda_.1} parent=1 // pred_check_branch
      %70 = sbr.rel (0) target = $region77
    $region76: #{_lambda_.1} parent=1 // pred_region
      _
    $region77: #{_lambda_.1} parent=1 // pred_fallthru
      _
    // Predicated region
    $region78: #{_lambda_.1} parent=1 // pred_check
      _
    $region79: #{_lambda_.1} parent=1 // pred_check_branch
      %72 = sbr.rel (0) target = $region81
    $region80: #{_lambda_.1} parent=1 // pred_region
      _
    $region81: #{_lambda_.1} parent=1 // pred_fallthru
      _
    // Predicated region
    $region82: #{_lambda_.1} parent=1 // pred_check
      _
    $region83: #{_lambda_.1} parent=1 // pred_check_branch
      %74 = sbr.rel (0) target = $region85
    $region84: #{_lambda_.1} parent=1 // pred_region
      _
    $region85: #{_lambda_.1} parent=1 // pred_fallthru
      _
    // Predicated region
    $region86: #{_lambda_.1} parent=1 // pred_check
      _
    $region87: #{_lambda_.1} parent=1 // pred_check_branch
      %76 = sbr.rel (0) target = $region89
    $region88: #{_lambda_.1} parent=1 // pred_region
      _
    $region89: #{_lambda_.1} parent=1 // pred_fallthru
      _
    // Predicated region
    $region90: #{_lambda_.1} parent=1 // pred_check
      _
    $region91: #{_lambda_.1} parent=1 // pred_check_branch
      %78 = sbr.rel (0) target = $region93
    $region92: #{_lambda_.1} parent=1 // pred_region
      _
    $region93: #{_lambda_.1} parent=1 // pred_fallthru
      _
    // Predicated region
    $region94: #{_lambda_.1} parent=1 // pred_check
      _
    $region95: #{_lambda_.1} parent=1 // pred_check_branch
      %80 = sbr.rel (0) target = $region97
    $region96: #{_lambda_.1} parent=1 // pred_region
      _
    $region97: #{_lambda_.1} parent=1 // pred_fallthru
      _
    // Predicated region
    $region98: #{_lambda_.1} parent=1 // pred_check
      _
    $region99: #{_lambda_.1} parent=1 // pred_check_branch
      %82 = sbr.rel (0) target = $region101
    $region100: #{_lambda_.1} parent=1 // pred_region
      _
    $region101: #{_lambda_.1} parent=1 // pred_fallthru
      _
    // Predicated region
    $region102: #{_lambda_.1} parent=1 // pred_check
      _
    $region103: #{_lambda_.1} parent=1 // pred_check_branch
      %84 = sbr.rel (0) target = $region105
    $region104: #{_lambda_.1} parent=1 // pred_region
      _
    $region105: #{_lambda_.1} parent=1 // pred_fallthru
      _
    // Predicated region
    $region106: #{_lambda_.1} parent=1 // pred_check
      _
    $region107: #{_lambda_.1} parent=1 // pred_check_branch
      %86 = sbr.rel (0) target = $region109
    $region108: #{_lambda_.1} parent=1 // pred_region
      _
    $region109: #{_lambda_.1} parent=1 // pred_fallthru
      _
    %v88 = vld [vmem:[%s0] sm:$0xff]
    %v89 = vld [vmem:[%s0 + $0x8] sm:$0xff]
    %v90 = vld [vmem:[%s0 + $0x10] sm:$0xff]
    %v91 = vld [vmem:[%s0 + $0x18] sm:$0x11]
    %v92 = vld [vmem:[%s0 + $0x20] sm:$0x11]
    %v93 = vld [vmem:[%s0 + $0x28] sm:$0x11]
    %v94 = vld [vmem:[%s1] sm:$0xf]
    %v95 = vld [vmem:[%s1 + $0x4] sm:$0xf]
    %v96 = vld [vmem:[%s1 + $0x8] sm:$0xf]
    %v97 = vld [vmem:[%s1 + $0xc] sm:$0xf]
    %v98 = vld [vmem:[%s1 + $0x10] sm:$0xf]
    %v99 = vld [vmem:[%s1 + $0x14] sm:$0xf]
    %v100 = vld [vmem:[%s1 + $0x18] sm:$0xf]
    %v101 = vld [vmem:[%s1 + $0x1c] sm:$0xf]
    %v102 = vld [vmem:[%s1 + $0x20] sm:$0xf]
    %v103 = vld [vmem:[%s1 + $0x24] sm:$0xf]
    %v104 = vld [vmem:[%s1 + $0x28] sm:$0xf]
    %v105 = vld [vmem:[%s1 + $0x2c] sm:$0xf]
    %v106 = vld [vmem:[%s1 + $0x30] sm:$0xf]
    %v107 = vld [vmem:[%s1 + $0x34] sm:$0xf]
    %v108 = vld [vmem:[%s1 + $0x38] sm:$0xf]
    %v109 = vld [vmem:[%s1 + $0x3c] sm:$0xf]
    %v110 = vld [vmem:[%s1 + $0x40] sm:$0xf]
    %v111 = vld [vmem:[%s1 + $0x44] sm:$0xf]
    %v112 = vld [vmem:[%s1 + $0x48] sm:$0xf]
    %v113 = vld [vmem:[%s1 + $0x4c] sm:$0xf]
    %v114 = vld [vmem:[%s1 + $0x50] sm:$0xf]
    %v115 = vld [vmem:[%s1 + $0x54] sm:$0xf]
    %v116 = vld [vmem:[%s1 + $0x58] sm:$0xf]
    %v117 = vld [vmem:[%s1 + $0x5c] sm:$0xf]
    %v118 = vld [vmem:[%s1 + $0x60] sm:$0xf]
    %v119 = vld [vmem:[%s1 + $0x64] sm:$0xf]
    %v120 = vld [vmem:[%s1 + $0x68] sm:$0xf]
    %v121 = vld [vmem:[%s1 + $0x6c] sm:$0xf]
    %v122 = vld [vmem:[%s1 + $0x70] sm:$0xf]
    %v123 = vld [vmem:[%s1 + $0x74] sm:$0xf]
    %v124 = vld [vmem:[%s1 + $0x78] sm:$0xf]
    %v125 = vld [vmem:[%s1 + $0x7c] sm:$0xf]
    %v126 = vld [vmem:[%s1 + $0x80] sm:$0xf]
    %v127 = vld [vmem:[%s1 + $0x84] sm:$0xf]
    %v128 = vld [vmem:[%s1 + $0x88] sm:$0xf]
    %v129 = vld [vmem:[%s1 + $0x8c] sm:$0xf]
    %v130 = vld [vmem:[%s1 + $0x90] sm:$0xf]
    %v131 = vld [vmem:[%s1 + $0x94] sm:$0xf]
    %v132 = vld [vmem:[%s1 + $0x98] sm:$0xf]
    %v133 = vld [vmem:[%s1 + $0x9c] sm:$0xf]
    %v134 = vld [vmem:[%s1 + $0xa0] sm:$0xf]
    %v135 = vld [vmem:[%s1 + $0xa4] sm:$0xf]
    %v136 = vld [vmem:[%s1 + $0xa8] sm:$0xf]
    %v137 = vld [vmem:[%s1 + $0xac] sm:$0xf]
    %v138 = vld [vmem:[%s1 + $0xb0] sm:$0xf]
    %v139 = vld [vmem:[%s1 + $0xb4] sm:$0xf]
    %v140 = vld [vmem:[%s1 + $0xb8] sm:$0xf]
    %v141 = vld [vmem:[%s1 + $0xbc] sm:$0xf]
    %v142 = vld [vmem:[%s1 + $0xc0] sm:$0xf]
    %v143 = vld [vmem:[%s1 + $0xc4] sm:$0xf]
    %v144 = vld [vmem:[%s1 + $0xc8] sm:$0xf]
    %v145 = vld [vmem:[%s1 + $0xcc] sm:$0xf]
    %v146 = vld [vmem:[%s1 + $0xd0] sm:$0xf]
    %v147 = vld [vmem:[%s1 + $0xd4] sm:$0xf]
    %v148 = vld [vmem:[%s1 + $0xd8] sm:$0xf]
    %v149 = vld [vmem:[%s1 + $0xdc] sm:$0xf]
    %v150 = vld [vmem:[%s1 + $0xe0] sm:$0xf]
    %v151 = vld [vmem:[%s1 + $0xe4] sm:$0xf]
    %v152 = vld [vmem:[%s1 + $0xe8] sm:$0xf]
    %v153 = vld [vmem:[%s1 + $0xec] sm:$0xf]
    %v154 = vld [vmem:[%s1 + $0xf0] sm:$0xf]
    %v155 = vld [vmem:[%s1 + $0xf4] sm:$0xf]
    %v156 = vld [vmem:[%s1 + $0xf8] sm:$0xf]
    %v157 = vld [vmem:[%s1 + $0xfc] sm:$0xf]
    %v158 = vld [vmem:[%s1 + $0x100] sm:$0xf]
    %v159 = vld [vmem:[%s1 + $0x104] sm:$0xf]
    %v160 = vld [vmem:[%s1 + $0x108] sm:$0xf]
    %v161 = vld [vmem:[%s1 + $0x10c] sm:$0xf]
    %v162 = vld [vmem:[%s1 + $0x110] sm:$0xf]
    %v163 = vld [vmem:[%s1 + $0x114] sm:$0xf]
    %v164 = vld [vmem:[%s1 + $0x118] sm:$0xf]
    %v165 = vld [vmem:[%s1 + $0x11c] sm:$0xf]
    %v166 = vld [vmem:[%s1 + $0x120] sm:$0xf]
    %v167 = vld [vmem:[%s1 + $0x124] sm:$0xf]
    %v168 = vld [vmem:[%s1 + $0x128] sm:$0xf]
    %v169 = vld [vmem:[%s1 + $0x12c] sm:$0xf]
    %v170 = vld [vmem:[%s1 + $0x130] sm:$0xf]
    %v171 = vld [vmem:[%s1 + $0x134] sm:$0xf]
    %v172 = vld [vmem:[%s1 + $0x138] sm:$0xf]
    %v173 = vld [vmem:[%s1 + $0x13c] sm:$0xf]
    %v174 = vld [vmem:[%s1 + $0x140] sm:$0xf]
    %v175 = vld [vmem:[%s1 + $0x144] sm:$0xf]
    %v176 = vld [vmem:[%s1 + $0x148] sm:$0xf]
    %v177 = vld [vmem:[%s1 + $0x14c] sm:$0xf]
    %v178 = vld [vmem:[%s1 + $0x150] sm:$0xf]
    %v179 = vld [vmem:[%s1 + $0x154] sm:$0xf]
    %v180 = vld [vmem:[%s1 + $0x158] sm:$0xf]
    %v181 = vld [vmem:[%s1 + $0x15c] sm:$0xf]
    %v182 = vld [vmem:[%s1 + $0x160] sm:$0xf]
    %v183 = vld [vmem:[%s1 + $0x164] sm:$0xf]
    %v184 = vld [vmem:[%s1 + $0x168] sm:$0xf]
    %v185 = vld [vmem:[%s1 + $0x16c] sm:$0xf]
    %v186 = vld [vmem:[%s1 + $0x170] sm:$0xf]
    %v187 = vld [vmem:[%s1 + $0x174] sm:$0xf]
    %v188 = vld [vmem:[%s1 + $0x178] sm:$0xf]
    %v189 = vld [vmem:[%s1 + $0x17c] sm:$0xf]
    %v190 = vld [vmem:[%s2] sm:$0xff]
    %v191 = vld [vmem:[%s2 + $0x8] sm:$0x3]
    %v198 = vunpack.c.l.b16 %v88
    %v199 = vunpack.c.h.b16 %v88
    %v200 = vunpack.c.l.b16 %v89
    %v201 = vunpack.c.h.b16 %v89
    %v202 = vunpack.c.l.b16 %v90
    %v203 = vunpack.c.h.b16 %v90
    %v204 = vunpack.c.l.b16 %v91
    %v205 = vunpack.c.h.b16 %v91
    %v206 = vunpack.c.l.b16 %v92
    %v207 = vunpack.c.h.b16 %v92
    %v208 = vunpack.c.l.b16 %v93
    %v209 = vunpack.c.h.b16 %v93
    %v210 = vpack.c.b16 %v204, %v198
    %v211 = vpack.c.b16 %v205, %v199
    %v212 = vpack.c.b16 %v206, %v200
    %v213 = vpack.c.b16 %v207, %v201
    %v214 = vpack.c.b16 %v208, %v202
    %v215 = vpack.c.b16 %v209, %v203
    %v318 = vunpack.c.l.b16 %v94
    %v319 = vunpack.c.l.b16 %v95
    %v320 = vunpack.c.l.b16 %v96
    %v321 = vunpack.c.l.b16 %v97
    %v322 = vunpack.c.l.b16 %v98
    %v323 = vunpack.c.l.b16 %v99
    %v324 = vunpack.c.l.b16 %v100
    %v325 = vunpack.c.l.b16 %v101
    %v326 = vunpack.c.l.b16 %v102
    %v327 = vunpack.c.l.b16 %v103
    %v328 = vunpack.c.l.b16 %v104
    %v329 = vunpack.c.l.b16 %v105
    %v330 = vunpack.c.l.b16 %v106
    %v331 = vunpack.c.l.b16 %v107
    %v332 = vunpack.c.l.b16 %v108
    %v333 = vunpack.c.l.b16 %v109
    %v334 = vunpack.c.l.b16 %v110
    %v335 = vunpack.c.l.b16 %v111
    %v336 = vunpack.c.l.b16 %v112
    %v337 = vunpack.c.l.b16 %v113
    %v338 = vunpack.c.l.b16 %v114
    %v339 = vunpack.c.l.b16 %v115
    %v340 = vunpack.c.l.b16 %v116
    %v341 = vunpack.c.l.b16 %v117
    %v342 = vunpack.c.l.b16 %v118
    %v343 = vunpack.c.l.b16 %v119
    %v344 = vunpack.c.l.b16 %v120
    %v345 = vunpack.c.l.b16 %v121
    %v346 = vunpack.c.l.b16 %v122
    %v347 = vunpack.c.l.b16 %v123
    %v348 = vunpack.c.l.b16 %v124
    %v349 = vunpack.c.l.b16 %v125
    %v350 = vunpack.c.l.b16 %v126
    %v351 = vunpack.c.l.b16 %v127
    %v352 = vunpack.c.l.b16 %v128
    %v353 = vunpack.c.l.b16 %v129
    %v354 = vunpack.c.l.b16 %v130
    %v355 = vunpack.c.l.b16 %v131
    %v356 = vunpack.c.l.b16 %v132
    %v357 = vunpack.c.l.b16 %v133
    %v358 = vunpack.c.l.b16 %v134
    %v359 = vunpack.c.l.b16 %v135
    %v360 = vunpack.c.l.b16 %v136
    %v361 = vunpack.c.l.b16 %v137
    %v362 = vunpack.c.l.b16 %v138
    %v363 = vunpack.c.l.b16 %v139
    %v364 = vunpack.c.l.b16 %v140
    %v365 = vunpack.c.l.b16 %v141
    %v366 = vunpack.c.l.b16 %v142
    %v367 = vunpack.c.l.b16 %v143
    %v368 = vunpack.c.l.b16 %v144
    %v369 = vunpack.c.l.b16 %v145
    %v370 = vunpack.c.l.b16 %v146
    %v371 = vunpack.c.l.b16 %v147
    %v372 = vunpack.c.l.b16 %v148
    %v373 = vunpack.c.l.b16 %v149
    %v374 = vunpack.c.l.b16 %v150
    %v375 = vunpack.c.l.b16 %v151
    %v376 = vunpack.c.l.b16 %v152
    %v377 = vunpack.c.l.b16 %v153
    %v378 = vunpack.c.l.b16 %v154
    %v379 = vunpack.c.l.b16 %v155
    %v380 = vunpack.c.l.b16 %v156
    %v381 = vunpack.c.l.b16 %v157
    %v382 = vunpack.c.l.b16 %v158
    %v383 = vunpack.c.l.b16 %v159
    %v384 = vunpack.c.l.b16 %v160
    %v385 = vunpack.c.l.b16 %v161
    %v386 = vunpack.c.l.b16 %v162
    %v387 = vunpack.c.l.b16 %v163
    %v388 = vunpack.c.l.b16 %v164
    %v389 = vunpack.c.l.b16 %v165
    %v390 = vunpack.c.l.b16 %v166
    %v391 = vunpack.c.l.b16 %v167
    %v392 = vunpack.c.l.b16 %v168
    %v393 = vunpack.c.l.b16 %v169
    %v394 = vunpack.c.l.b16 %v170
    %v395 = vunpack.c.l.b16 %v171
    %v396 = vunpack.c.l.b16 %v172
    %v397 = vunpack.c.l.b16 %v173
    %v398 = vunpack.c.l.b16 %v174
    %v399 = vunpack.c.l.b16 %v175
    %v400 = vunpack.c.l.b16 %v176
    %v401 = vunpack.c.l.b16 %v177
    %v402 = vunpack.c.l.b16 %v178
    %v403 = vunpack.c.l.b16 %v179
    %v404 = vunpack.c.l.b16 %v180
    %v405 = vunpack.c.l.b16 %v181
    %v406 = vunpack.c.l.b16 %v182
    %v407 = vunpack.c.l.b16 %v183
    %v408 = vunpack.c.l.b16 %v184
    %v409 = vunpack.c.l.b16 %v185
    %v410 = vunpack.c.l.b16 %v186
    %v411 = vunpack.c.l.b16 %v187
    %v412 = vunpack.c.l.b16 %v188
    %v413 = vunpack.c.l.b16 %v189
    %v414 = vpack.c.b16 %v319, %v318
    %v415 = vpack.c.b16 %v321, %v320
    %v416 = vpack.c.b16 %v323, %v322
    %v417 = vpack.c.b16 %v325, %v324
    %v418 = vpack.c.b16 %v327, %v326
    %v419 = vpack.c.b16 %v329, %v328
    %v420 = vpack.c.b16 %v331, %v330
    %v421 = vpack.c.b16 %v333, %v332
    %v422 = vpack.c.b16 %v335, %v334
    %v423 = vpack.c.b16 %v337, %v336
    %v424 = vpack.c.b16 %v339, %v338
    %v425 = vpack.c.b16 %v341, %v340
    %v426 = vpack.c.b16 %v343, %v342
    %v427 = vpack.c.b16 %v345, %v344
    %v428 = vpack.c.b16 %v347, %v346
    %v429 = vpack.c.b16 %v349, %v348
    %v430 = vpack.c.b16 %v351, %v350
    %v431 = vpack.c.b16 %v353, %v352
    %v432 = vpack.c.b16 %v355, %v354
    %v433 = vpack.c.b16 %v357, %v356
    %v434 = vpack.c.b16 %v359, %v358
    %v435 = vpack.c.b16 %v361, %v360
    %v436 = vpack.c.b16 %v363, %v362
    %v437 = vpack.c.b16 %v365, %v364
    %v438 = vpack.c.b16 %v367, %v366
    %v439 = vpack.c.b16 %v369, %v368
    %v440 = vpack.c.b16 %v371, %v370
    %v441 = vpack.c.b16 %v373, %v372
    %v442 = vpack.c.b16 %v375, %v374
    %v443 = vpack.c.b16 %v377, %v376
    %v444 = vpack.c.b16 %v379, %v378
    %v445 = vpack.c.b16 %v381, %v380
    %v446 = vpack.c.b16 %v383, %v382
    %v447 = vpack.c.b16 %v385, %v384
    %v448 = vpack.c.b16 %v387, %v386
    %v449 = vpack.c.b16 %v389, %v388
    %v450 = vpack.c.b16 %v391, %v390
    %v451 = vpack.c.b16 %v393, %v392
    %v452 = vpack.c.b16 %v395, %v394
    %v453 = vpack.c.b16 %v397, %v396
    %v454 = vpack.c.b16 %v399, %v398
    %v455 = vpack.c.b16 %v401, %v400
    %v456 = vpack.c.b16 %v403, %v402
    %v457 = vpack.c.b16 %v405, %v404
    %v458 = vpack.c.b16 %v407, %v406
    %v459 = vpack.c.b16 %v409, %v408
    %v460 = vpack.c.b16 %v411, %v410
    %v461 = vpack.c.b16 %v413, %v412
    %510 = vmatpush.bf16.msra.mxu0 %v421
    %511 = vmatpush.bf16.msra.mxu0 %v420
    %512 = vmatpush.bf16.msra.mxu0 %v419
    %513 = vmatpush.bf16.msra.mxu0 %v418
    %514 = vmatpush.bf16.msra.mxu0 %v417
    %515 = vmatpush.bf16.msra.mxu0 %v416
    %516 = vmatpush.bf16.msra.mxu0 %v415
    %517 = vmatpush.bf16.msra.mxu0 %v414
    %518 = vmatmul.bf16.gmra.mxu0 %v210
    %v519 = vpop.f32.mrf.mxu0
    %v520 = vadd.f32 %v190, %v519
    %v521 = vpop.f32.mrf.mxu0
    %v522 = vadd.f32 %v191, %v521
    %523 = vdwg.mxu0
    %524 = vmatpush.bf16.msra.mxu0 %v429
    %525 = vmatpush.bf16.msra.mxu0 %v428
    %526 = vmatpush.bf16.msra.mxu0 %v427
    %527 = vmatpush.bf16.msra.mxu0 %v426
    %528 = vmatpush.bf16.msra.mxu0 %v425
    %529 = vmatpush.bf16.msra.mxu0 %v424
    %530 = vmatpush.bf16.msra.mxu0 %v423
    %531 = vmatpush.bf16.msra.mxu0 %v422
    %532 = vmatmul.bf16.gmra.mxu0 %v211
    %v533 = vpop.f32.mrf.mxu0
    %v534 = vadd.f32 %v520, %v533
    %v535 = vpop.f32.mrf.mxu0
    %v536 = vadd.f32 %v522, %v535
    %537 = vdwg.mxu0
    %538 = vmatpush.bf16.msra.mxu0 %v437
    %539 = vmatpush.bf16.msra.mxu0 %v436
    %540 = vmatpush.bf16.msra.mxu0 %v435
    %541 = vmatpush.bf16.msra.mxu0 %v434
    %542 = vmatpush.bf16.msra.mxu0 %v433
    %543 = vmatpush.bf16.msra.mxu0 %v432
    %544 = vmatpush.bf16.msra.mxu0 %v431
    %545 = vmatpush.bf16.msra.mxu0 %v430
    %546 = vmatmul.bf16.gmra.mxu0 %v212
    %v547 = vpop.f32.mrf.mxu0
    %v548 = vadd.f32 %v534, %v547
    %v549 = vpop.f32.mrf.mxu0
    %v550 = vadd.f32 %v536, %v549
    %551 = vdwg.mxu0
    %552 = vmatpush.bf16.msra.mxu0 %v445
    %553 = vmatpush.bf16.msra.mxu0 %v444
    %554 = vmatpush.bf16.msra.mxu0 %v443
    %555 = vmatpush.bf16.msra.mxu0 %v442
    %556 = vmatpush.bf16.msra.mxu0 %v441
    %557 = vmatpush.bf16.msra.mxu0 %v440
    %558 = vmatpush.bf16.msra.mxu0 %v439
    %559 = vmatpush.bf16.msra.mxu0 %v438
    %560 = vmatmul.bf16.gmra.mxu0 %v213
    %v561 = vpop.f32.mrf.mxu0
    %v562 = vadd.f32 %v548, %v561
    %v563 = vpop.f32.mrf.mxu0
    %v564 = vadd.f32 %v550, %v563
    %565 = vdwg.mxu0
    %566 = vmatpush.bf16.msra.mxu0 %v453
    %567 = vmatpush.bf16.msra.mxu0 %v452
    %568 = vmatpush.bf16.msra.mxu0 %v451
    %569 = vmatpush.bf16.msra.mxu0 %v450
    %570 = vmatpush.bf16.msra.mxu0 %v449
    %571 = vmatpush.bf16.msra.mxu0 %v448
    %572 = vmatpush.bf16.msra.mxu0 %v447
    %573 = vmatpush.bf16.msra.mxu0 %v446
    %574 = vmatmul.bf16.gmra.mxu0 %v214
    %v575 = vpop.f32.mrf.mxu0
    %v576 = vadd.f32 %v562, %v575
    %v577 = vpop.f32.mrf.mxu0
    %v578 = vadd.f32 %v564, %v577
    %579 = vdwg.mxu0
    %580 = vmatpush.bf16.msra.mxu0 %v461
    %581 = vmatpush.bf16.msra.mxu0 %v460
    %582 = vmatpush.bf16.msra.mxu0 %v459
    %583 = vmatpush.bf16.msra.mxu0 %v458
    %584 = vmatpush.bf16.msra.mxu0 %v457
    %585 = vmatpush.bf16.msra.mxu0 %v456
    %586 = vmatpush.bf16.msra.mxu0 %v455
    %587 = vmatpush.bf16.msra.mxu0 %v454
    %588 = vmatmul.bf16.gmra.mxu0 %v215
    %v589 = vpop.f32.mrf.mxu0
    %v590 = vadd.f32 %v576, %v589
    %v591 = vpop.f32.mrf.mxu0
    %v592 = vadd.f32 %v578, %v591
    %593 = vdwg.mxu0
    %v594 = vld [vmem:[%s3] sm:$0x1]
    %v595 = vld [vmem:[%s4] sm:$0x1]
    %vm596 = vcmask 523264
    %v597 = vsel %vm596, %v590, 0.0
    %598 = vadd.xlane.f32.xlu0 %v597
    %v599 = vpop.xlane.xlu0 %598
    %vm600 = vcmask 517120
    %v601 = vsel %vm600, %v592, 0.0
    %602 = vadd.xlane.f32.xlu0 %v601
    %v603 = vpop.xlane.xlu0 %602
    %v604 = vrcp.pop 64.0
    %v605 = vmul.f32 64.0, %v604
    %v606 = vsub.f32 1.0, %v605
    %v607 = vmul.f32 %v604, %v606
    %v608 = vadd.f32 %v604, %v607
    %vm609 = vweird.f32 %v604
    %v610 = vsel %vm609, %v604, %v608
    %v611 = vmul.f32 %v599, %v610
    %v612 = vmul.f32 %v603, %v610
    %v613 = vsub.f32 %v590, %v611
    %v614 = vsub.f32 %v592, %v612
    %v615 = vmul.f32 %v613, %v613
    %v616 = vmul.f32 %v614, %v614
    %v617 = vsel %vm596, %v615, 0.0
    %618 = vadd.xlane.f32.xlu0 %v617
    %v619 = vpop.xlane.xlu0 %618
    %v620 = vsel %vm600, %v616, 0.0
    %621 = vadd.xlane.f32.xlu0 %v620
    %v622 = vpop.xlane.xlu0 %621
    %v623 = vmul.f32 %v619, %v610
    %v624 = vmul.f32 %v622, %v610
    %v625 = vadd.f32 %v623, 1e-05
    %v626 = vadd.f32 %v624, 1e-05
    %v627 = vrsqrt.pop %v625
    %v628 = vmul.f32 %v627, %v625
    %v629 = vmul.f32 %v628, %v627
    %v630 = vmul.f32 0.5, %v629
    %v631 = vsub.f32 1.5, %v630
    %v632 = vmul.f32 %v627, %v631
    %vm633 = vweird.f32 %v625
    %vm634 = vweird.f32 %v627
    %vm635 = vmor %vm633, %vm634
    %v636 = vsel %vm635, %v627, %v632
    %v637 = vrsqrt.pop %v626
    %v638 = vmul.f32 %v637, %v626
    %v639 = vmul.f32 %v638, %v637
    %v640 = vmul.f32 0.5, %v639
    %v641 = vsub.f32 1.5, %v640
    %v642 = vmul.f32 %v637, %v641
    %vm643 = vweird.f32 %v626
    %vm644 = vweird.f32 %v637
    %vm645 = vmor %vm643, %vm644
    %v646 = vsel %vm645, %v637, %v642
    %v647 = vmul.f32 %v613, %v636
    %v648 = vmul.f32 %v614, %v646
    %v650 = vperm.slane %v594, 0
    %v652 = vmul.f32 %v647, %v650
    %v653 = vmul.f32 %v648, %v650
    %v655 = vperm.slane %v595, 0
    %v657 = vadd.f32 %v652, %v655
    %v658 = vadd.f32 %v653, %v655
    %v659 = vld [vmem:[%s5] sm:$0xff]
    %v660 = vld [vmem:[%s5 + $0x8] sm:$0x3]
    %v661 = vld [vmem:[%s7] sm:$0x1]
    %v662 = vld [vmem:[%s8] sm:$0x1]
    %v663 = vsel %vm596, %v657, 0.0
    %664 = vadd.xlane.f32.xlu0 %v663
    %v665 = vpop.xlane.xlu0 %664
    %v666 = vsel %vm600, %v658, 0.0
    %667 = vadd.xlane.f32.xlu0 %v666
    %v668 = vpop.xlane.xlu0 %667
    %v669 = vmul.f32 %v665, %v610
    %v670 = vmul.f32 %v668, %v610
    %v671 = vsub.f32 %v657, %v669
    %v672 = vsub.f32 %v658, %v670
    %v673 = vmul.f32 %v671, %v671
    %v674 = vmul.f32 %v672, %v672
    %v675 = vsel %vm596, %v673, 0.0
    %676 = vadd.xlane.f32.xlu0 %v675
    %v677 = vpop.xlane.xlu0 %676
    %v678 = vsel %vm600, %v674, 0.0
    %679 = vadd.xlane.f32.xlu0 %v678
    %v680 = vpop.xlane.xlu0 %679
    %v681 = vmul.f32 %v677, %v610
    %v682 = vmul.f32 %v680, %v610
    %v683 = vadd.f32 %v681, 1e-05
    %v684 = vadd.f32 %v682, 1e-05
    %v685 = vrsqrt.pop %v683
    %v686 = vmul.f32 %v685, %v683
    %v687 = vmul.f32 %v686, %v685
    %v688 = vmul.f32 0.5, %v687
    %v689 = vsub.f32 1.5, %v688
    %v690 = vmul.f32 %v685, %v689
    %vm691 = vweird.f32 %v683
    %vm692 = vweird.f32 %v685
    %vm693 = vmor %vm691, %vm692
    %v694 = vsel %vm693, %v685, %v690
    %v695 = vrsqrt.pop %v684
    %v696 = vmul.f32 %v695, %v684
    %v697 = vmul.f32 %v696, %v695
    %v698 = vmul.f32 0.5, %v697
    %v699 = vsub.f32 1.5, %v698
    %v700 = vmul.f32 %v695, %v699
    %vm701 = vweird.f32 %v684
    %vm702 = vweird.f32 %v695
    %vm703 = vmor %vm701, %vm702
    %v704 = vsel %vm703, %v695, %v700
    %v705 = vmul.f32 %v671, %v694
    %v706 = vmul.f32 %v672, %v704
    %v708 = vperm.slane %v661, 0
    %v710 = vmul.f32 %v705, %v708
    %v711 = vmul.f32 %v706, %v708
    %v713 = vperm.slane %v662, 0
    %v715 = vadd.f32 %v710, %v713
    %v716 = vadd.f32 %v711, %v713
    %v717 = vpack.c.bf16 %v716, %v715
    %v718 = vld [vmem:[%s9] sm:$0xf]
    %v719 = vld [vmem:[%s9 + $0x4] sm:$0xf]
    %v720 = vld [vmem:[%s9 + $0x8] sm:$0xf]
    %v721 = vld [vmem:[%s9 + $0xc] sm:$0xf]
    %v722 = vld [vmem:[%s9 + $0x10] sm:$0xf]
    %v723 = vld [vmem:[%s9 + $0x14] sm:$0xf]
    %v724 = vld [vmem:[%s9 + $0x18] sm:$0xf]
    %v725 = vld [vmem:[%s9 + $0x1c] sm:$0xf]
    %v726 = vld [vmem:[%s10] sm:$0x1]
    %v728 = vperm.slane %v726, 0
    %v738 = vunpack.c.l.b16 %v718
    %v739 = vunpack.c.l.b16 %v719
    %v740 = vunpack.c.l.b16 %v720
    %v741 = vunpack.c.l.b16 %v721
    %v742 = vunpack.c.l.b16 %v722
    %v743 = vunpack.c.l.b16 %v723
    %v744 = vunpack.c.l.b16 %v724
    %v745 = vunpack.c.l.b16 %v725
    %v746 = vpack.c.b16 %v739, %v738
    %v747 = vpack.c.b16 %v741, %v740
    %v748 = vpack.c.b16 %v743, %v742
    %v749 = vpack.c.b16 %v745, %v744
    %v755 = vsel %vm596, %v717, 0
    %757 = vmatpush.bf16.msra.mxu0 0
    %758 = vmatpush.bf16.msra.mxu0 0
    %759 = vmatpush.bf16.msra.mxu0 0
    %760 = vmatpush.bf16.msra.mxu0 0
    %761 = vmatpush.bf16.msra.mxu0 %v749
    %762 = vmatpush.bf16.msra.mxu0 %v748
    %763 = vmatpush.bf16.msra.mxu0 %v747
    %764 = vmatpush.bf16.msra.mxu0 %v746
    %765 = vmatmul.bf16.gmra.mxu0 %v755
    %v766 = vpop.f32.mrf.mxu0
    %v767 = vadd.f32 %v728, %v766
    %v768 = vpop.f32.mrf.mxu0
    %v769 = vadd.f32 %v728, %v768
    %770 = vdwg.mxu0
    %v771 = vld [vmem:[%s11] sm:$0xf]
    %v772 = vld [vmem:[%s11 + $0x4] sm:$0xf]
    %v773 = vld [vmem:[%s11 + $0x8] sm:$0xf]
    %v774 = vld [vmem:[%s11 + $0xc] sm:$0xf]
    %v775 = vld [vmem:[%s11 + $0x10] sm:$0xf]
    %v776 = vld [vmem:[%s11 + $0x14] sm:$0xf]
    %v777 = vld [vmem:[%s11 + $0x18] sm:$0xf]
    %v778 = vld [vmem:[%s11 + $0x1c] sm:$0xf]
    %v779 = vld [vmem:[%s12] sm:$0x1]
    %v781 = vperm.slane %v779, 0
    %v791 = vunpack.c.l.b16 %v771
    %v792 = vunpack.c.l.b16 %v772
    %v793 = vunpack.c.l.b16 %v773
    %v794 = vunpack.c.l.b16 %v774
    %v795 = vunpack.c.l.b16 %v775
    %v796 = vunpack.c.l.b16 %v776
    %v797 = vunpack.c.l.b16 %v777
    %v798 = vunpack.c.l.b16 %v778
    %v799 = vpack.c.b16 %v792, %v791
    %v800 = vpack.c.b16 %v794, %v793
    %v801 = vpack.c.b16 %v796, %v795
    %v802 = vpack.c.b16 %v798, %v797
    %807 = vmatpush.bf16.msra.mxu0 0
    %808 = vmatpush.bf16.msra.mxu0 0
    %809 = vmatpush.bf16.msra.mxu0 0
    %810 = vmatpush.bf16.msra.mxu0 0
    %811 = vmatpush.bf16.msra.mxu0 %v802
    %812 = vmatpush.bf16.msra.mxu0 %v801
    %813 = vmatpush.bf16.msra.mxu0 %v800
    %814 = vmatpush.bf16.msra.mxu0 %v799
    %815 = vmatmul.bf16.gmra.mxu0 %v755
    %v816 = vpop.f32.mrf.mxu0
    %v817 = vadd.f32 %v781, %v816
    %v818 = vpop.f32.mrf.mxu0
    %v819 = vadd.f32 %v781, %v818
    %820 = vdwg.mxu0
    %v821 = vld [vmem:[%s13] sm:$0xf]
    %v822 = vld [vmem:[%s13 + $0x4] sm:$0xf]
    %v823 = vld [vmem:[%s13 + $0x8] sm:$0xf]
    %v824 = vld [vmem:[%s13 + $0xc] sm:$0xf]
    %v825 = vld [vmem:[%s13 + $0x10] sm:$0xf]
    %v826 = vld [vmem:[%s13 + $0x14] sm:$0xf]
    %v827 = vld [vmem:[%s13 + $0x18] sm:$0xf]
    %v828 = vld [vmem:[%s13 + $0x1c] sm:$0xf]
    %v829 = vld [vmem:[%s14] sm:$0x1]
    %v831 = vperm.slane %v829, 0
    %v841 = vunpack.c.l.b16 %v821
    %v842 = vunpack.c.l.b16 %v822
    %v843 = vunpack.c.l.b16 %v823
    %v844 = vunpack.c.l.b16 %v824
    %v845 = vunpack.c.l.b16 %v825
    %v846 = vunpack.c.l.b16 %v826
    %v847 = vunpack.c.l.b16 %v827
    %v848 = vunpack.c.l.b16 %v828
    %v849 = vpack.c.b16 %v842, %v841
    %v850 = vpack.c.b16 %v844, %v843
    %v851 = vpack.c.b16 %v846, %v845
    %v852 = vpack.c.b16 %v848, %v847
    %857 = vmatpush.bf16.msra.mxu0 0
    %858 = vmatpush.bf16.msra.mxu0 0
    %859 = vmatpush.bf16.msra.mxu0 0
    %860 = vmatpush.bf16.msra.mxu0 0
    %861 = vmatpush.bf16.msra.mxu0 %v852
    %862 = vmatpush.bf16.msra.mxu0 %v851
    %863 = vmatpush.bf16.msra.mxu0 %v850
    %864 = vmatpush.bf16.msra.mxu0 %v849
    %865 = vmatmul.bf16.gmra.mxu0 %v755
    %v866 = vpop.f32.mrf.mxu0
    %v867 = vadd.f32 %v831, %v866
    %v868 = vpop.f32.mrf.mxu0
    %v869 = vadd.f32 %v831, %v868
    %870 = vdwg.mxu0
    %v871 = vpack.c.bf16 %v769, %v767
    %v872 = vpack.c.bf16 %v819, %v817
    %vm873 = vcmask 261120
    %v875 = vsel %vm873, %v871, 0
    %v878 = vsel %vm873, %v872, 0
    %880 = vmatpush.bf16.xpose.msra.mxu0 0
    %881 = vmatpush.bf16.xpose.msra.mxu0 0
    %882 = vmatpush.bf16.xpose.msra.mxu0 0
    %883 = vmatpush.bf16.xpose.msra.mxu0 0
    %884 = vmatpush.bf16.xpose.msra.mxu0 0
    %885 = vmatpush.bf16.xpose.msra.mxu0 0
    %886 = vmatpush.bf16.xpose.msra.mxu0 0
    %887 = vmatpush.bf16.xpose.msra.mxu0 %v878
    %888 = vmatmul.bf16.gmra.mxu0 %v875
    %v889 = vpop.f32.mrf.mxu0
    %v890 = vadd.f32 0.0, %v889
    %v891 = vpop.f32.mrf.mxu0
    %v892 = vadd.f32 0.0, %v891
    %893 = vdwg.mxu0
    %v894 = vmul.f32 %v890, 0.17677669
    %v895 = vmul.f32 %v892, 0.17677669
    %v896 = vadd.f32 %v894, %v659
    %v897 = vadd.f32 %v895, %v660
    %vm898 = vcmask 80896
    %v899 = vsel %vm898, %v896, -inf
    %900 = vmax.xlane.f32.xlu0 %v899
    %v901 = vpop.xlane.xlu0 %900
    %vm902 = vcmask 74752
    %v903 = vsel %vm902, %v897, -inf
    %904 = vmax.xlane.f32.xlu0 %v903
    %v905 = vpop.xlane.xlu0 %904
    %v906 = vsub.f32 %v896, %v901
    %v907 = vsub.f32 %v897, %v905
    %v908 = vmul.f32 %v906, 1.442695
    %v909 = vpow.pop %v908
    %v910 = vmul.f32 %v907, 1.442695
    %v911 = vpow.pop %v910
    %v912 = vsel %vm898, %v909, 0.0
    %913 = vadd.xlane.f32.xlu0 %v912
    %v914 = vpop.xlane.xlu0 %913
    %v915 = vsel %vm902, %v911, 0.0
    %916 = vadd.xlane.f32.xlu0 %v915
    %v917 = vpop.xlane.xlu0 %916
    %v918 = vrcp.pop %v914
    %v919 = vrcp.pop %v917
    %v920 = vmul.f32 %v909, %v918
    %v921 = vmul.f32 %v911, %v919
    %v922 = vpack.c.bf16 %v921, %v920
    %v923 = vpack.c.bf16 %v869, %v867
    %v925 = vsel %vm898, %v922, 0
    %vm927 = vcmask 1044480
    %v929 = vsel %vm927, %v923, 0
    %931 = vmatpush.bf16.msra.mxu0 0
    %932 = vmatpush.bf16.msra.mxu0 0
    %933 = vmatpush.bf16.msra.mxu0 0
    %934 = vmatpush.bf16.msra.mxu0 0
    %935 = vmatpush.bf16.msra.mxu0 0
    %936 = vmatpush.bf16.msra.mxu0 0
    %937 = vmatpush.bf16.msra.mxu0 0
    %938 = vmatpush.bf16.msra.mxu0 %v929
    %939 = vmatmul.bf16.gmra.mxu0 %v925
    %v940 = vpop.f32.mrf.mxu0
    %v941 = vadd.f32 0.0, %v940
    %v942 = vpop.f32.mrf.mxu0
    %v943 = vadd.f32 0.0, %v942
    %944 = vdwg.mxu0
    %v945 = vpack.c.bf16 %v943, %v941
    %v946 = vld [vmem:[%s15] sm:$0xf]
    %v947 = vld [vmem:[%s15 + $0x4] sm:$0xf]
    %v948 = vld [vmem:[%s15 + $0x8] sm:$0xf]
    %v949 = vld [vmem:[%s15 + $0xc] sm:$0xf]
    %s950 = scalar_lea.vmem %s9, 32
    %v951 = vld [vmem:[%s950] sm:$0xf]
    %v952 = vld [vmem:[%s950 + $0x4] sm:$0xf]
    %v953 = vld [vmem:[%s950 + $0x8] sm:$0xf]
    %v954 = vld [vmem:[%s950 + $0xc] sm:$0xf]
    %v955 = vld [vmem:[%s950 + $0x10] sm:$0xf]
    %v956 = vld [vmem:[%s950 + $0x14] sm:$0xf]
    %v957 = vld [vmem:[%s950 + $0x18] sm:$0xf]
    %v958 = vld [vmem:[%s950 + $0x1c] sm:$0xf]
    %s959 = scalar_lea.vmem %s10, 1
    %v960 = vld [vmem:[%s959] sm:$0x1]
    %v962 = vperm.slane %v960, 0
    %v972 = vunpack.c.l.b16 %v951
    %v973 = vunpack.c.l.b16 %v952
    %v974 = vunpack.c.l.b16 %v953
    %v975 = vunpack.c.l.b16 %v954
    %v976 = vunpack.c.l.b16 %v955
    %v977 = vunpack.c.l.b16 %v956
    %v978 = vunpack.c.l.b16 %v957
    %v979 = vunpack.c.l.b16 %v958
    %v980 = vpack.c.b16 %v973, %v972
    %v981 = vpack.c.b16 %v975, %v974
    %v982 = vpack.c.b16 %v977, %v976
    %v983 = vpack.c.b16 %v979, %v978
    %988 = vmatpush.bf16.msra.mxu0 0
    %989 = vmatpush.bf16.msra.mxu0 0
    %990 = vmatpush.bf16.msra.mxu0 0
    %991 = vmatpush.bf16.msra.mxu0 0
    %992 = vmatpush.bf16.msra.mxu0 %v983
    %993 = vmatpush.bf16.msra.mxu0 %v982
    %994 = vmatpush.bf16.msra.mxu0 %v981
    %995 = vmatpush.bf16.msra.mxu0 %v980
    %996 = vmatmul.bf16.gmra.mxu0 %v755
    %v997 = vpop.f32.mrf.mxu0
    %v998 = vadd.f32 %v962, %v997
    %v999 = vpop.f32.mrf.mxu0
    %v1000 = vadd.f32 %v962, %v999
    %1001 = vdwg.mxu0
    %s1002 = scalar_lea.vmem %s11, 32
    %v1003 = vld [vmem:[%s1002] sm:$0xf]
    %v1004 = vld [vmem:[%s1002 + $0x4] sm:$0xf]
    %v1005 = vld [vmem:[%s1002 + $0x8] sm:$0xf]
    %v1006 = vld [vmem:[%s1002 + $0xc] sm:$0xf]
    %v1007 = vld [vmem:[%s1002 + $0x10] sm:$0xf]
    %v1008 = vld [vmem:[%s1002 + $0x14] sm:$0xf]
    %v1009 = vld [vmem:[%s1002 + $0x18] sm:$0xf]
    %v1010 = vld [vmem:[%s1002 + $0x1c] sm:$0xf]
    %s1011 = scalar_lea.vmem %s12, 1
    %v1012 = vld [vmem:[%s1011] sm:$0x1]
    %v1014 = vperm.slane %v1012, 0
    %v1024 = vunpack.c.l.b16 %v1003
    %v1025 = vunpack.c.l.b16 %v1004
    %v1026 = vunpack.c.l.b16 %v1005
    %v1027 = vunpack.c.l.b16 %v1006
    %v1028 = vunpack.c.l.b16 %v1007
    %v1029 = vunpack.c.l.b16 %v1008
    %v1030 = vunpack.c.l.b16 %v1009
    %v1031 = vunpack.c.l.b16 %v1010
    %v1032 = vpack.c.b16 %v1025, %v1024
    %v1033 = vpack.c.b16 %v1027, %v1026
    %v1034 = vpack.c.b16 %v1029, %v1028
    %v1035 = vpack.c.b16 %v1031, %v1030
    %1040 = vmatpush.bf16.msra.mxu0 0
    %1041 = vmatpush.bf16.msra.mxu0 0
    %1042 = vmatpush.bf16.msra.mxu0 0
    %1043 = vmatpush.bf16.msra.mxu0 0
    %1044 = vmatpush.bf16.msra.mxu0 %v1035
    %1045 = vmatpush.bf16.msra.mxu0 %v1034
    %1046 = vmatpush.bf16.msra.mxu0 %v1033
    %1047 = vmatpush.bf16.msra.mxu0 %v1032
    %1048 = vmatmul.bf16.gmra.mxu0 %v755
    %v1049 = vpop.f32.mrf.mxu0
    %v1050 = vadd.f32 %v1014, %v1049
    %v1051 = vpop.f32.mrf.mxu0
    %v1052 = vadd.f32 %v1014, %v1051
    %1053 = vdwg.mxu0
    %s1054 = scalar_lea.vmem %s13, 32
    %v1055 = vld [vmem:[%s1054] sm:$0xf]
    %v1056 = vld [vmem:[%s1054 + $0x4] sm:$0xf]
    %v1057 = vld [vmem:[%s1054 + $0x8] sm:$0xf]
    %v1058 = vld [vmem:[%s1054 + $0xc] sm:$0xf]
    %v1059 = vld [vmem:[%s1054 + $0x10] sm:$0xf]
    %v1060 = vld [vmem:[%s1054 + $0x14] sm:$0xf]
    %v1061 = vld [vmem:[%s1054 + $0x18] sm:$0xf]
    %v1062 = vld [vmem:[%s1054 + $0x1c] sm:$0xf]
    %s1063 = scalar_lea.vmem %s14, 1
    %v1064 = vld [vmem:[%s1063] sm:$0x1]
    %v1066 = vperm.slane %v1064, 0
    %v1076 = vunpack.c.l.b16 %v1055
    %v1077 = vunpack.c.l.b16 %v1056
    %v1078 = vunpack.c.l.b16 %v1057
    %v1079 = vunpack.c.l.b16 %v1058
    %v1080 = vunpack.c.l.b16 %v1059
    %v1081 = vunpack.c.l.b16 %v1060
    %v1082 = vunpack.c.l.b16 %v1061
    %v1083 = vunpack.c.l.b16 %v1062
    %v1084 = vpack.c.b16 %v1077, %v1076
    %v1085 = vpack.c.b16 %v1079, %v1078
    %v1086 = vpack.c.b16 %v1081, %v1080
    %v1087 = vpack.c.b16 %v1083, %v1082
    %1092 = vmatpush.bf16.msra.mxu0 0
    %1093 = vmatpush.bf16.msra.mxu0 0
    %1094 = vmatpush.bf16.msra.mxu0 0
    %1095 = vmatpush.bf16.msra.mxu0 0
    %1096 = vmatpush.bf16.msra.mxu0 %v1087
    %1097 = vmatpush.bf16.msra.mxu0 %v1086
    %1098 = vmatpush.bf16.msra.mxu0 %v1085
    %1099 = vmatpush.bf16.msra.mxu0 %v1084
    %1100 = vmatmul.bf16.gmra.mxu0 %v755
    %v1101 = vpop.f32.mrf.mxu0
    %v1102 = vadd.f32 %v1066, %v1101
    %v1103 = vpop.f32.mrf.mxu0
    %v1104 = vadd.f32 %v1066, %v1103
    %1105 = vdwg.mxu0
    %v1106 = vpack.c.bf16 %v1000, %v998
    %v1107 = vpack.c.bf16 %v1052, %v1050
    %v1109 = vsel %vm873, %v1106, 0
    %v1112 = vsel %vm873, %v1107, 0
    %1114 = vmatpush.bf16.xpose.msra.mxu0 0
    %1115 = vmatpush.bf16.xpose.msra.mxu0 0
    %1116 = vmatpush.bf16.xpose.msra.mxu0 0
    %1117 = vmatpush.bf16.xpose.msra.mxu0 0
    %1118 = vmatpush.bf16.xpose.msra.mxu0 0
    %1119 = vmatpush.bf16.xpose.msra.mxu0 0
    %1120 = vmatpush.bf16.xpose.msra.mxu0 0
    %1121 = vmatpush.bf16.xpose.msra.mxu0 %v1112
    %1122 = vmatmul.bf16.gmra.mxu0 %v1109
    %v1123 = vpop.f32.mrf.mxu0
    %v1124 = vadd.f32 0.0, %v1123
    %v1125 = vpop.f32.mrf.mxu0
    %v1126 = vadd.f32 0.0, %v1125
    %1127 = vdwg.mxu0
    %v1128 = vmul.f32 %v1124, 0.17677669
    %v1129 = vmul.f32 %v1126, 0.17677669
    %v1130 = vadd.f32 %v1128, %v659
    %v1131 = vadd.f32 %v1129, %v660
    %v1132 = vsel %vm898, %v1130, -inf
    %1133 = vmax.xlane.f32.xlu0 %v1132
    %v1134 = vpop.xlane.xlu0 %1133
    %v1135 = vsel %vm902, %v1131, -inf
    %1136 = vmax.xlane.f32.xlu0 %v1135
    %v1137 = vpop.xlane.xlu0 %1136
    %v1138 = vsub.f32 %v1130, %v1134
    %v1139 = vsub.f32 %v1131, %v1137
    %v1140 = vmul.f32 %v1138, 1.442695
    %v1141 = vpow.pop %v1140
    %v1142 = vmul.f32 %v1139, 1.442695
    %v1143 = vpow.pop %v1142
    %v1144 = vsel %vm898, %v1141, 0.0
    %1145 = vadd.xlane.f32.xlu0 %v1144
    %v1146 = vpop.xlane.xlu0 %1145
    %v1147 = vsel %vm902, %v1143, 0.0
    %1148 = vadd.xlane.f32.xlu0 %v1147
    %v1149 = vpop.xlane.xlu0 %1148
    %v1150 = vrcp.pop %v1146
    %v1151 = vrcp.pop %v1149
    %v1152 = vmul.f32 %v1141, %v1150
    %v1153 = vmul.f32 %v1143, %v1151
    %v1154 = vpack.c.bf16 %v1153, %v1152
    %v1155 = vpack.c.bf16 %v1104, %v1102
    %v1157 = vsel %vm898, %v1154, 0
    %v1160 = vsel %vm927, %v1155, 0
    %1162 = vmatpush.bf16.msra.mxu0 0
    %1163 = vmatpush.bf16.msra.mxu0 0
    %1164 = vmatpush.bf16.msra.mxu0 0
    %1165 = vmatpush.bf16.msra.mxu0 0
    %1166 = vmatpush.bf16.msra.mxu0 0
    %1167 = vmatpush.bf16.msra.mxu0 0
    %1168 = vmatpush.bf16.msra.mxu0 0
    %1169 = vmatpush.bf16.msra.mxu0 %v1160
    %1170 = vmatmul.bf16.gmra.mxu0 %v1157
    %v1171 = vpop.f32.mrf.mxu0
    %v1172 = vadd.f32 0.0, %v1171
    %v1173 = vpop.f32.mrf.mxu0
    %v1174 = vadd.f32 0.0, %v1173
    %1175 = vdwg.mxu0
    %v1176 = vpack.c.bf16 %v1174, %v1172
    %s1177 = scalar_lea.vmem %s15, 16
    %v1178 = vld [vmem:[%s1177] sm:$0xf]
    %v1179 = vld [vmem:[%s1177 + $0x4] sm:$0xf]
    %v1180 = vld [vmem:[%s1177 + $0x8] sm:$0xf]
    %v1181 = vld [vmem:[%s1177 + $0xc] sm:$0xf]
    %v1186 = vunpack.c.l.b16 %v1178
    %v1187 = vunpack.c.l.b16 %v1179
    %v1188 = vunpack.c.l.b16 %v1180
    %v1189 = vunpack.c.l.b16 %v1181
    %v1190 = vpack.c.b16 %v1187, %v1186
    %v1191 = vpack.c.b16 %v1189, %v1188
    %v1195 = vsel %vm873, %v1176, 0
    %1197 = vmatpush.bf16.msra.mxu0 0
    %1198 = vmatpush.bf16.msra.mxu0 0
    %1199 = vmatpush.bf16.msra.mxu0 0
    %1200 = vmatpush.bf16.msra.mxu0 0
    %1201 = vmatpush.bf16.msra.mxu0 0
    %1202 = vmatpush.bf16.msra.mxu0 0
    %1203 = vmatpush.bf16.msra.mxu0 %v1191
    %1204 = vmatpush.bf16.msra.mxu0 %v1190
    %1205 = vmatmul.bf16.gmra.mxu0 %v1195
    %v1206 = vpop.f32.mrf.mxu0
    %v1207 = vadd.f32 0.0, %v1206
    %v1208 = vpop.f32.mrf.mxu0
    %v1209 = vadd.f32 0.0, %v1208
    %1210 = vdwg.mxu0
    %v1215 = vunpack.c.l.b16 %v946
    %v1216 = vunpack.c.l.b16 %v947
    %v1217 = vunpack.c.l.b16 %v948
    %v1218 = vunpack.c.l.b16 %v949
    %v1219 = vpack.c.b16 %v1216, %v1215
    %v1220 = vpack.c.b16 %v1218, %v1217
    %v1224 = vsel %vm873, %v945, 0
    %1226 = vmatpush.bf16.msra.mxu0 0
    %1227 = vmatpush.bf16.msra.mxu0 0
    %1228 = vmatpush.bf16.msra.mxu0 0
    %1229 = vmatpush.bf16.msra.mxu0 0
    %1230 = vmatpush.bf16.msra.mxu0 0
    %1231 = vmatpush.bf16.msra.mxu0 0
    %1232 = vmatpush.bf16.msra.mxu0 %v1220
    %1233 = vmatpush.bf16.msra.mxu0 %v1219
    %1234 = vmatmul.bf16.gmra.mxu0 %v1224
    %v1235 = vpop.f32.mrf.mxu0
    %v1236 = vadd.f32 %v1207, %v1235
    %v1237 = vpop.f32.mrf.mxu0
    %v1238 = vadd.f32 %v1209, %v1237
    %1239 = vdwg.mxu0
    %v1240 = vadd.f32 %v657, %v1236
    %v1241 = vadd.f32 %v658, %v1238
    %v1242 = vld [vmem:[%s16] sm:$0x1]
    %v1244 = vperm.slane %v1242, 0
    %v1246 = vadd.f32 %v1240, %v1244
    %v1247 = vadd.f32 %v1241, %v1244
    %v1248 = vld [vmem:[%s17] sm:$0x1]
    %v1249 = vld [vmem:[%s18] sm:$0x1]
    %v1250 = vsel %vm596, %v1246, 0.0
    %1251 = vadd.xlane.f32.xlu0 %v1250
    %v1252 = vpop.xlane.xlu0 %1251
    %v1253 = vsel %vm600, %v1247, 0.0
    %1254 = vadd.xlane.f32.xlu0 %v1253
    %v1255 = vpop.xlane.xlu0 %1254
    %v1256 = vmul.f32 %v1252, %v610
    %v1257 = vmul.f32 %v1255, %v610
    %v1258 = vsub.f32 %v1246, %v1256
    %v1259 = vsub.f32 %v1247, %v1257
    %v1260 = vmul.f32 %v1258, %v1258
    %v1261 = vmul.f32 %v1259, %v1259
    %v1262 = vsel %vm596, %v1260, 0.0
    %1263 = vadd.xlane.f32.xlu0 %v1262
    %v1264 = vpop.xlane.xlu0 %1263
    %v1265 = vsel %vm600, %v1261, 0.0
    %1266 = vadd.xlane.f32.xlu0 %v1265
    %v1267 = vpop.xlane.xlu0 %1266
    %v1268 = vmul.f32 %v1264, %v610
    %v1269 = vmul.f32 %v1267, %v610
    %v1270 = vadd.f32 %v1268, 1e-05
    %v1271 = vadd.f32 %v1269, 1e-05
    %v1272 = vrsqrt.pop %v1270
    %v1273 = vmul.f32 %v1272, %v1270
    %v1274 = vmul.f32 %v1273, %v1272
    %v1275 = vmul.f32 0.5, %v1274
    %v1276 = vsub.f32 1.5, %v1275
    %v1277 = vmul.f32 %v1272, %v1276
    %vm1278 = vweird.f32 %v1270
    %vm1279 = vweird.f32 %v1272
    %vm1280 = vmor %vm1278, %vm1279
    %v1281 = vsel %vm1280, %v1272, %v1277
    %v1282 = vrsqrt.pop %v1271
    %v1283 = vmul.f32 %v1282, %v1271
    %v1284 = vmul.f32 %v1283, %v1282
    %v1285 = vmul.f32 0.5, %v1284
    %v1286 = vsub.f32 1.5, %v1285
    %v1287 = vmul.f32 %v1282, %v1286
    %vm1288 = vweird.f32 %v1271
    %vm1289 = vweird.f32 %v1282
    %vm1290 = vmor %vm1288, %vm1289
    %v1291 = vsel %vm1290, %v1282, %v1287
    %v1292 = vmul.f32 %v1258, %v1281
    %v1293 = vmul.f32 %v1259, %v1291
    %v1295 = vperm.slane %v1248, 0
    %v1297 = vmul.f32 %v1292, %v1295
    %v1298 = vmul.f32 %v1293, %v1295
    %v1300 = vperm.slane %v1249, 0
    %v1302 = vadd.f32 %v1297, %v1300
    %v1303 = vadd.f32 %v1298, %v1300
    %v1304 = vpack.c.bf16 %v1303, %v1302
    %v1305 = vld [vmem:[%s19] sm:$0xf]
    %v1306 = vld [vmem:[%s19 + $0x4] sm:$0xf]
    %v1307 = vld [vmem:[%s19 + $0x8] sm:$0xf]
    %v1308 = vld [vmem:[%s19 + $0xc] sm:$0xf]
    %v1309 = vld [vmem:[%s19 + $0x10] sm:$0xf]
    %v1310 = vld [vmem:[%s19 + $0x14] sm:$0xf]
    %v1311 = vld [vmem:[%s19 + $0x18] sm:$0xf]
    %v1312 = vld [vmem:[%s19 + $0x1c] sm:$0xf]
    %v1313 = vld [vmem:[%s20] sm:$0x1]
    %v1315 = vperm.slane %v1313, 0
    %v1325 = vunpack.c.l.b16 %v1305
    %v1326 = vunpack.c.l.b16 %v1306
    %v1327 = vunpack.c.l.b16 %v1307
    %v1328 = vunpack.c.l.b16 %v1308
    %v1329 = vunpack.c.l.b16 %v1309
    %v1330 = vunpack.c.l.b16 %v1310
    %v1331 = vunpack.c.l.b16 %v1311
    %v1332 = vunpack.c.l.b16 %v1312
    %v1333 = vpack.c.b16 %v1326, %v1325
    %v1334 = vpack.c.b16 %v1328, %v1327
    %v1335 = vpack.c.b16 %v1330, %v1329
    %v1336 = vpack.c.b16 %v1332, %v1331
    %v1342 = vsel %vm596, %v1304, 0
    %1344 = vmatpush.bf16.msra.mxu0 0
    %1345 = vmatpush.bf16.msra.mxu0 0
    %1346 = vmatpush.bf16.msra.mxu0 0
    %1347 = vmatpush.bf16.msra.mxu0 0
    %1348 = vmatpush.bf16.msra.mxu0 %v1336
    %1349 = vmatpush.bf16.msra.mxu0 %v1335
    %1350 = vmatpush.bf16.msra.mxu0 %v1334
    %1351 = vmatpush.bf16.msra.mxu0 %v1333
    %1352 = vmatmul.bf16.gmra.mxu0 %v1342
    %v1353 = vpop.f32.mrf.mxu0
    %v1354 = vadd.f32 %v1315, %v1353
    %v1355 = vpop.f32.mrf.mxu0
    %v1356 = vadd.f32 %v1315, %v1355
    %1357 = vdwg.mxu0
    %v1358 = vmul.f32 %v1354, 1.702
    %v1359 = vmul.f32 %v1356, 1.702
    %v1360 = vxor.u32 %v1358, 2147483648
    %v1361 = vxor.u32 %v1359, 2147483648
    %v1362 = vmul.f32 %v1360, 1.442695
    %v1363 = vpow.pop %v1362
    %v1364 = vmul.f32 %v1361, 1.442695
    %v1365 = vpow.pop %v1364
    %v1366 = vadd.f32 %v1363, 1.0
    %v1367 = vadd.f32 %v1365, 1.0
    %v1368 = vrcp.pop %v1366
    %v1369 = vmul.f32 %v1366, %v1368
    %v1370 = vsub.f32 1.0, %v1369
    %v1371 = vmul.f32 %v1368, %v1370
    %v1372 = vadd.f32 %v1368, %v1371
    %vm1373 = vweird.f32 %v1366
    %vm1374 = vweird.f32 %v1368
    %vm1375 = vmor %vm1373, %vm1374
    %v1376 = vsel %vm1375, %v1368, %v1372
    %v1377 = vand.u32 2147483647, %v1366
    %vm1378 = vcmp.eq.f32.partialorder %v1377, 8.507059e+37
    %v1379 = vand.u32 %v1366, 2147483648
    %v1380 = vor.u32 1.1754944e-38, %v1379
    %v1381 = vsel %vm1378, %v1380, %v1376
    %v1382 = vmul.f32 1.0, %v1381
    %v1383 = vrcp.pop %v1367
    %v1384 = vmul.f32 %v1367, %v1383
    %v1385 = vsub.f32 1.0, %v1384
    %v1386 = vmul.f32 %v1383, %v1385
    %v1387 = vadd.f32 %v1383, %v1386
    %vm1388 = vweird.f32 %v1367
    %vm1389 = vweird.f32 %v1383
    %vm1390 = vmor %vm1388, %vm1389
    %v1391 = vsel %vm1390, %v1383, %v1387
    %v1392 = vand.u32 2147483647, %v1367
    %vm1393 = vcmp.eq.f32.partialorder %v1392, 8.507059e+37
    %v1394 = vand.u32 %v1367, 2147483648
    %v1395 = vor.u32 1.1754944e-38, %v1394
    %v1396 = vsel %vm1393, %v1395, %v1391
    %v1397 = vmul.f32 1.0, %v1396
    %v1398 = vmul.f32 %v1354, %v1382
    %v1399 = vmul.f32 %v1356, %v1397
    %v1400 = vpack.c.bf16 %v1399, %v1398
    %v1401 = vld [vmem:[%s21] sm:$0xf]
    %v1402 = vld [vmem:[%s21 + $0x4] sm:$0xf]
    %v1403 = vld [vmem:[%s21 + $0x8] sm:$0xf]
    %v1404 = vld [vmem:[%s21 + $0xc] sm:$0xf]
    %v1405 = vld [vmem:[%s21 + $0x10] sm:$0xf]
    %v1406 = vld [vmem:[%s21 + $0x14] sm:$0xf]
    %v1407 = vld [vmem:[%s21 + $0x18] sm:$0xf]
    %v1408 = vld [vmem:[%s21 + $0x1c] sm:$0xf]
    %v1409 = vld [vmem:[%s21 + $0x20] sm:$0xf]
    %v1410 = vld [vmem:[%s21 + $0x24] sm:$0xf]
    %v1411 = vld [vmem:[%s21 + $0x28] sm:$0xf]
    %v1412 = vld [vmem:[%s21 + $0x2c] sm:$0xf]
    %v1413 = vld [vmem:[%s21 + $0x30] sm:$0xf]
    %v1414 = vld [vmem:[%s21 + $0x34] sm:$0xf]
    %v1415 = vld [vmem:[%s21 + $0x38] sm:$0xf]
    %v1416 = vld [vmem:[%s21 + $0x3c] sm:$0xf]
    %v1417 = vld [vmem:[%s22] sm:$0x1]
    %v1419 = vperm.slane %v1417, 0
    %v1437 = vunpack.c.l.b16 %v1401
    %v1438 = vunpack.c.l.b16 %v1402
    %v1439 = vunpack.c.l.b16 %v1403
    %v1440 = vunpack.c.l.b16 %v1404
    %v1441 = vunpack.c.l.b16 %v1405
    %v1442 = vunpack.c.l.b16 %v1406
    %v1443 = vunpack.c.l.b16 %v1407
    %v1444 = vunpack.c.l.b16 %v1408
    %v1445 = vunpack.c.l.b16 %v1409
    %v1446 = vunpack.c.l.b16 %v1410
    %v1447 = vunpack.c.l.b16 %v1411
    %v1448 = vunpack.c.l.b16 %v1412
    %v1449 = vunpack.c.l.b16 %v1413
    %v1450 = vunpack.c.l.b16 %v1414
    %v1451 = vunpack.c.l.b16 %v1415
    %v1452 = vunpack.c.l.b16 %v1416
    %v1453 = vpack.c.b16 %v1438, %v1437
    %v1454 = vpack.c.b16 %v1440, %v1439
    %v1455 = vpack.c.b16 %v1442, %v1441
    %v1456 = vpack.c.b16 %v1444, %v1443
    %v1457 = vpack.c.b16 %v1446, %v1445
    %v1458 = vpack.c.b16 %v1448, %v1447
    %v1459 = vpack.c.b16 %v1450, %v1449
    %v1460 = vpack.c.b16 %v1452, %v1451
    %1469 = vmatpush.bf16.msra.mxu0 %v1460
    %1470 = vmatpush.bf16.msra.mxu0 %v1459
    %1471 = vmatpush.bf16.msra.mxu0 %v1458
    %1472 = vmatpush.bf16.msra.mxu0 %v1457
    %1473 = vmatpush.bf16.msra.mxu0 %v1456
    %1474 = vmatpush.bf16.msra.mxu0 %v1455
    %1475 = vmatpush.bf16.msra.mxu0 %v1454
    %1476 = vmatpush.bf16.msra.mxu0 %v1453
    %1477 = vmatmul.bf16.gmra.mxu0 %v1400
    %v1478 = vpop.f32.mrf.mxu0
    %v1479 = vadd.f32 %v1419, %v1478
    %v1480 = vpop.f32.mrf.mxu0
    %v1481 = vadd.f32 %v1419, %v1480
    %1482 = vdwg.mxu0
    %v1483 = vadd.f32 %v1246, %v1479
    %v1484 = vadd.f32 %v1247, %v1481
    %s1485 = scalar_lea.vmem %s7, 1
    %v1486 = vld [vmem:[%s1485] sm:$0x1]
    %s1487 = scalar_lea.vmem %s8, 1
    %v1488 = vld [vmem:[%s1487] sm:$0x1]
    %v1489 = vsel %vm596, %v1483, 0.0
    %1490 = vadd.xlane.f32.xlu0 %v1489
    %v1491 = vpop.xlane.xlu0 %1490
    %v1492 = vsel %vm600, %v1484, 0.0
    %1493 = vadd.xlane.f32.xlu0 %v1492
    %v1494 = vpop.xlane.xlu0 %1493
    %v1495 = vmul.f32 %v1491, %v610
    %v1496 = vmul.f32 %v1494, %v610
    %v1497 = vsub.f32 %v1483, %v1495
    %v1498 = vsub.f32 %v1484, %v1496
    %v1499 = vmul.f32 %v1497, %v1497
    %v1500 = vmul.f32 %v1498, %v1498
    %v1501 = vsel %vm596, %v1499, 0.0
    %1502 = vadd.xlane.f32.xlu0 %v1501
    %v1503 = vpop.xlane.xlu0 %1502
    %v1504 = vsel %vm600, %v1500, 0.0
    %1505 = vadd.xlane.f32.xlu0 %v1504
    %v1506 = vpop.xlane.xlu0 %1505
    %v1507 = vmul.f32 %v1503, %v610
    %v1508 = vmul.f32 %v1506, %v610
    %v1509 = vadd.f32 %v1507, 1e-05
    %v1510 = vadd.f32 %v1508, 1e-05
    %v1511 = vrsqrt.pop %v1509
    %v1512 = vmul.f32 %v1511, %v1509
    %v1513 = vmul.f32 %v1512, %v1511
    %v1514 = vmul.f32 0.5, %v1513
    %v1515 = vsub.f32 1.5, %v1514
    %v1516 = vmul.f32 %v1511, %v1515
    %vm1517 = vweird.f32 %v1509
    %vm1518 = vweird.f32 %v1511
    %vm1519 = vmor %vm1517, %vm1518
    %v1520 = vsel %vm1519, %v1511, %v1516
    %v1521 = vrsqrt.pop %v1510
    %v1522 = vmul.f32 %v1521, %v1510
    %v1523 = vmul.f32 %v1522, %v1521
    %v1524 = vmul.f32 0.5, %v1523
    %v1525 = vsub.f32 1.5, %v1524
    %v1526 = vmul.f32 %v1521, %v1525
    %vm1527 = vweird.f32 %v1510
    %vm1528 = vweird.f32 %v1521
    %vm1529 = vmor %vm1527, %vm1528
    %v1530 = vsel %vm1529, %v1521, %v1526
    %v1531 = vmul.f32 %v1497, %v1520
    %v1532 = vmul.f32 %v1498, %v1530
    %v1534 = vperm.slane %v1486, 0
    %v1536 = vmul.f32 %v1531, %v1534
    %v1537 = vmul.f32 %v1532, %v1534
    %v1539 = vperm.slane %v1488, 0
    %v1541 = vadd.f32 %v1536, %v1539
    %v1542 = vadd.f32 %v1537, %v1539
    %v1543 = vpack.c.bf16 %v1542, %v1541
    %s1544 = scalar_lea.vmem %s9, 64
    %v1545 = vld [vmem:[%s1544] sm:$0xf]
    %v1546 = vld [vmem:[%s1544 + $0x4] sm:$0xf]
    %v1547 = vld [vmem:[%s1544 + $0x8] sm:$0xf]
    %v1548 = vld [vmem:[%s1544 + $0xc] sm:$0xf]
    %v1549 = vld [vmem:[%s1544 + $0x10] sm:$0xf]
    %v1550 = vld [vmem:[%s1544 + $0x14] sm:$0xf]
    %v1551 = vld [vmem:[%s1544 + $0x18] sm:$0xf]
    %v1552 = vld [vmem:[%s1544 + $0x1c] sm:$0xf]
    %s1553 = scalar_lea.vmem %s10, 2
    %v1554 = vld [vmem:[%s1553] sm:$0x1]
    %v1556 = vperm.slane %v1554, 0
    %v1566 = vunpack.c.l.b16 %v1545
    %v1567 = vunpack.c.l.b16 %v1546
    %v1568 = vunpack.c.l.b16 %v1547
    %v1569 = vunpack.c.l.b16 %v1548
    %v1570 = vunpack.c.l.b16 %v1549
    %v1571 = vunpack.c.l.b16 %v1550
    %v1572 = vunpack.c.l.b16 %v1551
    %v1573 = vunpack.c.l.b16 %v1552
    %v1574 = vpack.c.b16 %v1567, %v1566
    %v1575 = vpack.c.b16 %v1569, %v1568
    %v1576 = vpack.c.b16 %v1571, %v1570
    %v1577 = vpack.c.b16 %v1573, %v1572
    %v1583 = vsel %vm596, %v1543, 0
    %1585 = vmatpush.bf16.msra.mxu0 0
    %1586 = vmatpush.bf16.msra.mxu0 0
    %1587 = vmatpush.bf16.msra.mxu0 0
    %1588 = vmatpush.bf16.msra.mxu0 0
    %1589 = vmatpush.bf16.msra.mxu0 %v1577
    %1590 = vmatpush.bf16.msra.mxu0 %v1576
    %1591 = vmatpush.bf16.msra.mxu0 %v1575
    %1592 = vmatpush.bf16.msra.mxu0 %v1574
    %1593 = vmatmul.bf16.gmra.mxu0 %v1583
    %v1594 = vpop.f32.mrf.mxu0
    %v1595 = vadd.f32 %v1556, %v1594
    %v1596 = vpop.f32.mrf.mxu0
    %v1597 = vadd.f32 %v1556, %v1596
    %1598 = vdwg.mxu0
    %s1599 = scalar_lea.vmem %s11, 64
    %v1600 = vld [vmem:[%s1599] sm:$0xf]
    %v1601 = vld [vmem:[%s1599 + $0x4] sm:$0xf]
    %v1602 = vld [vmem:[%s1599 + $0x8] sm:$0xf]
    %v1603 = vld [vmem:[%s1599 + $0xc] sm:$0xf]
    %v1604 = vld [vmem:[%s1599 + $0x10] sm:$0xf]
    %v1605 = vld [vmem:[%s1599 + $0x14] sm:$0xf]
    %v1606 = vld [vmem:[%s1599 + $0x18] sm:$0xf]
    %v1607 = vld [vmem:[%s1599 + $0x1c] sm:$0xf]
    %s1608 = scalar_lea.vmem %s12, 2
    %v1609 = vld [vmem:[%s1608] sm:$0x1]
    %v1611 = vperm.slane %v1609, 0
    %v1621 = vunpack.c.l.b16 %v1600
    %v1622 = vunpack.c.l.b16 %v1601
    %v1623 = vunpack.c.l.b16 %v1602
    %v1624 = vunpack.c.l.b16 %v1603
    %v1625 = vunpack.c.l.b16 %v1604
    %v1626 = vunpack.c.l.b16 %v1605
    %v1627 = vunpack.c.l.b16 %v1606
    %v1628 = vunpack.c.l.b16 %v1607
    %v1629 = vpack.c.b16 %v1622, %v1621
    %v1630 = vpack.c.b16 %v1624, %v1623
    %v1631 = vpack.c.b16 %v1626, %v1625
    %v1632 = vpack.c.b16 %v1628, %v1627
    %1637 = vmatpush.bf16.msra.mxu0 0
    %1638 = vmatpush.bf16.msra.mxu0 0
    %1639 = vmatpush.bf16.msra.mxu0 0
    %1640 = vmatpush.bf16.msra.mxu0 0
    %1641 = vmatpush.bf16.msra.mxu0 %v1632
    %1642 = vmatpush.bf16.msra.mxu0 %v1631
    %1643 = vmatpush.bf16.msra.mxu0 %v1630
    %1644 = vmatpush.bf16.msra.mxu0 %v1629
    %1645 = vmatmul.bf16.gmra.mxu0 %v1583
    %v1646 = vpop.f32.mrf.mxu0
    %v1647 = vadd.f32 %v1611, %v1646
    %v1648 = vpop.f32.mrf.mxu0
    %v1649 = vadd.f32 %v1611, %v1648
    %1650 = vdwg.mxu0
    %s1651 = scalar_lea.vmem %s13, 64
    %v1652 = vld [vmem:[%s1651] sm:$0xf]
    %v1653 = vld [vmem:[%s1651 + $0x4] sm:$0xf]
    %v1654 = vld [vmem:[%s1651 + $0x8] sm:$0xf]
    %v1655 = vld [vmem:[%s1651 + $0xc] sm:$0xf]
    %v1656 = vld [vmem:[%s1651 + $0x10] sm:$0xf]
    %v1657 = vld [vmem:[%s1651 + $0x14] sm:$0xf]
    %v1658 = vld [vmem:[%s1651 + $0x18] sm:$0xf]
    %v1659 = vld [vmem:[%s1651 + $0x1c] sm:$0xf]
    %s1660 = scalar_lea.vmem %s14, 2
    %v1661 = vld [vmem:[%s1660] sm:$0x1]
    %v1663 = vperm.slane %v1661, 0
    %v1673 = vunpack.c.l.b16 %v1652
    %v1674 = vunpack.c.l.b16 %v1653
    %v1675 = vunpack.c.l.b16 %v1654
    %v1676 = vunpack.c.l.b16 %v1655
    %v1677 = vunpack.c.l.b16 %v1656
    %v1678 = vunpack.c.l.b16 %v1657
    %v1679 = vunpack.c.l.b16 %v1658
    %v1680 = vunpack.c.l.b16 %v1659
    %v1681 = vpack.c.b16 %v1674, %v1673
    %v1682 = vpack.c.b16 %v1676, %v1675
    %v1683 = vpack.c.b16 %v1678, %v1677
    %v1684 = vpack.c.b16 %v1680, %v1679
    %1689 = vmatpush.bf16.msra.mxu0 0
    %1690 = vmatpush.bf16.msra.mxu0 0
    %1691 = vmatpush.bf16.msra.mxu0 0
    %1692 = vmatpush.bf16.msra.mxu0 0
    %1693 = vmatpush.bf16.msra.mxu0 %v1684
    %1694 = vmatpush.bf16.msra.mxu0 %v1683
    %1695 = vmatpush.bf16.msra.mxu0 %v1682
    %1696 = vmatpush.bf16.msra.mxu0 %v1681
    %1697 = vmatmul.bf16.gmra.mxu0 %v1583
    %v1698 = vpop.f32.mrf.mxu0
    %v1699 = vadd.f32 %v1663, %v1698
    %v1700 = vpop.f32.mrf.mxu0
    %v1701 = vadd.f32 %v1663, %v1700
    %1702 = vdwg.mxu0
    %v1703 = vpack.c.bf16 %v1597, %v1595
    %v1704 = vpack.c.bf16 %v1649, %v1647
    %v1706 = vsel %vm873, %v1703, 0
    %v1709 = vsel %vm873, %v1704, 0
    %1711 = vmatpush.bf16.xpose.msra.mxu0 0
    %1712 = vmatpush.bf16.xpose.msra.mxu0 0
    %1713 = vmatpush.bf16.xpose.msra.mxu0 0
    %1714 = vmatpush.bf16.xpose.msra.mxu0 0
    %1715 = vmatpush.bf16.xpose.msra.mxu0 0
    %1716 = vmatpush.bf16.xpose.msra.mxu0 0
    %1717 = vmatpush.bf16.xpose.msra.mxu0 0
    %1718 = vmatpush.bf16.xpose.msra.mxu0 %v1709
    %1719 = vmatmul.bf16.gmra.mxu0 %v1706
    %v1720 = vpop.f32.mrf.mxu0
    %v1721 = vadd.f32 0.0, %v1720
    %v1722 = vpop.f32.mrf.mxu0
    %v1723 = vadd.f32 0.0, %v1722
    %1724 = vdwg.mxu0
    %v1725 = vmul.f32 %v1721, 0.17677669
    %v1726 = vmul.f32 %v1723, 0.17677669
    %v1727 = vadd.f32 %v1725, %v659
    %v1728 = vadd.f32 %v1726, %v660
    %v1729 = vsel %vm898, %v1727, -inf
    %1730 = vmax.xlane.f32.xlu0 %v1729
    %v1731 = vpop.xlane.xlu0 %1730
    %v1732 = vsel %vm902, %v1728, -inf
    %1733 = vmax.xlane.f32.xlu0 %v1732
    %v1734 = vpop.xlane.xlu0 %1733
    %v1735 = vsub.f32 %v1727, %v1731
    %v1736 = vsub.f32 %v1728, %v1734
    %v1737 = vmul.f32 %v1735, 1.442695
    %v1738 = vpow.pop %v1737
    %v1739 = vmul.f32 %v1736, 1.442695
    %v1740 = vpow.pop %v1739
    %v1741 = vsel %vm898, %v1738, 0.0
    %1742 = vadd.xlane.f32.xlu0 %v1741
    %v1743 = vpop.xlane.xlu0 %1742
    %v1744 = vsel %vm902, %v1740, 0.0
    %1745 = vadd.xlane.f32.xlu0 %v1744
    %v1746 = vpop.xlane.xlu0 %1745
    %v1747 = vrcp.pop %v1743
    %v1748 = vrcp.pop %v1746
    %v1749 = vmul.f32 %v1738, %v1747
    %v1750 = vmul.f32 %v1740, %v1748
    %v1751 = vpack.c.bf16 %v1750, %v1749
    %v1752 = vpack.c.bf16 %v1701, %v1699
    %v1754 = vsel %vm898, %v1751, 0
    %v1757 = vsel %vm927, %v1752, 0
    %1759 = vmatpush.bf16.msra.mxu0 0
    %1760 = vmatpush.bf16.msra.mxu0 0
    %1761 = vmatpush.bf16.msra.mxu0 0
    %1762 = vmatpush.bf16.msra.mxu0 0
    %1763 = vmatpush.bf16.msra.mxu0 0
    %1764 = vmatpush.bf16.msra.mxu0 0
    %1765 = vmatpush.bf16.msra.mxu0 0
    %1766 = vmatpush.bf16.msra.mxu0 %v1757
    %1767 = vmatmul.bf16.gmra.mxu0 %v1754
    %v1768 = vpop.f32.mrf.mxu0
    %v1769 = vadd.f32 0.0, %v1768
    %v1770 = vpop.f32.mrf.mxu0
    %v1771 = vadd.f32 0.0, %v1770
    %1772 = vdwg.mxu0
    %v1773 = vpack.c.bf16 %v1771, %v1769
    %s1774 = scalar_lea.vmem %s15, 32
    %v1775 = vld [vmem:[%s1774] sm:$0xf]
    %v1776 = vld [vmem:[%s1774 + $0x4] sm:$0xf]
    %v1777 = vld [vmem:[%s1774 + $0x8] sm:$0xf]
    %v1778 = vld [vmem:[%s1774 + $0xc] sm:$0xf]
    %s1779 = scalar_lea.vmem %s9, 96
    %v1780 = vld [vmem:[%s1779] sm:$0xf]
    %v1781 = vld [vmem:[%s1779 + $0x4] sm:$0xf]
    %v1782 = vld [vmem:[%s1779 + $0x8] sm:$0xf]
    %v1783 = vld [vmem:[%s1779 + $0xc] sm:$0xf]
    %v1784 = vld [vmem:[%s1779 + $0x10] sm:$0xf]
    %v1785 = vld [vmem:[%s1779 + $0x14] sm:$0xf]
    %v1786 = vld [vmem:[%s1779 + $0x18] sm:$0xf]
    %v1787 = vld [vmem:[%s1779 + $0x1c] sm:$0xf]
    %s1788 = scalar_lea.vmem %s10, 3
    %v1789 = vld [vmem:[%s1788] sm:$0x1]
    %v1791 = vperm.slane %v1789, 0
    %v1801 = vunpack.c.l.b16 %v1780
    %v1802 = vunpack.c.l.b16 %v1781
    %v1803 = vunpack.c.l.b16 %v1782
    %v1804 = vunpack.c.l.b16 %v1783
    %v1805 = vunpack.c.l.b16 %v1784
    %v1806 = vunpack.c.l.b16 %v1785
    %v1807 = vunpack.c.l.b16 %v1786
    %v1808 = vunpack.c.l.b16 %v1787
    %v1809 = vpack.c.b16 %v1802, %v1801
    %v1810 = vpack.c.b16 %v1804, %v1803
    %v1811 = vpack.c.b16 %v1806, %v1805
    %v1812 = vpack.c.b16 %v1808, %v1807
    %1817 = vmatpush.bf16.msra.mxu0 0
    %1818 = vmatpush.bf16.msra.mxu0 0
    %1819 = vmatpush.bf16.msra.mxu0 0
    %1820 = vmatpush.bf16.msra.mxu0 0
    %1821 = vmatpush.bf16.msra.mxu0 %v1812
    %1822 = vmatpush.bf16.msra.mxu0 %v1811
    %1823 = vmatpush.bf16.msra.mxu0 %v1810
    %1824 = vmatpush.bf16.msra.mxu0 %v1809
    %1825 = vmatmul.bf16.gmra.mxu0 %v1583
    %v1826 = vpop.f32.mrf.mxu0
    %v1827 = vadd.f32 %v1791, %v1826
    %v1828 = vpop.f32.mrf.mxu0
    %v1829 = vadd.f32 %v1791, %v1828
    %1830 = vdwg.mxu0
    %s1831 = scalar_lea.vmem %s11, 96
    %v1832 = vld [vmem:[%s1831] sm:$0xf]
    %v1833 = vld [vmem:[%s1831 + $0x4] sm:$0xf]
    %v1834 = vld [vmem:[%s1831 + $0x8] sm:$0xf]
    %v1835 = vld [vmem:[%s1831 + $0xc] sm:$0xf]
    %v1836 = vld [vmem:[%s1831 + $0x10] sm:$0xf]
    %v1837 = vld [vmem:[%s1831 + $0x14] sm:$0xf]
    %v1838 = vld [vmem:[%s1831 + $0x18] sm:$0xf]
    %v1839 = vld [vmem:[%s1831 + $0x1c] sm:$0xf]
    %s1840 = scalar_lea.vmem %s12, 3
    %v1841 = vld [vmem:[%s1840] sm:$0x1]
    %v1843 = vperm.slane %v1841, 0
    %v1853 = vunpack.c.l.b16 %v1832
    %v1854 = vunpack.c.l.b16 %v1833
    %v1855 = vunpack.c.l.b16 %v1834
    %v1856 = vunpack.c.l.b16 %v1835
    %v1857 = vunpack.c.l.b16 %v1836
    %v1858 = vunpack.c.l.b16 %v1837
    %v1859 = vunpack.c.l.b16 %v1838
    %v1860 = vunpack.c.l.b16 %v1839
    %v1861 = vpack.c.b16 %v1854, %v1853
    %v1862 = vpack.c.b16 %v1856, %v1855
    %v1863 = vpack.c.b16 %v1858, %v1857
    %v1864 = vpack.c.b16 %v1860, %v1859
    %1869 = vmatpush.bf16.msra.mxu0 0
    %1870 = vmatpush.bf16.msra.mxu0 0
    %1871 = vmatpush.bf16.msra.mxu0 0
    %1872 = vmatpush.bf16.msra.mxu0 0
    %1873 = vmatpush.bf16.msra.mxu0 %v1864
    %1874 = vmatpush.bf16.msra.mxu0 %v1863
    %1875 = vmatpush.bf16.msra.mxu0 %v1862
    %1876 = vmatpush.bf16.msra.mxu0 %v1861
    %1877 = vmatmul.bf16.gmra.mxu0 %v1583
    %v1878 = vpop.f32.mrf.mxu0
    %v1879 = vadd.f32 %v1843, %v1878
    %v1880 = vpop.f32.mrf.mxu0
    %v1881 = vadd.f32 %v1843, %v1880
    %1882 = vdwg.mxu0
    %s1883 = scalar_lea.vmem %s13, 96
    %v1884 = vld [vmem:[%s1883] sm:$0xf]
    %v1885 = vld [vmem:[%s1883 + $0x4] sm:$0xf]
    %v1886 = vld [vmem:[%s1883 + $0x8] sm:$0xf]
    %v1887 = vld [vmem:[%s1883 + $0xc] sm:$0xf]
    %v1888 = vld [vmem:[%s1883 + $0x10] sm:$0xf]
    %v1889 = vld [vmem:[%s1883 + $0x14] sm:$0xf]
    %v1890 = vld [vmem:[%s1883 + $0x18] sm:$0xf]
    %v1891 = vld [vmem:[%s1883 + $0x1c] sm:$0xf]
    %s1892 = scalar_lea.vmem %s14, 3
    %v1893 = vld [vmem:[%s1892] sm:$0x1]
    %v1895 = vperm.slane %v1893, 0
    %v1905 = vunpack.c.l.b16 %v1884
    %v1906 = vunpack.c.l.b16 %v1885
    %v1907 = vunpack.c.l.b16 %v1886
    %v1908 = vunpack.c.l.b16 %v1887
    %v1909 = vunpack.c.l.b16 %v1888
    %v1910 = vunpack.c.l.b16 %v1889
    %v1911 = vunpack.c.l.b16 %v1890
    %v1912 = vunpack.c.l.b16 %v1891
    %v1913 = vpack.c.b16 %v1906, %v1905
    %v1914 = vpack.c.b16 %v1908, %v1907
    %v1915 = vpack.c.b16 %v1910, %v1909
    %v1916 = vpack.c.b16 %v1912, %v1911
    %1921 = vmatpush.bf16.msra.mxu0 0
    %1922 = vmatpush.bf16.msra.mxu0 0
    %1923 = vmatpush.bf16.msra.mxu0 0
    %1924 = vmatpush.bf16.msra.mxu0 0
    %1925 = vmatpush.bf16.msra.mxu0 %v1916
    %1926 = vmatpush.bf16.msra.mxu0 %v1915
    %1927 = vmatpush.bf16.msra.mxu0 %v1914
    %1928 = vmatpush.bf16.msra.mxu0 %v1913
    %1929 = vmatmul.bf16.gmra.mxu0 %v1583
    %v1930 = vpop.f32.mrf.mxu0
    %v1931 = vadd.f32 %v1895, %v1930
    %v1932 = vpop.f32.mrf.mxu0
    %v1933 = vadd.f32 %v1895, %v1932
    %1934 = vdwg.mxu0
    %v1935 = vpack.c.bf16 %v1829, %v1827
    %v1936 = vpack.c.bf16 %v1881, %v1879
    %v1938 = vsel %vm873, %v1935, 0
    %v1941 = vsel %vm873, %v1936, 0
    %1943 = vmatpush.bf16.xpose.msra.mxu0 0
    %1944 = vmatpush.bf16.xpose.msra.mxu0 0
    %1945 = vmatpush.bf16.xpose.msra.mxu0 0
    %1946 = vmatpush.bf16.xpose.msra.mxu0 0
    %1947 = vmatpush.bf16.xpose.msra.mxu0 0
    %1948 = vmatpush.bf16.xpose.msra.mxu0 0
    %1949 = vmatpush.bf16.xpose.msra.mxu0 0
    %1950 = vmatpush.bf16.xpose.msra.mxu0 %v1941
    %1951 = vmatmul.bf16.gmra.mxu0 %v1938
    %v1952 = vpop.f32.mrf.mxu0
    %v1953 = vadd.f32 0.0, %v1952
    %v1954 = vpop.f32.mrf.mxu0
    %v1955 = vadd.f32 0.0, %v1954
    %1956 = vdwg.mxu0
    %v1957 = vmul.f32 %v1953, 0.17677669
    %v1958 = vmul.f32 %v1955, 0.17677669
    %v1959 = vadd.f32 %v1957, %v659
    %v1960 = vadd.f32 %v1958, %v660
    %v1961 = vsel %vm898, %v1959, -inf
    %1962 = vmax.xlane.f32.xlu0 %v1961
    %v1963 = vpop.xlane.xlu0 %1962
    %v1964 = vsel %vm902, %v1960, -inf
    %1965 = vmax.xlane.f32.xlu0 %v1964
    %v1966 = vpop.xlane.xlu0 %1965
    %v1967 = vsub.f32 %v1959, %v1963
    %v1968 = vsub.f32 %v1960, %v1966
    %v1969 = vmul.f32 %v1967, 1.442695
    %v1970 = vpow.pop %v1969
    %v1971 = vmul.f32 %v1968, 1.442695
    %v1972 = vpow.pop %v1971
    %v1973 = vsel %vm898, %v1970, 0.0
    %1974 = vadd.xlane.f32.xlu0 %v1973
    %v1975 = vpop.xlane.xlu0 %1974
    %v1976 = vsel %vm902, %v1972, 0.0
    %1977 = vadd.xlane.f32.xlu0 %v1976
    %v1978 = vpop.xlane.xlu0 %1977
    %v1979 = vrcp.pop %v1975
    %v1980 = vrcp.pop %v1978
    %v1981 = vmul.f32 %v1970, %v1979
    %v1982 = vmul.f32 %v1972, %v1980
    %v1983 = vpack.c.bf16 %v1982, %v1981
    %v1984 = vpack.c.bf16 %v1933, %v1931
    %v1986 = vsel %vm898, %v1983, 0
    %v1989 = vsel %vm927, %v1984, 0
    %1991 = vmatpush.bf16.msra.mxu0 0
    %1992 = vmatpush.bf16.msra.mxu0 0
    %1993 = vmatpush.bf16.msra.mxu0 0
    %1994 = vmatpush.bf16.msra.mxu0 0
    %1995 = vmatpush.bf16.msra.mxu0 0
    %1996 = vmatpush.bf16.msra.mxu0 0
    %1997 = vmatpush.bf16.msra.mxu0 0
    %1998 = vmatpush.bf16.msra.mxu0 %v1989
    %1999 = vmatmul.bf16.gmra.mxu0 %v1986
    %v2000 = vpop.f32.mrf.mxu0
    %v2001 = vadd.f32 0.0, %v2000
    %v2002 = vpop.f32.mrf.mxu0
    %v2003 = vadd.f32 0.0, %v2002
    %2004 = vdwg.mxu0
    %v2005 = vpack.c.bf16 %v2003, %v2001
    %s2006 = scalar_lea.vmem %s15, 48
    %v2007 = vld [vmem:[%s2006] sm:$0xf]
    %v2008 = vld [vmem:[%s2006 + $0x4] sm:$0xf]
    %v2009 = vld [vmem:[%s2006 + $0x8] sm:$0xf]
    %v2010 = vld [vmem:[%s2006 + $0xc] sm:$0xf]
    %v2015 = vunpack.c.l.b16 %v2007
    %v2016 = vunpack.c.l.b16 %v2008
    %v2017 = vunpack.c.l.b16 %v2009
    %v2018 = vunpack.c.l.b16 %v2010
    %v2019 = vpack.c.b16 %v2016, %v2015
    %v2020 = vpack.c.b16 %v2018, %v2017
    %v2024 = vsel %vm873, %v2005, 0
    %2026 = vmatpush.bf16.msra.mxu0 0
    %2027 = vmatpush.bf16.msra.mxu0 0
    %2028 = vmatpush.bf16.msra.mxu0 0
    %2029 = vmatpush.bf16.msra.mxu0 0
    %2030 = vmatpush.bf16.msra.mxu0 0
    %2031 = vmatpush.bf16.msra.mxu0 0
    %2032 = vmatpush.bf16.msra.mxu0 %v2020
    %2033 = vmatpush.bf16.msra.mxu0 %v2019
    %2034 = vmatmul.bf16.gmra.mxu0 %v2024
    %v2035 = vpop.f32.mrf.mxu0
    %v2036 = vadd.f32 0.0, %v2035
    %v2037 = vpop.f32.mrf.mxu0
    %v2038 = vadd.f32 0.0, %v2037
    %2039 = vdwg.mxu0
    %v2044 = vunpack.c.l.b16 %v1775
    %v2045 = vunpack.c.l.b16 %v1776
    %v2046 = vunpack.c.l.b16 %v1777
    %v2047 = vunpack.c.l.b16 %v1778
    %v2048 = vpack.c.b16 %v2045, %v2044
    %v2049 = vpack.c.b16 %v2047, %v2046
    %v2053 = vsel %vm873, %v1773, 0
    %2055 = vmatpush.bf16.msra.mxu0 0
    %2056 = vmatpush.bf16.msra.mxu0 0
    %2057 = vmatpush.bf16.msra.mxu0 0
    %2058 = vmatpush.bf16.msra.mxu0 0
    %2059 = vmatpush.bf16.msra.mxu0 0
    %2060 = vmatpush.bf16.msra.mxu0 0
    %2061 = vmatpush.bf16.msra.mxu0 %v2049
    %2062 = vmatpush.bf16.msra.mxu0 %v2048
    %2063 = vmatmul.bf16.gmra.mxu0 %v2053
    %v2064 = vpop.f32.mrf.mxu0
    %v2065 = vadd.f32 %v2036, %v2064
    %v2066 = vpop.f32.mrf.mxu0
    %v2067 = vadd.f32 %v2038, %v2066
    %2068 = vdwg.mxu0
    %v2069 = vadd.f32 %v1483, %v2065
    %v2070 = vadd.f32 %v1484, %v2067
    %s2071 = scalar_lea.vmem %s16, 1
    %v2072 = vld [vmem:[%s2071] sm:$0x1]
    %v2074 = vperm.slane %v2072, 0
    %v2076 = vadd.f32 %v2069, %v2074
    %v2077 = vadd.f32 %v2070, %v2074
    %s2078 = scalar_lea.vmem %s17, 1
    %v2079 = vld [vmem:[%s2078] sm:$0x1]
    %s2080 = scalar_lea.vmem %s18, 1
    %v2081 = vld [vmem:[%s2080] sm:$0x1]
    %v2082 = vsel %vm596, %v2076, 0.0
    %2083 = vadd.xlane.f32.xlu0 %v2082
    %v2084 = vpop.xlane.xlu0 %2083
    %v2085 = vsel %vm600, %v2077, 0.0
    %2086 = vadd.xlane.f32.xlu0 %v2085
    %v2087 = vpop.xlane.xlu0 %2086
    %v2088 = vmul.f32 %v2084, %v610
    %v2089 = vmul.f32 %v2087, %v610
    %v2090 = vsub.f32 %v2076, %v2088
    %v2091 = vsub.f32 %v2077, %v2089
    %v2092 = vmul.f32 %v2090, %v2090
    %v2093 = vmul.f32 %v2091, %v2091
    %v2094 = vsel %vm596, %v2092, 0.0
    %2095 = vadd.xlane.f32.xlu0 %v2094
    %v2096 = vpop.xlane.xlu0 %2095
    %v2097 = vsel %vm600, %v2093, 0.0
    %2098 = vadd.xlane.f32.xlu0 %v2097
    %v2099 = vpop.xlane.xlu0 %2098
    %v2100 = vmul.f32 %v2096, %v610
    %v2101 = vmul.f32 %v2099, %v610
    %v2102 = vadd.f32 %v2100, 1e-05
    %v2103 = vadd.f32 %v2101, 1e-05
    %v2104 = vrsqrt.pop %v2102
    %v2105 = vmul.f32 %v2104, %v2102
    %v2106 = vmul.f32 %v2105, %v2104
    %v2107 = vmul.f32 0.5, %v2106
    %v2108 = vsub.f32 1.5, %v2107
    %v2109 = vmul.f32 %v2104, %v2108
    %vm2110 = vweird.f32 %v2102
    %vm2111 = vweird.f32 %v2104
    %vm2112 = vmor %vm2110, %vm2111
    %v2113 = vsel %vm2112, %v2104, %v2109
    %v2114 = vrsqrt.pop %v2103
    %v2115 = vmul.f32 %v2114, %v2103
    %v2116 = vmul.f32 %v2115, %v2114
    %v2117 = vmul.f32 0.5, %v2116
    %v2118 = vsub.f32 1.5, %v2117
    %v2119 = vmul.f32 %v2114, %v2118
    %vm2120 = vweird.f32 %v2103
    %vm2121 = vweird.f32 %v2114
    %vm2122 = vmor %vm2120, %vm2121
    %v2123 = vsel %vm2122, %v2114, %v2119
    %v2124 = vmul.f32 %v2090, %v2113
    %v2125 = vmul.f32 %v2091, %v2123
    %v2127 = vperm.slane %v2079, 0
    %v2129 = vmul.f32 %v2124, %v2127
    %v2130 = vmul.f32 %v2125, %v2127
    %v2132 = vperm.slane %v2081, 0
    %v2134 = vadd.f32 %v2129, %v2132
    %v2135 = vadd.f32 %v2130, %v2132
    %v2136 = vpack.c.bf16 %v2135, %v2134
    %s2137 = scalar_lea.vmem %s19, 32
    %v2138 = vld [vmem:[%s2137] sm:$0xf]
    %v2139 = vld [vmem:[%s2137 + $0x4] sm:$0xf]
    %v2140 = vld [vmem:[%s2137 + $0x8] sm:$0xf]
    %v2141 = vld [vmem:[%s2137 + $0xc] sm:$0xf]
    %v2142 = vld [vmem:[%s2137 + $0x10] sm:$0xf]
    %v2143 = vld [vmem:[%s2137 + $0x14] sm:$0xf]
    %v2144 = vld [vmem:[%s2137 + $0x18] sm:$0xf]
    %v2145 = vld [vmem:[%s2137 + $0x1c] sm:$0xf]
    %s2146 = scalar_lea.vmem %s20, 1
    %v2147 = vld [vmem:[%s2146] sm:$0x1]
    %v2149 = vperm.slane %v2147, 0
    %v2159 = vunpack.c.l.b16 %v2138
    %v2160 = vunpack.c.l.b16 %v2139
    %v2161 = vunpack.c.l.b16 %v2140
    %v2162 = vunpack.c.l.b16 %v2141
    %v2163 = vunpack.c.l.b16 %v2142
    %v2164 = vunpack.c.l.b16 %v2143
    %v2165 = vunpack.c.l.b16 %v2144
    %v2166 = vunpack.c.l.b16 %v2145
    %v2167 = vpack.c.b16 %v2160, %v2159
    %v2168 = vpack.c.b16 %v2162, %v2161
    %v2169 = vpack.c.b16 %v2164, %v2163
    %v2170 = vpack.c.b16 %v2166, %v2165
    %v2176 = vsel %vm596, %v2136, 0
    %2178 = vmatpush.bf16.msra.mxu0 0
    %2179 = vmatpush.bf16.msra.mxu0 0
    %2180 = vmatpush.bf16.msra.mxu0 0
    %2181 = vmatpush.bf16.msra.mxu0 0
    %2182 = vmatpush.bf16.msra.mxu0 %v2170
    %2183 = vmatpush.bf16.msra.mxu0 %v2169
    %2184 = vmatpush.bf16.msra.mxu0 %v2168
    %2185 = vmatpush.bf16.msra.mxu0 %v2167
    %2186 = vmatmul.bf16.gmra.mxu0 %v2176
    %v2187 = vpop.f32.mrf.mxu0
    %v2188 = vadd.f32 %v2149, %v2187
    %v2189 = vpop.f32.mrf.mxu0
    %v2190 = vadd.f32 %v2149, %v2189
    %2191 = vdwg.mxu0
    %v2192 = vmul.f32 %v2188, 1.702
    %v2193 = vmul.f32 %v2190, 1.702
    %v2194 = vxor.u32 %v2192, 2147483648
    %v2195 = vxor.u32 %v2193, 2147483648
    %v2196 = vmul.f32 %v2194, 1.442695
    %v2197 = vpow.pop %v2196
    %v2198 = vmul.f32 %v2195, 1.442695
    %v2199 = vpow.pop %v2198
    %v2200 = vadd.f32 %v2197, 1.0
    %v2201 = vadd.f32 %v2199, 1.0
    %v2202 = vrcp.pop %v2200
    %v2203 = vmul.f32 %v2200, %v2202
    %v2204 = vsub.f32 1.0, %v2203
    %v2205 = vmul.f32 %v2202, %v2204
    %v2206 = vadd.f32 %v2202, %v2205
    %vm2207 = vweird.f32 %v2200
    %vm2208 = vweird.f32 %v2202
    %vm2209 = vmor %vm2207, %vm2208
    %v2210 = vsel %vm2209, %v2202, %v2206
    %v2211 = vand.u32 2147483647, %v2200
    %vm2212 = vcmp.eq.f32.partialorder %v2211, 8.507059e+37
    %v2213 = vand.u32 %v2200, 2147483648
    %v2214 = vor.u32 1.1754944e-38, %v2213
    %v2215 = vsel %vm2212, %v2214, %v2210
    %v2216 = vmul.f32 1.0, %v2215
    %v2217 = vrcp.pop %v2201
    %v2218 = vmul.f32 %v2201, %v2217
    %v2219 = vsub.f32 1.0, %v2218
    %v2220 = vmul.f32 %v2217, %v2219
    %v2221 = vadd.f32 %v2217, %v2220
    %vm2222 = vweird.f32 %v2201
    %vm2223 = vweird.f32 %v2217
    %vm2224 = vmor %vm2222, %vm2223
    %v2225 = vsel %vm2224, %v2217, %v2221
    %v2226 = vand.u32 2147483647, %v2201
    %vm2227 = vcmp.eq.f32.partialorder %v2226, 8.507059e+37
    %v2228 = vand.u32 %v2201, 2147483648
    %v2229 = vor.u32 1.1754944e-38, %v2228
    %v2230 = vsel %vm2227, %v2229, %v2225
    %v2231 = vmul.f32 1.0, %v2230
    %v2232 = vmul.f32 %v2188, %v2216
    %v2233 = vmul.f32 %v2190, %v2231
    %v2234 = vpack.c.bf16 %v2233, %v2232
    %s2235 = scalar_lea.vmem %s21, 64
    %v2236 = vld [vmem:[%s2235] sm:$0xf]
    %v2237 = vld [vmem:[%s2235 + $0x4] sm:$0xf]
    %v2238 = vld [vmem:[%s2235 + $0x8] sm:$0xf]
    %v2239 = vld [vmem:[%s2235 + $0xc] sm:$0xf]
    %v2240 = vld [vmem:[%s2235 + $0x10] sm:$0xf]
    %v2241 = vld [vmem:[%s2235 + $0x14] sm:$0xf]
    %v2242 = vld [vmem:[%s2235 + $0x18] sm:$0xf]
    %v2243 = vld [vmem:[%s2235 + $0x1c] sm:$0xf]
    %v2244 = vld [vmem:[%s2235 + $0x20] sm:$0xf]
    %v2245 = vld [vmem:[%s2235 + $0x24] sm:$0xf]
    %v2246 = vld [vmem:[%s2235 + $0x28] sm:$0xf]
    %v2247 = vld [vmem:[%s2235 + $0x2c] sm:$0xf]
    %v2248 = vld [vmem:[%s2235 + $0x30] sm:$0xf]
    %v2249 = vld [vmem:[%s2235 + $0x34] sm:$0xf]
    %v2250 = vld [vmem:[%s2235 + $0x38] sm:$0xf]
    %v2251 = vld [vmem:[%s2235 + $0x3c] sm:$0xf]
    %s2252 = scalar_lea.vmem %s22, 1
    %v2253 = vld [vmem:[%s2252] sm:$0x1]
    %v2255 = vperm.slane %v2253, 0
    %v2273 = vunpack.c.l.b16 %v2236
    %v2274 = vunpack.c.l.b16 %v2237
    %v2275 = vunpack.c.l.b16 %v2238
    %v2276 = vunpack.c.l.b16 %v2239
    %v2277 = vunpack.c.l.b16 %v2240
    %v2278 = vunpack.c.l.b16 %v2241
    %v2279 = vunpack.c.l.b16 %v2242
    %v2280 = vunpack.c.l.b16 %v2243
    %v2281 = vunpack.c.l.b16 %v2244
    %v2282 = vunpack.c.l.b16 %v2245
    %v2283 = vunpack.c.l.b16 %v2246
    %v2284 = vunpack.c.l.b16 %v2247
    %v2285 = vunpack.c.l.b16 %v2248
    %v2286 = vunpack.c.l.b16 %v2249
    %v2287 = vunpack.c.l.b16 %v2250
    %v2288 = vunpack.c.l.b16 %v2251
    %v2289 = vpack.c.b16 %v2274, %v2273
    %v2290 = vpack.c.b16 %v2276, %v2275
    %v2291 = vpack.c.b16 %v2278, %v2277
    %v2292 = vpack.c.b16 %v2280, %v2279
    %v2293 = vpack.c.b16 %v2282, %v2281
    %v2294 = vpack.c.b16 %v2284, %v2283
    %v2295 = vpack.c.b16 %v2286, %v2285
    %v2296 = vpack.c.b16 %v2288, %v2287
    %2305 = vmatpush.bf16.msra.mxu0 %v2296
    %2306 = vmatpush.bf16.msra.mxu0 %v2295
    %2307 = vmatpush.bf16.msra.mxu0 %v2294
    %2308 = vmatpush.bf16.msra.mxu0 %v2293
    %2309 = vmatpush.bf16.msra.mxu0 %v2292
    %2310 = vmatpush.bf16.msra.mxu0 %v2291
    %2311 = vmatpush.bf16.msra.mxu0 %v2290
    %2312 = vmatpush.bf16.msra.mxu0 %v2289
    %2313 = vmatmul.bf16.gmra.mxu0 %v2234
    %v2314 = vpop.f32.mrf.mxu0
    %v2315 = vadd.f32 %v2255, %v2314
    %v2316 = vpop.f32.mrf.mxu0
    %v2317 = vadd.f32 %v2255, %v2316
    %2318 = vdwg.mxu0
    %v2319 = vadd.f32 %v2076, %v2315
    %v2320 = vadd.f32 %v2077, %v2317
    %v2321 = vld [vmem:[%s6] sm:$0x3]
    %v2323 = vsel %vm898, %v2321, 0
    %vm2325 = vcmask 1041408
    %v2327 = vsel %vm2325, %v2320, 0
    %2329 = vmatpush.msra.mxu0 0.0
    %2330 = vmatpush.msra.mxu0 0.0
    %2331 = vmatpush.msra.mxu0 0.0
    %2332 = vmatpush.msra.mxu0 0.0
    %2333 = vmatpush.msra.mxu0 0.0
    %2334 = vmatpush.msra.mxu0 0.0
    %2335 = vmatpush.msra.mxu0 0.0
    %2336 = vmatpush.msra.mxu0 0.0
    %2337 = vmatpush.msra.mxu0 0.0
    %2338 = vmatpush.msra.mxu0 0.0
    %2339 = vmatpush.msra.mxu0 0.0
    %2340 = vmatpush.msra.mxu0 0.0
    %2341 = vmatpush.msra.mxu0 0.0
    %2342 = vmatpush.msra.mxu0 0.0
    %2343 = vmatpush.msra.mxu0 %v2327
    %2344 = vmatpush.msra.mxu0 %v2319
    %2345 = vmatmul.f32.gmra.mxu0 %v2323
    %v2346 = vpop.f32.mrf.mxu0
    %v2347 = vadd.f32 0.0, %v2346
    %2348 = vdwg.mxu0
    %v2349 = vld [vmem:[%s23] sm:$0x1]
    %v2350 = vld [vmem:[%s24] sm:$0x1]
    %v2351 = vsel %vm600, %v2347, 0.0
    %2352 = vadd.xlane.f32.xlu0 %v2351
    %v2353 = vpop.xlane.xlu0 %2352
    %v2354 = vmul.f32 %v2353, %v610
    %v2355 = vsub.f32 %v2347, %v2354
    %v2356 = vmul.f32 %v2355, %v2355
    %v2357 = vsel %vm600, %v2356, 0.0
    %2358 = vadd.xlane.f32.xlu0 %v2357
    %v2359 = vpop.xlane.xlu0 %2358
    %v2360 = vmul.f32 %v2359, %v610
    %v2361 = vadd.f32 %v2360, 1e-05
    %v2362 = vrsqrt.pop %v2361
    %v2363 = vmul.f32 %v2362, %v2361
    %v2364 = vmul.f32 %v2363, %v2362
    %v2365 = vmul.f32 0.5, %v2364
    %v2366 = vsub.f32 1.5, %v2365
    %v2367 = vmul.f32 %v2362, %v2366
    %vm2368 = vweird.f32 %v2361
    %vm2369 = vweird.f32 %v2362
    %vm2370 = vmor %vm2368, %vm2369
    %v2371 = vsel %vm2370, %v2362, %v2367
    %v2372 = vmul.f32 %v2355, %v2371
    %v2374 = vperm.slane %v2349, 0
    %v2376 = vmul.f32 %v2372, %v2374
    %v2378 = vperm.slane %v2350, 0
    %v2380 = vadd.f32 %v2376, %v2378
    %v2381 = vpack.c.bf16 %v2380, %v2380
    %v2382 = vld [vmem:[%s25] sm:$0xf]
    %v2383 = vld [vmem:[%s25 + $0x4] sm:$0xf]
    %v2384 = vld [vmem:[%s25 + $0x8] sm:$0xf]
    %v2385 = vld [vmem:[%s25 + $0xc] sm:$0xf]
    %v2386 = vld [vmem:[%s25 + $0x10] sm:$0xf]
    %v2387 = vld [vmem:[%s25 + $0x14] sm:$0xf]
    %v2388 = vld [vmem:[%s25 + $0x18] sm:$0xf]
    %v2389 = vld [vmem:[%s25 + $0x1c] sm:$0xf]
    %v2398 = vunpack.c.l.b16 %v2382
    %v2399 = vunpack.c.l.b16 %v2383
    %v2400 = vunpack.c.l.b16 %v2384
    %v2401 = vunpack.c.l.b16 %v2385
    %v2402 = vunpack.c.l.b16 %v2386
    %v2403 = vunpack.c.l.b16 %v2387
    %v2404 = vunpack.c.l.b16 %v2388
    %v2405 = vunpack.c.l.b16 %v2389
    %v2406 = vpack.c.b16 %v2399, %v2398
    %v2407 = vpack.c.b16 %v2401, %v2400
    %v2408 = vpack.c.b16 %v2403, %v2402
    %v2409 = vpack.c.b16 %v2405, %v2404
    %v2415 = vsel %vm596, %v2381, 0
    %2417 = vmatpush.bf16.msra.mxu0 0
    %2418 = vmatpush.bf16.msra.mxu0 0
    %2419 = vmatpush.bf16.msra.mxu0 0
    %2420 = vmatpush.bf16.msra.mxu0 0
    %2421 = vmatpush.bf16.msra.mxu0 %v2409
    %2422 = vmatpush.bf16.msra.mxu0 %v2408
    %2423 = vmatpush.bf16.msra.mxu0 %v2407
    %2424 = vmatpush.bf16.msra.mxu0 %v2406
    %2425 = vmatmul.bf16.gmra.mxu0 %v2415
    %v2426 = vpop.f32.mrf.mxu0
    %v2427 = vadd.f32 0.0, %v2426
    %v2428 = vpop.f32.mrf.mxu0
    %2429 = vdwg.mxu0
    %v2430 = vmul.f32 %v2427, %v2427
    %vm2431 = vcmask 254976
    %v2432 = vsel %vm2431, %v2430, 0.0
    %2433 = vadd.xlane.f32.xlu0 %v2432
    %v2434 = vpop.xlane.xlu0 %2433
    %v2435 = vadd.f32 %v2434, 1e-12
    %v2436 = vrsqrt.pop %v2435
    %v2437 = vmul.f32 %v2436, %v2435
    %v2438 = vmul.f32 %v2437, %v2436
    %v2439 = vmul.f32 0.5, %v2438
    %v2440 = vsub.f32 1.5, %v2439
    %v2441 = vmul.f32 %v2436, %v2440
    %vm2442 = vweird.f32 %v2435
    %vm2443 = vweird.f32 %v2436
    %vm2444 = vmor %vm2442, %vm2443
    %v2445 = vsel %vm2444, %v2436, %v2441
    %v2446 = vmul.f32 %v2427, %v2445
    %v2447 = vpack.c.bf16 %v2446, %v2446
    %v2448 = vld [vmem:[%s26] sm:$0xf]
    %v2449 = vld [vmem:[%s26 + $0x4] sm:$0xf]
    %v2450 = vld [vmem:[%s26 + $0x8] sm:$0xf]
    %v2451 = vld [vmem:[%s26 + $0xc] sm:$0xf]
    %v2456 = vunpack.c.l.b16 %v2448
    %v2457 = vunpack.c.l.b16 %v2449
    %v2458 = vunpack.c.l.b16 %v2450
    %v2459 = vunpack.c.l.b16 %v2451
    %v2460 = vpack.c.b16 %v2457, %v2456
    %v2461 = vpack.c.b16 %v2459, %v2458
    %v2465 = vsel %vm873, %v2447, 0
    %2467 = vmatpush.bf16.msra.mxu0 0
    %2468 = vmatpush.bf16.msra.mxu0 0
    %2469 = vmatpush.bf16.msra.mxu0 0
    %2470 = vmatpush.bf16.msra.mxu0 0
    %2471 = vmatpush.bf16.msra.mxu0 0
    %2472 = vmatpush.bf16.msra.mxu0 0
    %2473 = vmatpush.bf16.msra.mxu0 %v2461
    %2474 = vmatpush.bf16.msra.mxu0 %v2460
    %2475 = vmatmul.bf16.gmra.mxu0 %v2465
    %v2476 = vpop.f32.mrf.mxu0
    %v2477 = vadd.f32 0.0, %v2476
    %v2478 = vpop.f32.mrf.mxu0
    %2479 = vdwg.mxu0
    %2480 = vst [vmem:[#allocation2] sm:$0x3] %v2477
    // Predicated region
    $region110: #{_lambda_.1} parent=1 // pred_check
      _
    $region111: #{_lambda_.1} parent=1 // pred_check_branch
      %2482 = sbr.rel (0) target = $region113
    $region112: #{_lambda_.1} parent=1 // pred_region
      %2484 = vsyncadd [#allocation3], 0
      %s2486 = sshll.u32 [#allocation2], 4
      %s2487 = int_to_ptr.vmem [resolvable:$true] %s2486
      %s2488 = sshll.u32 %s27, 4
      %s2489 = int_to_ptr.hbm [resolvable:$true] %s2488
      %2491 = dma.vmem_to_hbm [thread:$0]  %s2487, 32, %s2489, [#allocation3]
    $region113: #{_lambda_.1} parent=1 // pred_fallthru
      _
    // Predicated region
    $region114: #{_lambda_.1} parent=1 // pred_check
      _
    $region115: #{_lambda_.1} parent=1 // pred_check_branch
      %2493 = sbr.rel (0) target = $region117
    $region116: #{_lambda_.1} parent=1 // pred_region
      %2495 = dma.done [#allocation3], 32
    $region117: #{_lambda_.1} parent=1 // pred_fallthru
      _
    %2496 = vsyncpa [#allocation3], 1

</llo_original>
